<compile_context>
chip_gen: v6e
topology: v6e:2x2x1
jax: 0.10.0
libtpu: 0.0.40
codegen_flags: <defaults>
</compile_context>

<pallas_src>
import numpy as np
import jax
import jax.numpy as jnp
from jax import lax
from jax.experimental import pallas as pl
from jax.experimental.pallas import tpu as pltpu

_PADL = 128   # lane width of the padded scratch (one full vreg of lanes)
_LPAD = 4     # slack lanes before the padded image (must be >= C - 1)


def _trans_basic_block_kernel(x_ref, cw1_ref, cw2_ref, bias_ref, out_ref,
                              pad_ref):
    # x_ref    : (1, H, W*C)     image slab, lane index = w*C + c
    # cw*_ref  : (3, 4*C-1, W*C) pre-combined conv weights (BN scale folded in)
    #                            indexed by (kh, lane shift, output lane)
    # bias_ref : (2, W*C)        folded BN shifts (bn1 row 0, bn2 row 1)
    # pad_ref  : (H+2, _PADL)    VMEM zero-padded working slab
    _, H, WC = x_ref.shape
    KH, S, _ = cw1_ref.shape           # S = 4*C - 1 lane shifts per kernel row
    C = (S + 1) // 4
    smin = -(C - 1)                    # most negative lane shift
    lo = _LPAD + C                     # first interior lane (w=0, c=0)
    hi = lo + WC                       # one past last interior lane
    rz = 2 * C - 1                     # right zero lanes the reads can touch

    x = x_ref[0].astype(jnp.float32)   # (H, WC)

    # ---- padded slab: only lanes the shifted reads touch are written -------
    zrow = jnp.zeros((1, _PADL), jnp.float32)
    pad_ref[0:1, :] = zrow                                    # top pad row
    pad_ref[H + 1:H + 2, :] = zrow                            # bottom pad row
    pad_ref[1:H + 1, 0:lo] = jnp.zeros((H, lo), jnp.float32)          # left
    pad_ref[1:H + 1, hi:hi + rz] = jnp.zeros((H, rz), jnp.float32)    # right
    pad_ref[1:H + 1, lo:hi] = x                               # interior = x

    def conv3x3(cw_ref):
        # 3x3 "same" conv as 3*S shifted VPU multiply-accumulates over the
        # (H, WC) slab; the (kw, cin, cout) mixing lives in the static lane
        # shift + the per-lane weight vector.
        acc = jnp.zeros((H, WC), jnp.float32)
        for kh in range(KH):
            for si in range(S):
                start = _LPAD + smin + si          # static lane offset
                acc = acc + (pad_ref[kh:kh + H, start:start + WC]
                             * cw_ref[kh, si, :])
        return acc

    # ---- conv1 -> bn1 -> relu (scale pre-folded into cw1) ------------------
    h1 = jnp.maximum(conv3x3(cw1_ref) + bias_ref[0:1, :], 0.0)
    pad_ref[1:H + 1, lo:hi] = h1       # borders / pad lanes are still zero

    # ---- conv2 -> bn2 -> residual add -> relu -------------------------------
    h2 = conv3x3(cw2_ref) + bias_ref[1:2, :]
    out_ref[0] = jnp.maximum(h2 + x, 0.0).astype(out_ref.dtype)


def _fold_bn(gamma, beta, mean, var, eps=1e-5):
    gamma = np.asarray(gamma, np.float32)
    beta = np.asarray(beta, np.float32)
    mean = np.asarray(mean, np.float32)
    var = np.asarray(var, np.float32)
    scale = gamma / np.sqrt(var + eps)
    shift = beta - mean * scale
    return scale, shift


def _combine_conv3x3_weights(w_oihw, out_scale, width):
    """Fold (kw, cin, cout) mixing of a 3x3 conv into per-lane shift weights.

    Lane index of the (H, width*C) slab is w*C + cout.  For a relative lane
    shift s = kw*C + cin - cout there is at most one valid (kw, cin) per
    (s, cout), so the conv becomes a sum over (kh, s) of shifted-slab * cw.
    The eval-mode BatchNorm scale (per cout) is folded into the weights.
    Returns cw of shape (3, 4*C - 1, width*C).
    """
    w = np.asarray(w_oihw, np.float32)
    w = w * np.asarray(out_scale, np.float32)[:, None, None, None]
    cout_n, cin_n, kh_n, kw_n = w.shape
    assert kh_n == 3 and kw_n == 3 and cout_n == cin_n
    C = cin_n
    smin = -(C - 1)
    S = 4 * C - 1
    cw = np.zeros((3, S, C), np.float32)
    for kh in range(3):
        for kw in range(3):
            for cin in range(C):
                for cout in range(C):
                    s = kw * C + cin - cout
                    cw[kh, s - smin, cout] += w[cout, cin, kh, kw]
    return jnp.asarray(np.tile(cw, (1, 1, width)))   # (3, S, width*C)


def trans_basic_block(x_nhwc, w1_oihw, gamma1, beta1, mean1, var1,
                      w2_oihw, gamma2, beta2, mean2, var2, eps=1e-5):
    N, H, W, C = x_nhwc.shape
    # Only the stride=1 / upsample=None branch (inplanes == planes).
    assert w1_oihw.shape == (C, C, 3, 3) and w2_oihw.shape == (C, C, 3, 3)
    WC = W * C
    S = 4 * C - 1
    assert _LPAD >= C - 1
    assert _LPAD + 3 * C - 1 + WC <= _PADL     # widest shifted slice fits

    sc1, sh1 = _fold_bn(gamma1, beta1, mean1, var1, eps)
    sc2, sh2 = _fold_bn(gamma2, beta2, mean2, var2, eps)

    x2d = x_nhwc.reshape(N, H, WC)
    cw1 = _combine_conv3x3_weights(np.asarray(w1_oihw), sc1, W)
    cw2 = _combine_conv3x3_weights(np.asarray(w2_oihw), sc2, W)
    # tile the per-channel folded BN shifts onto the (w*C + c) lane layout
    bias = jnp.asarray(np.stack([np.tile(sh1, W), np.tile(sh2, W)], axis=0))

    out2d = pl.pallas_call(
        _trans_basic_block_kernel,
        out_shape=jax.ShapeDtypeStruct((N, H, WC), x_nhwc.dtype),
        grid_spec=pltpu.PrefetchScalarGridSpec(
            num_scalar_prefetch=0,
            grid=(N,),
            in_specs=[
                pl.BlockSpec((1, H, WC), lambda n: (n, 0, 0)),
                pl.BlockSpec((3, S, WC), lambda n: (0, 0, 0)),
                pl.BlockSpec((3, S, WC), lambda n: (0, 0, 0)),
                pl.BlockSpec((2, WC), lambda n: (0, 0)),
            ],
            out_specs=pl.BlockSpec((1, H, WC), lambda n: (n, 0, 0)),
            scratch_shapes=[pltpu.VMEM((H + 2, _PADL), jnp.float32)],
        ),
        compiler_params=pltpu.CompilerParams(
            dimension_semantics=("parallel",)),
    )(x2d, cw1, cw2, bias)
    return out2d.reshape(N, H, W, C)


def _ref_forward(x_nhwc, w1_oihw, gamma1, beta1, mean1, var1,
                 w2_oihw, gamma2, beta2, mean2, var2, eps=1e-5):
    # Pure-JAX reference (NHWC / HWIO conv), eval-mode BatchNorm.
    def conv(x, w_oihw):
        w_hwio = jnp.transpose(w_oihw, (2, 3, 1, 0))
        return lax.conv_general_dilated(
            x, w_hwio, window_strides=(1, 1), padding="SAME",
            dimension_numbers=("NHWC", "HWIO", "NHWC"))

    def bn(x, g, b, m, v):
        return (x - m) * (g / jnp.sqrt(v + eps)) + b

    out = jnp.maximum(bn(conv(x_nhwc, w1_oihw), gamma1, beta1, mean1, var1), 0.)
    out = bn(conv(out, w2_oihw), gamma2, beta2, mean2, var2)
    return jnp.maximum(out + x_nhwc, 0.0)


if __name__ == "__main__":
    # TransBasicBlock(inplanes=4, planes=4, stride=1, upsample=None)
    N, C, H, W = 2, 4, 16, 16
    key = jax.random.PRNGKey(0)
    keys = jax.random.split(key, 11)

    x_nchw = jax.random.normal(keys[0], (N, C, H, W), jnp.float32)
    w1_oihw = 0.2 * jax.random.normal(keys[1], (C, C, 3, 3), jnp.float32)
    w2_oihw = 0.2 * jax.random.normal(keys[2], (C, C, 3, 3), jnp.float32)
    gamma1 = 1.0 + 0.1 * jax.random.normal(keys[3], (C,), jnp.float32)
    beta1 = 0.1 * jax.random.normal(keys[4], (C,), jnp.float32)
    mean1 = 0.1 * jax.random.normal(keys[5], (C,), jnp.float32)
    var1 = jnp.abs(jax.random.normal(keys[6], (C,), jnp.float32)) + 0.5
    gamma2 = 1.0 + 0.1 * jax.random.normal(keys[7], (C,), jnp.float32)
    beta2 = 0.1 * jax.random.normal(keys[8], (C,), jnp.float32)
    mean2 = 0.1 * jax.random.normal(keys[9], (C,), jnp.float32)
    var2 = jnp.abs(jax.random.normal(keys[10], (C,), jnp.float32)) + 0.5

    # PyTorch NCHW -> NHWC for the kernel wrapper
    x_nhwc = jnp.transpose(x_nchw, (0, 2, 3, 1))

    out = trans_basic_block(x_nhwc, w1_oihw, gamma1, beta1, mean1, var1,
                            w2_oihw, gamma2, beta2, mean2, var2)
    out = jax.block_until_ready(out)

    ref = _ref_forward(x_nhwc, w1_oihw, gamma1, beta1, mean1, var1,
                       w2_oihw, gamma2, beta2, mean2, var2)
    assert jnp.allclose(out, ref, atol=1e-4, rtol=1e-4), (
        float(jnp.max(jnp.abs(out - ref))))

    # Result back to PyTorch's NCHW layout if needed:
    _ = jnp.transpose(out, (0, 3, 1, 2))
    print("KERNEL_OK")
</pallas_src>

<mosaic_0001>
module attributes {stable_mosaic.version = 11 : i64} {
  func.func @_trans_basic_block_kernel(%arg0: i32, %arg1: memref<1x16x64xf32, #tpu.memory_space<vmem>>, %arg2: memref<3x15x64xf32, #tpu.memory_space<vmem>>, %arg3: memref<3x15x64xf32, #tpu.memory_space<vmem>>, %arg4: memref<2x64xf32, #tpu.memory_space<vmem>>, %arg5: memref<1x16x64xf32, #tpu.memory_space<vmem>>, %arg6: memref<18x128xf32, #tpu.memory_space<vmem>>) attributes {dimension_semantics = [#tpu.dimension_semantics<parallel>], iteration_bounds = array<i64: 2>, scalar_prefetch = 0 : i64, scratch_operands = 1 : i64, tpu.core_type = #tpu.core_type<tc>, window_params = [{transform_indices = @transform_0, window_bounds = array<i64: 1, 16, 64>}, {pipeline_mode = #tpu.pipeline_mode<synchronous>, transform_indices = @transform_1, window_bounds = array<i64: 3, 15, 64>}, {pipeline_mode = #tpu.pipeline_mode<synchronous>, transform_indices = @transform_2, window_bounds = array<i64: 3, 15, 64>}, {pipeline_mode = #tpu.pipeline_mode<synchronous>, transform_indices = @transform_3, window_bounds = array<i64: 2, 64>}, {transform_indices = @transform_4, window_bounds = array<i64: 1, 16, 64>}]} {
    %c0 = arith.constant 0 : index
    %c0_0 = arith.constant 0 : index
    %c0_1 = arith.constant 0 : index
    %0 = vector.load %arg1[%c0, %c0_0, %c0_1] : memref<1x16x64xf32, #tpu.memory_space<vmem>>, vector<1x16x64xf32>
    %1 = vector.shape_cast %0 : vector<1x16x64xf32> to vector<16x64xf32>
    %cst = arith.constant 0.000000e+00 : f32
    %2 = vector.broadcast %cst : f32 to vector<1x128xf32>
    %c0_2 = arith.constant 0 : index
    %c0_3 = arith.constant 0 : index
    %3 = vector.load %arg6[%c0_2, %c0_3] : memref<18x128xf32, #tpu.memory_space<vmem>>, vector<1x128xf32>
    tpu.vector_store %arg6[%c0_2, %c0_3], %2 {strides = array<i32>} : memref<18x128xf32, #tpu.memory_space<vmem>>, vector<1x128xf32>,
    %c17 = arith.constant 17 : index
    %c0_4 = arith.constant 0 : index
    %4 = vector.load %arg6[%c17, %c0_4] : memref<18x128xf32, #tpu.memory_space<vmem>>, vector<1x128xf32>
    tpu.vector_store %arg6[%c17, %c0_4], %2 {strides = array<i32>} : memref<18x128xf32, #tpu.memory_space<vmem>>, vector<1x128xf32>,
    %cst_5 = arith.constant 0.000000e+00 : f32
    %5 = vector.broadcast %cst_5 : f32 to vector<16x8xf32>
    %c1 = arith.constant 1 : index
    %c0_6 = arith.constant 0 : index
    %6 = vector.load %arg6[%c1, %c0_6] : memref<18x128xf32, #tpu.memory_space<vmem>>, vector<16x8xf32>
    tpu.vector_store %arg6[%c1, %c0_6], %5 {strides = array<i32>} : memref<18x128xf32, #tpu.memory_space<vmem>>, vector<16x8xf32>,
    %cst_7 = arith.constant 0.000000e+00 : f32
    %7 = vector.broadcast %cst_7 : f32 to vector<16x7xf32>
    %c1_8 = arith.constant 1 : index
    %c72 = arith.constant 72 : index
    %8 = vector.load %arg6[%c1_8, %c72] : memref<18x128xf32, #tpu.memory_space<vmem>>, vector<16x7xf32>
    tpu.vector_store %arg6[%c1_8, %c72], %7 {strides = array<i32>} : memref<18x128xf32, #tpu.memory_space<vmem>>, vector<16x7xf32>,
    %c1_9 = arith.constant 1 : index
    %c8 = arith.constant 8 : index
    %9 = vector.load %arg6[%c1_9, %c8] : memref<18x128xf32, #tpu.memory_space<vmem>>, vector<16x64xf32>
    tpu.vector_store %arg6[%c1_9, %c8], %1 {strides = array<i32>} : memref<18x128xf32, #tpu.memory_space<vmem>>, vector<16x64xf32>,
    %cst_10 = arith.constant 0.000000e+00 : f32
    %10 = vector.broadcast %cst_10 : f32 to vector<16x64xf32>
    %c0_11 = arith.constant 0 : index
    %c1_12 = arith.constant 1 : index
    %11 = vector.load %arg6[%c0_11, %c1_12] : memref<18x128xf32, #tpu.memory_space<vmem>>, vector<16x64xf32>
    %c0_13 = arith.constant 0 : index
    %c0_14 = arith.constant 0 : index
    %c0_15 = arith.constant 0 : index
    %12 = vector.load %arg2[%c0_13, %c0_14, %c0_15] : memref<3x15x64xf32, #tpu.memory_space<vmem>>, vector<1x1x64xf32>
    %13 = vector.shape_cast %12 : vector<1x1x64xf32> to vector<64xf32>
    %14 = vector.shape_cast %13 : vector<64xf32> to vector<1x64xf32>
    %15 = vector.broadcast %14 : vector<1x64xf32> to vector<16x64xf32>
    %16 = arith.mulf %11, %15 : vector<16x64xf32>
    %17 = arith.addf %10, %16 : vector<16x64xf32>
    %c0_16 = arith.constant 0 : index
    %c2 = arith.constant 2 : index
    %18 = vector.load %arg6[%c0_16, %c2] : memref<18x128xf32, #tpu.memory_space<vmem>>, vector<16x64xf32>
    %c0_17 = arith.constant 0 : index
    %c1_18 = arith.constant 1 : index
    %c0_19 = arith.constant 0 : index
    %19 = vector.load %arg2[%c0_17, %c1_18, %c0_19] : memref<3x15x64xf32, #tpu.memory_space<vmem>>, vector<1x1x64xf32>
    %20 = vector.shape_cast %19 : vector<1x1x64xf32> to vector<64xf32>
    %21 = vector.shape_cast %20 : vector<64xf32> to vector<1x64xf32>
    %22 = vector.broadcast %21 : vector<1x64xf32> to vector<16x64xf32>
    %23 = arith.mulf %18, %22 : vector<16x64xf32>
    %24 = arith.addf %17, %23 : vector<16x64xf32>
    %c0_20 = arith.constant 0 : index
    %c3 = arith.constant 3 : index
    %25 = vector.load %arg6[%c0_20, %c3] : memref<18x128xf32, #tpu.memory_space<vmem>>, vector<16x64xf32>
    %c0_21 = arith.constant 0 : index
    %c2_22 = arith.constant 2 : index
    %c0_23 = arith.constant 0 : index
    %26 = vector.load %arg2[%c0_21, %c2_22, %c0_23] : memref<3x15x64xf32, #tpu.memory_space<vmem>>, vector<1x1x64xf32>
    %27 = vector.shape_cast %26 : vector<1x1x64xf32> to vector<64xf32>
    %28 = vector.shape_cast %27 : vector<64xf32> to vector<1x64xf32>
    %29 = vector.broadcast %28 : vector<1x64xf32> to vector<16x64xf32>
    %30 = arith.mulf %25, %29 : vector<16x64xf32>
    %31 = arith.addf %24, %30 : vector<16x64xf32>
    %c0_24 = arith.constant 0 : index
    %c4 = arith.constant 4 : index
    %32 = vector.load %arg6[%c0_24, %c4] : memref<18x128xf32, #tpu.memory_space<vmem>>, vector<16x64xf32>
    %c0_25 = arith.constant 0 : index
    %c3_26 = arith.constant 3 : index
    %c0_27 = arith.constant 0 : index
    %33 = vector.load %arg2[%c0_25, %c3_26, %c0_27] : memref<3x15x64xf32, #tpu.memory_space<vmem>>, vector<1x1x64xf32>
    %34 = vector.shape_cast %33 : vector<1x1x64xf32> to vector<64xf32>
    %35 = vector.shape_cast %34 : vector<64xf32> to vector<1x64xf32>
    %36 = vector.broadcast %35 : vector<1x64xf32> to vector<16x64xf32>
    %37 = arith.mulf %32, %36 : vector<16x64xf32>
    %38 = arith.addf %31, %37 : vector<16x64xf32>
    %c0_28 = arith.constant 0 : index
    %c5 = arith.constant 5 : index
    %39 = vector.load %arg6[%c0_28, %c5] : memref<18x128xf32, #tpu.memory_space<vmem>>, vector<16x64xf32>
    %c0_29 = arith.constant 0 : index
    %c4_30 = arith.constant 4 : index
    %c0_31 = arith.constant 0 : index
    %40 = vector.load %arg2[%c0_29, %c4_30, %c0_31] : memref<3x15x64xf32, #tpu.memory_space<vmem>>, vector<1x1x64xf32>
    %41 = vector.shape_cast %40 : vector<1x1x64xf32> to vector<64xf32>
    %42 = vector.shape_cast %41 : vector<64xf32> to vector<1x64xf32>
    %43 = vector.broadcast %42 : vector<1x64xf32> to vector<16x64xf32>
    %44 = arith.mulf %39, %43 : vector<16x64xf32>
    %45 = arith.addf %38, %44 : vector<16x64xf32>
    %c0_32 = arith.constant 0 : index
    %c6 = arith.constant 6 : index
    %46 = vector.load %arg6[%c0_32, %c6] : memref<18x128xf32, #tpu.memory_space<vmem>>, vector<16x64xf32>
    %c0_33 = arith.constant 0 : index
    %c5_34 = arith.constant 5 : index
    %c0_35 = arith.constant 0 : index
    %47 = vector.load %arg2[%c0_33, %c5_34, %c0_35] : memref<3x15x64xf32, #tpu.memory_space<vmem>>, vector<1x1x64xf32>
    %48 = vector.shape_cast %47 : vector<1x1x64xf32> to vector<64xf32>
    %49 = vector.shape_cast %48 : vector<64xf32> to vector<1x64xf32>
    %50 = vector.broadcast %49 : vector<1x64xf32> to vector<16x64xf32>
    %51 = arith.mulf %46, %50 : vector<16x64xf32>
    %52 = arith.addf %45, %51 : vector<16x64xf32>
    %c0_36 = arith.constant 0 : index
    %c7 = arith.constant 7 : index
    %53 = vector.load %arg6[%c0_36, %c7] : memref<18x128xf32, #tpu.memory_space<vmem>>, vector<16x64xf32>
    %c0_37 = arith.constant 0 : index
    %c6_38 = arith.constant 6 : index
    %c0_39 = arith.constant 0 : index
    %54 = vector.load %arg2[%c0_37, %c6_38, %c0_39] : memref<3x15x64xf32, #tpu.memory_space<vmem>>, vector<1x1x64xf32>
    %55 = vector.shape_cast %54 : vector<1x1x64xf32> to vector<64xf32>
    %56 = vector.shape_cast %55 : vector<64xf32> to vector<1x64xf32>
    %57 = vector.broadcast %56 : vector<1x64xf32> to vector<16x64xf32>
    %58 = arith.mulf %53, %57 : vector<16x64xf32>
    %59 = arith.addf %52, %58 : vector<16x64xf32>
    %c0_40 = arith.constant 0 : index
    %c8_41 = arith.constant 8 : index
    %60 = vector.load %arg6[%c0_40, %c8_41] : memref<18x128xf32, #tpu.memory_space<vmem>>, vector<16x64xf32>
    %c0_42 = arith.constant 0 : index
    %c7_43 = arith.constant 7 : index
    %c0_44 = arith.constant 0 : index
    %61 = vector.load %arg2[%c0_42, %c7_43, %c0_44] : memref<3x15x64xf32, #tpu.memory_space<vmem>>, vector<1x1x64xf32>
    %62 = vector.shape_cast %61 : vector<1x1x64xf32> to vector<64xf32>
    %63 = vector.shape_cast %62 : vector<64xf32> to vector<1x64xf32>
    %64 = vector.broadcast %63 : vector<1x64xf32> to vector<16x64xf32>
    %65 = arith.mulf %60, %64 : vector<16x64xf32>
    %66 = arith.addf %59, %65 : vector<16x64xf32>
    %c0_45 = arith.constant 0 : index
    %c9 = arith.constant 9 : index
    %67 = vector.load %arg6[%c0_45, %c9] : memref<18x128xf32, #tpu.memory_space<vmem>>, vector<16x64xf32>
    %c0_46 = arith.constant 0 : index
    %c8_47 = arith.constant 8 : index
    %c0_48 = arith.constant 0 : index
    %68 = vector.load %arg2[%c0_46, %c8_47, %c0_48] : memref<3x15x64xf32, #tpu.memory_space<vmem>>, vector<1x1x64xf32>
    %69 = vector.shape_cast %68 : vector<1x1x64xf32> to vector<64xf32>
    %70 = vector.shape_cast %69 : vector<64xf32> to vector<1x64xf32>
    %71 = vector.broadcast %70 : vector<1x64xf32> to vector<16x64xf32>
    %72 = arith.mulf %67, %71 : vector<16x64xf32>
    %73 = arith.addf %66, %72 : vector<16x64xf32>
    %c0_49 = arith.constant 0 : index
    %c10 = arith.constant 10 : index
    %74 = vector.load %arg6[%c0_49, %c10] : memref<18x128xf32, #tpu.memory_space<vmem>>, vector<16x64xf32>
    %c0_50 = arith.constant 0 : index
    %c9_51 = arith.constant 9 : index
    %c0_52 = arith.constant 0 : index
    %75 = vector.load %arg2[%c0_50, %c9_51, %c0_52] : memref<3x15x64xf32, #tpu.memory_space<vmem>>, vector<1x1x64xf32>
    %76 = vector.shape_cast %75 : vector<1x1x64xf32> to vector<64xf32>
    %77 = vector.shape_cast %76 : vector<64xf32> to vector<1x64xf32>
    %78 = vector.broadcast %77 : vector<1x64xf32> to vector<16x64xf32>
    %79 = arith.mulf %74, %78 : vector<16x64xf32>
    %80 = arith.addf %73, %79 : vector<16x64xf32>
    %c0_53 = arith.constant 0 : index
    %c11 = arith.constant 11 : index
    %81 = vector.load %arg6[%c0_53, %c11] : memref<18x128xf32, #tpu.memory_space<vmem>>, vector<16x64xf32>
    %c0_54 = arith.constant 0 : index
    %c10_55 = arith.constant 10 : index
    %c0_56 = arith.constant 0 : index
    %82 = vector.load %arg2[%c0_54, %c10_55, %c0_56] : memref<3x15x64xf32, #tpu.memory_space<vmem>>, vector<1x1x64xf32>
    %83 = vector.shape_cast %82 : vector<1x1x64xf32> to vector<64xf32>
    %84 = vector.shape_cast %83 : vector<64xf32> to vector<1x64xf32>
    %85 = vector.broadcast %84 : vector<1x64xf32> to vector<16x64xf32>
    %86 = arith.mulf %81, %85 : vector<16x64xf32>
    %87 = arith.addf %80, %86 : vector<16x64xf32>
    %c0_57 = arith.constant 0 : index
    %c12 = arith.constant 12 : index
    %88 = vector.load %arg6[%c0_57, %c12] : memref<18x128xf32, #tpu.memory_space<vmem>>, vector<16x64xf32>
    %c0_58 = arith.constant 0 : index
    %c11_59 = arith.constant 11 : index
    %c0_60 = arith.constant 0 : index
    %89 = vector.load %arg2[%c0_58, %c11_59, %c0_60] : memref<3x15x64xf32, #tpu.memory_space<vmem>>, vector<1x1x64xf32>
    %90 = vector.shape_cast %89 : vector<1x1x64xf32> to vector<64xf32>
    %91 = vector.shape_cast %90 : vector<64xf32> to vector<1x64xf32>
    %92 = vector.broadcast %91 : vector<1x64xf32> to vector<16x64xf32>
    %93 = arith.mulf %88, %92 : vector<16x64xf32>
    %94 = arith.addf %87, %93 : vector<16x64xf32>
    %c0_61 = arith.constant 0 : index
    %c13 = arith.constant 13 : index
    %95 = vector.load %arg6[%c0_61, %c13] : memref<18x128xf32, #tpu.memory_space<vmem>>, vector<16x64xf32>
    %c0_62 = arith.constant 0 : index
    %c12_63 = arith.constant 12 : index
    %c0_64 = arith.constant 0 : index
    %96 = vector.load %arg2[%c0_62, %c12_63, %c0_64] : memref<3x15x64xf32, #tpu.memory_space<vmem>>, vector<1x1x64xf32>
    %97 = vector.shape_cast %96 : vector<1x1x64xf32> to vector<64xf32>
    %98 = vector.shape_cast %97 : vector<64xf32> to vector<1x64xf32>
    %99 = vector.broadcast %98 : vector<1x64xf32> to vector<16x64xf32>
    %100 = arith.mulf %95, %99 : vector<16x64xf32>
    %101 = arith.addf %94, %100 : vector<16x64xf32>
    %c0_65 = arith.constant 0 : index
    %c14 = arith.constant 14 : index
    %102 = vector.load %arg6[%c0_65, %c14] : memref<18x128xf32, #tpu.memory_space<vmem>>, vector<16x64xf32>
    %c0_66 = arith.constant 0 : index
    %c13_67 = arith.constant 13 : index
    %c0_68 = arith.constant 0 : index
    %103 = vector.load %arg2[%c0_66, %c13_67, %c0_68] : memref<3x15x64xf32, #tpu.memory_space<vmem>>, vector<1x1x64xf32>
    %104 = vector.shape_cast %103 : vector<1x1x64xf32> to vector<64xf32>
    %105 = vector.shape_cast %104 : vector<64xf32> to vector<1x64xf32>
    %106 = vector.broadcast %105 : vector<1x64xf32> to vector<16x64xf32>
    %107 = arith.mulf %102, %106 : vector<16x64xf32>
    %108 = arith.addf %101, %107 : vector<16x64xf32>
    %c0_69 = arith.constant 0 : index
    %c15 = arith.constant 15 : index
    %109 = vector.load %arg6[%c0_69, %c15] : memref<18x128xf32, #tpu.memory_space<vmem>>, vector<16x64xf32>
    %c0_70 = arith.constant 0 : index
    %c14_71 = arith.constant 14 : index
    %c0_72 = arith.constant 0 : index
    %110 = vector.load %arg2[%c0_70, %c14_71, %c0_72] : memref<3x15x64xf32, #tpu.memory_space<vmem>>, vector<1x1x64xf32>
    %111 = vector.shape_cast %110 : vector<1x1x64xf32> to vector<64xf32>
    %112 = vector.shape_cast %111 : vector<64xf32> to vector<1x64xf32>
    %113 = vector.broadcast %112 : vector<1x64xf32> to vector<16x64xf32>
    %114 = arith.mulf %109, %113 : vector<16x64xf32>
    %115 = arith.addf %108, %114 : vector<16x64xf32>
    %c1_73 = arith.constant 1 : index
    %c1_74 = arith.constant 1 : index
    %116 = vector.load %arg6[%c1_73, %c1_74] : memref<18x128xf32, #tpu.memory_space<vmem>>, vector<16x64xf32>
    %c1_75 = arith.constant 1 : index
    %c0_76 = arith.constant 0 : index
    %c0_77 = arith.constant 0 : index
    %117 = vector.load %arg2[%c1_75, %c0_76, %c0_77] : memref<3x15x64xf32, #tpu.memory_space<vmem>>, vector<1x1x64xf32>
    %118 = vector.shape_cast %117 : vector<1x1x64xf32> to vector<64xf32>
    %119 = vector.shape_cast %118 : vector<64xf32> to vector<1x64xf32>
    %120 = vector.broadcast %119 : vector<1x64xf32> to vector<16x64xf32>
    %121 = arith.mulf %116, %120 : vector<16x64xf32>
    %122 = arith.addf %115, %121 : vector<16x64xf32>
    %c1_78 = arith.constant 1 : index
    %c2_79 = arith.constant 2 : index
    %123 = vector.load %arg6[%c1_78, %c2_79] : memref<18x128xf32, #tpu.memory_space<vmem>>, vector<16x64xf32>
    %c1_80 = arith.constant 1 : index
    %c1_81 = arith.constant 1 : index
    %c0_82 = arith.constant 0 : index
    %124 = vector.load %arg2[%c1_80, %c1_81, %c0_82] : memref<3x15x64xf32, #tpu.memory_space<vmem>>, vector<1x1x64xf32>
    %125 = vector.shape_cast %124 : vector<1x1x64xf32> to vector<64xf32>
    %126 = vector.shape_cast %125 : vector<64xf32> to vector<1x64xf32>
    %127 = vector.broadcast %126 : vector<1x64xf32> to vector<16x64xf32>
    %128 = arith.mulf %123, %127 : vector<16x64xf32>
    %129 = arith.addf %122, %128 : vector<16x64xf32>
    %c1_83 = arith.constant 1 : index
    %c3_84 = arith.constant 3 : index
    %130 = vector.load %arg6[%c1_83, %c3_84] : memref<18x128xf32, #tpu.memory_space<vmem>>, vector<16x64xf32>
    %c1_85 = arith.constant 1 : index
    %c2_86 = arith.constant 2 : index
    %c0_87 = arith.constant 0 : index
    %131 = vector.load %arg2[%c1_85, %c2_86, %c0_87] : memref<3x15x64xf32, #tpu.memory_space<vmem>>, vector<1x1x64xf32>
    %132 = vector.shape_cast %131 : vector<1x1x64xf32> to vector<64xf32>
    %133 = vector.shape_cast %132 : vector<64xf32> to vector<1x64xf32>
    %134 = vector.broadcast %133 : vector<1x64xf32> to vector<16x64xf32>
    %135 = arith.mulf %130, %134 : vector<16x64xf32>
    %136 = arith.addf %129, %135 : vector<16x64xf32>
    %c1_88 = arith.constant 1 : index
    %c4_89 = arith.constant 4 : index
    %137 = vector.load %arg6[%c1_88, %c4_89] : memref<18x128xf32, #tpu.memory_space<vmem>>, vector<16x64xf32>
    %c1_90 = arith.constant 1 : index
    %c3_91 = arith.constant 3 : index
    %c0_92 = arith.constant 0 : index
    %138 = vector.load %arg2[%c1_90, %c3_91, %c0_92] : memref<3x15x64xf32, #tpu.memory_space<vmem>>, vector<1x1x64xf32>
    %139 = vector.shape_cast %138 : vector<1x1x64xf32> to vector<64xf32>
    %140 = vector.shape_cast %139 : vector<64xf32> to vector<1x64xf32>
    %141 = vector.broadcast %140 : vector<1x64xf32> to vector<16x64xf32>
    %142 = arith.mulf %137, %141 : vector<16x64xf32>
    %143 = arith.addf %136, %142 : vector<16x64xf32>
    %c1_93 = arith.constant 1 : index
    %c5_94 = arith.constant 5 : index
    %144 = vector.load %arg6[%c1_93, %c5_94] : memref<18x128xf32, #tpu.memory_space<vmem>>, vector<16x64xf32>
    %c1_95 = arith.constant 1 : index
    %c4_96 = arith.constant 4 : index
    %c0_97 = arith.constant 0 : index
    %145 = vector.load %arg2[%c1_95, %c4_96, %c0_97] : memref<3x15x64xf32, #tpu.memory_space<vmem>>, vector<1x1x64xf32>
    %146 = vector.shape_cast %145 : vector<1x1x64xf32> to vector<64xf32>
    %147 = vector.shape_cast %146 : vector<64xf32> to vector<1x64xf32>
    %148 = vector.broadcast %147 : vector<1x64xf32> to vector<16x64xf32>
    %149 = arith.mulf %144, %148 : vector<16x64xf32>
    %150 = arith.addf %143, %149 : vector<16x64xf32>
    %c1_98 = arith.constant 1 : index
    %c6_99 = arith.constant 6 : index
    %151 = vector.load %arg6[%c1_98, %c6_99] : memref<18x128xf32, #tpu.memory_space<vmem>>, vector<16x64xf32>
    %c1_100 = arith.constant 1 : index
    %c5_101 = arith.constant 5 : index
    %c0_102 = arith.constant 0 : index
    %152 = vector.load %arg2[%c1_100, %c5_101, %c0_102] : memref<3x15x64xf32, #tpu.memory_space<vmem>>, vector<1x1x64xf32>
    %153 = vector.shape_cast %152 : vector<1x1x64xf32> to vector<64xf32>
    %154 = vector.shape_cast %153 : vector<64xf32> to vector<1x64xf32>
    %155 = vector.broadcast %154 : vector<1x64xf32> to vector<16x64xf32>
    %156 = arith.mulf %151, %155 : vector<16x64xf32>
    %157 = arith.addf %150, %156 : vector<16x64xf32>
    %c1_103 = arith.constant 1 : index
    %c7_104 = arith.constant 7 : index
    %158 = vector.load %arg6[%c1_103, %c7_104] : memref<18x128xf32, #tpu.memory_space<vmem>>, vector<16x64xf32>
    %c1_105 = arith.constant 1 : index
    %c6_106 = arith.constant 6 : index
    %c0_107 = arith.constant 0 : index
    %159 = vector.load %arg2[%c1_105, %c6_106, %c0_107] : memref<3x15x64xf32, #tpu.memory_space<vmem>>, vector<1x1x64xf32>
    %160 = vector.shape_cast %159 : vector<1x1x64xf32> to vector<64xf32>
    %161 = vector.shape_cast %160 : vector<64xf32> to vector<1x64xf32>
    %162 = vector.broadcast %161 : vector<1x64xf32> to vector<16x64xf32>
    %163 = arith.mulf %158, %162 : vector<16x64xf32>
    %164 = arith.addf %157, %163 : vector<16x64xf32>
    %c1_108 = arith.constant 1 : index
    %c8_109 = arith.constant 8 : index
    %165 = vector.load %arg6[%c1_108, %c8_109] : memref<18x128xf32, #tpu.memory_space<vmem>>, vector<16x64xf32>
    %c1_110 = arith.constant 1 : index
    %c7_111 = arith.constant 7 : index
    %c0_112 = arith.constant 0 : index
    %166 = vector.load %arg2[%c1_110, %c7_111, %c0_112] : memref<3x15x64xf32, #tpu.memory_space<vmem>>, vector<1x1x64xf32>
    %167 = vector.shape_cast %166 : vector<1x1x64xf32> to vector<64xf32>
    %168 = vector.shape_cast %167 : vector<64xf32> to vector<1x64xf32>
    %169 = vector.broadcast %168 : vector<1x64xf32> to vector<16x64xf32>
    %170 = arith.mulf %165, %169 : vector<16x64xf32>
    %171 = arith.addf %164, %170 : vector<16x64xf32>
    %c1_113 = arith.constant 1 : index
    %c9_114 = arith.constant 9 : index
    %172 = vector.load %arg6[%c1_113, %c9_114] : memref<18x128xf32, #tpu.memory_space<vmem>>, vector<16x64xf32>
    %c1_115 = arith.constant 1 : index
    %c8_116 = arith.constant 8 : index
    %c0_117 = arith.constant 0 : index
    %173 = vector.load %arg2[%c1_115, %c8_116, %c0_117] : memref<3x15x64xf32, #tpu.memory_space<vmem>>, vector<1x1x64xf32>
    %174 = vector.shape_cast %173 : vector<1x1x64xf32> to vector<64xf32>
    %175 = vector.shape_cast %174 : vector<64xf32> to vector<1x64xf32>
    %176 = vector.broadcast %175 : vector<1x64xf32> to vector<16x64xf32>
    %177 = arith.mulf %172, %176 : vector<16x64xf32>
    %178 = arith.addf %171, %177 : vector<16x64xf32>
    %c1_118 = arith.constant 1 : index
    %c10_119 = arith.constant 10 : index
    %179 = vector.load %arg6[%c1_118, %c10_119] : memref<18x128xf32, #tpu.memory_space<vmem>>, vector<16x64xf32>
    %c1_120 = arith.constant 1 : index
    %c9_121 = arith.constant 9 : index
    %c0_122 = arith.constant 0 : index
    %180 = vector.load %arg2[%c1_120, %c9_121, %c0_122] : memref<3x15x64xf32, #tpu.memory_space<vmem>>, vector<1x1x64xf32>
    %181 = vector.shape_cast %180 : vector<1x1x64xf32> to vector<64xf32>
    %182 = vector.shape_cast %181 : vector<64xf32> to vector<1x64xf32>
    %183 = vector.broadcast %182 : vector<1x64xf32> to vector<16x64xf32>
    %184 = arith.mulf %179, %183 : vector<16x64xf32>
    %185 = arith.addf %178, %184 : vector<16x64xf32>
    %c1_123 = arith.constant 1 : index
    %c11_124 = arith.constant 11 : index
    %186 = vector.load %arg6[%c1_123, %c11_124] : memref<18x128xf32, #tpu.memory_space<vmem>>, vector<16x64xf32>
    %c1_125 = arith.constant 1 : index
    %c10_126 = arith.constant 10 : index
    %c0_127 = arith.constant 0 : index
    %187 = vector.load %arg2[%c1_125, %c10_126, %c0_127] : memref<3x15x64xf32, #tpu.memory_space<vmem>>, vector<1x1x64xf32>
    %188 = vector.shape_cast %187 : vector<1x1x64xf32> to vector<64xf32>
    %189 = vector.shape_cast %188 : vector<64xf32> to vector<1x64xf32>
    %190 = vector.broadcast %189 : vector<1x64xf32> to vector<16x64xf32>
    %191 = arith.mulf %186, %190 : vector<16x64xf32>
    %192 = arith.addf %185, %191 : vector<16x64xf32>
    %c1_128 = arith.constant 1 : index
    %c12_129 = arith.constant 12 : index
    %193 = vector.load %arg6[%c1_128, %c12_129] : memref<18x128xf32, #tpu.memory_space<vmem>>, vector<16x64xf32>
    %c1_130 = arith.constant 1 : index
    %c11_131 = arith.constant 11 : index
    %c0_132 = arith.constant 0 : index
    %194 = vector.load %arg2[%c1_130, %c11_131, %c0_132] : memref<3x15x64xf32, #tpu.memory_space<vmem>>, vector<1x1x64xf32>
    %195 = vector.shape_cast %194 : vector<1x1x64xf32> to vector<64xf32>
    %196 = vector.shape_cast %195 : vector<64xf32> to vector<1x64xf32>
    %197 = vector.broadcast %196 : vector<1x64xf32> to vector<16x64xf32>
    %198 = arith.mulf %193, %197 : vector<16x64xf32>
    %199 = arith.addf %192, %198 : vector<16x64xf32>
    %c1_133 = arith.constant 1 : index
    %c13_134 = arith.constant 13 : index
    %200 = vector.load %arg6[%c1_133, %c13_134] : memref<18x128xf32, #tpu.memory_space<vmem>>, vector<16x64xf32>
    %c1_135 = arith.constant 1 : index
    %c12_136 = arith.constant 12 : index
    %c0_137 = arith.constant 0 : index
    %201 = vector.load %arg2[%c1_135, %c12_136, %c0_137] : memref<3x15x64xf32, #tpu.memory_space<vmem>>, vector<1x1x64xf32>
    %202 = vector.shape_cast %201 : vector<1x1x64xf32> to vector<64xf32>
    %203 = vector.shape_cast %202 : vector<64xf32> to vector<1x64xf32>
    %204 = vector.broadcast %203 : vector<1x64xf32> to vector<16x64xf32>
    %205 = arith.mulf %200, %204 : vector<16x64xf32>
    %206 = arith.addf %199, %205 : vector<16x64xf32>
    %c1_138 = arith.constant 1 : index
    %c14_139 = arith.constant 14 : index
    %207 = vector.load %arg6[%c1_138, %c14_139] : memref<18x128xf32, #tpu.memory_space<vmem>>, vector<16x64xf32>
    %c1_140 = arith.constant 1 : index
    %c13_141 = arith.constant 13 : index
    %c0_142 = arith.constant 0 : index
    %208 = vector.load %arg2[%c1_140, %c13_141, %c0_142] : memref<3x15x64xf32, #tpu.memory_space<vmem>>, vector<1x1x64xf32>
    %209 = vector.shape_cast %208 : vector<1x1x64xf32> to vector<64xf32>
    %210 = vector.shape_cast %209 : vector<64xf32> to vector<1x64xf32>
    %211 = vector.broadcast %210 : vector<1x64xf32> to vector<16x64xf32>
    %212 = arith.mulf %207, %211 : vector<16x64xf32>
    %213 = arith.addf %206, %212 : vector<16x64xf32>
    %c1_143 = arith.constant 1 : index
    %c15_144 = arith.constant 15 : index
    %214 = vector.load %arg6[%c1_143, %c15_144] : memref<18x128xf32, #tpu.memory_space<vmem>>, vector<16x64xf32>
    %c1_145 = arith.constant 1 : index
    %c14_146 = arith.constant 14 : index
    %c0_147 = arith.constant 0 : index
    %215 = vector.load %arg2[%c1_145, %c14_146, %c0_147] : memref<3x15x64xf32, #tpu.memory_space<vmem>>, vector<1x1x64xf32>
    %216 = vector.shape_cast %215 : vector<1x1x64xf32> to vector<64xf32>
    %217 = vector.shape_cast %216 : vector<64xf32> to vector<1x64xf32>
    %218 = vector.broadcast %217 : vector<1x64xf32> to vector<16x64xf32>
    %219 = arith.mulf %214, %218 : vector<16x64xf32>
    %220 = arith.addf %213, %219 : vector<16x64xf32>
    %c2_148 = arith.constant 2 : index
    %c1_149 = arith.constant 1 : index
    %221 = vector.load %arg6[%c2_148, %c1_149] : memref<18x128xf32, #tpu.memory_space<vmem>>, vector<16x64xf32>
    %c2_150 = arith.constant 2 : index
    %c0_151 = arith.constant 0 : index
    %c0_152 = arith.constant 0 : index
    %222 = vector.load %arg2[%c2_150, %c0_151, %c0_152] : memref<3x15x64xf32, #tpu.memory_space<vmem>>, vector<1x1x64xf32>
    %223 = vector.shape_cast %222 : vector<1x1x64xf32> to vector<64xf32>
    %224 = vector.shape_cast %223 : vector<64xf32> to vector<1x64xf32>
    %225 = vector.broadcast %224 : vector<1x64xf32> to vector<16x64xf32>
    %226 = arith.mulf %221, %225 : vector<16x64xf32>
    %227 = arith.addf %220, %226 : vector<16x64xf32>
    %c2_153 = arith.constant 2 : index
    %c2_154 = arith.constant 2 : index
    %228 = vector.load %arg6[%c2_153, %c2_154] : memref<18x128xf32, #tpu.memory_space<vmem>>, vector<16x64xf32>
    %c2_155 = arith.constant 2 : index
    %c1_156 = arith.constant 1 : index
    %c0_157 = arith.constant 0 : index
    %229 = vector.load %arg2[%c2_155, %c1_156, %c0_157] : memref<3x15x64xf32, #tpu.memory_space<vmem>>, vector<1x1x64xf32>
    %230 = vector.shape_cast %229 : vector<1x1x64xf32> to vector<64xf32>
    %231 = vector.shape_cast %230 : vector<64xf32> to vector<1x64xf32>
    %232 = vector.broadcast %231 : vector<1x64xf32> to vector<16x64xf32>
    %233 = arith.mulf %228, %232 : vector<16x64xf32>
    %234 = arith.addf %227, %233 : vector<16x64xf32>
    %c2_158 = arith.constant 2 : index
    %c3_159 = arith.constant 3 : index
    %235 = vector.load %arg6[%c2_158, %c3_159] : memref<18x128xf32, #tpu.memory_space<vmem>>, vector<16x64xf32>
    %c2_160 = arith.constant 2 : index
    %c2_161 = arith.constant 2 : index
    %c0_162 = arith.constant 0 : index
    %236 = vector.load %arg2[%c2_160, %c2_161, %c0_162] : memref<3x15x64xf32, #tpu.memory_space<vmem>>, vector<1x1x64xf32>
    %237 = vector.shape_cast %236 : vector<1x1x64xf32> to vector<64xf32>
    %238 = vector.shape_cast %237 : vector<64xf32> to vector<1x64xf32>
    %239 = vector.broadcast %238 : vector<1x64xf32> to vector<16x64xf32>
    %240 = arith.mulf %235, %239 : vector<16x64xf32>
    %241 = arith.addf %234, %240 : vector<16x64xf32>
    %c2_163 = arith.constant 2 : index
    %c4_164 = arith.constant 4 : index
    %242 = vector.load %arg6[%c2_163, %c4_164] : memref<18x128xf32, #tpu.memory_space<vmem>>, vector<16x64xf32>
    %c2_165 = arith.constant 2 : index
    %c3_166 = arith.constant 3 : index
    %c0_167 = arith.constant 0 : index
    %243 = vector.load %arg2[%c2_165, %c3_166, %c0_167] : memref<3x15x64xf32, #tpu.memory_space<vmem>>, vector<1x1x64xf32>
    %244 = vector.shape_cast %243 : vector<1x1x64xf32> to vector<64xf32>
    %245 = vector.shape_cast %244 : vector<64xf32> to vector<1x64xf32>
    %246 = vector.broadcast %245 : vector<1x64xf32> to vector<16x64xf32>
    %247 = arith.mulf %242, %246 : vector<16x64xf32>
    %248 = arith.addf %241, %247 : vector<16x64xf32>
    %c2_168 = arith.constant 2 : index
    %c5_169 = arith.constant 5 : index
    %249 = vector.load %arg6[%c2_168, %c5_169] : memref<18x128xf32, #tpu.memory_space<vmem>>, vector<16x64xf32>
    %c2_170 = arith.constant 2 : index
    %c4_171 = arith.constant 4 : index
    %c0_172 = arith.constant 0 : index
    %250 = vector.load %arg2[%c2_170, %c4_171, %c0_172] : memref<3x15x64xf32, #tpu.memory_space<vmem>>, vector<1x1x64xf32>
    %251 = vector.shape_cast %250 : vector<1x1x64xf32> to vector<64xf32>
    %252 = vector.shape_cast %251 : vector<64xf32> to vector<1x64xf32>
    %253 = vector.broadcast %252 : vector<1x64xf32> to vector<16x64xf32>
    %254 = arith.mulf %249, %253 : vector<16x64xf32>
    %255 = arith.addf %248, %254 : vector<16x64xf32>
    %c2_173 = arith.constant 2 : index
    %c6_174 = arith.constant 6 : index
    %256 = vector.load %arg6[%c2_173, %c6_174] : memref<18x128xf32, #tpu.memory_space<vmem>>, vector<16x64xf32>
    %c2_175 = arith.constant 2 : index
    %c5_176 = arith.constant 5 : index
    %c0_177 = arith.constant 0 : index
    %257 = vector.load %arg2[%c2_175, %c5_176, %c0_177] : memref<3x15x64xf32, #tpu.memory_space<vmem>>, vector<1x1x64xf32>
    %258 = vector.shape_cast %257 : vector<1x1x64xf32> to vector<64xf32>
    %259 = vector.shape_cast %258 : vector<64xf32> to vector<1x64xf32>
    %260 = vector.broadcast %259 : vector<1x64xf32> to vector<16x64xf32>
    %261 = arith.mulf %256, %260 : vector<16x64xf32>
    %262 = arith.addf %255, %261 : vector<16x64xf32>
    %c2_178 = arith.constant 2 : index
    %c7_179 = arith.constant 7 : index
    %263 = vector.load %arg6[%c2_178, %c7_179] : memref<18x128xf32, #tpu.memory_space<vmem>>, vector<16x64xf32>
    %c2_180 = arith.constant 2 : index
    %c6_181 = arith.constant 6 : index
    %c0_182 = arith.constant 0 : index
    %264 = vector.load %arg2[%c2_180, %c6_181, %c0_182] : memref<3x15x64xf32, #tpu.memory_space<vmem>>, vector<1x1x64xf32>
    %265 = vector.shape_cast %264 : vector<1x1x64xf32> to vector<64xf32>
    %266 = vector.shape_cast %265 : vector<64xf32> to vector<1x64xf32>
    %267 = vector.broadcast %266 : vector<1x64xf32> to vector<16x64xf32>
    %268 = arith.mulf %263, %267 : vector<16x64xf32>
    %269 = arith.addf %262, %268 : vector<16x64xf32>
    %c2_183 = arith.constant 2 : index
    %c8_184 = arith.constant 8 : index
    %270 = vector.load %arg6[%c2_183, %c8_184] : memref<18x128xf32, #tpu.memory_space<vmem>>, vector<16x64xf32>
    %c2_185 = arith.constant 2 : index
    %c7_186 = arith.constant 7 : index
    %c0_187 = arith.constant 0 : index
    %271 = vector.load %arg2[%c2_185, %c7_186, %c0_187] : memref<3x15x64xf32, #tpu.memory_space<vmem>>, vector<1x1x64xf32>
    %272 = vector.shape_cast %271 : vector<1x1x64xf32> to vector<64xf32>
    %273 = vector.shape_cast %272 : vector<64xf32> to vector<1x64xf32>
    %274 = vector.broadcast %273 : vector<1x64xf32> to vector<16x64xf32>
    %275 = arith.mulf %270, %274 : vector<16x64xf32>
    %276 = arith.addf %269, %275 : vector<16x64xf32>
    %c2_188 = arith.constant 2 : index
    %c9_189 = arith.constant 9 : index
    %277 = vector.load %arg6[%c2_188, %c9_189] : memref<18x128xf32, #tpu.memory_space<vmem>>, vector<16x64xf32>
    %c2_190 = arith.constant 2 : index
    %c8_191 = arith.constant 8 : index
    %c0_192 = arith.constant 0 : index
    %278 = vector.load %arg2[%c2_190, %c8_191, %c0_192] : memref<3x15x64xf32, #tpu.memory_space<vmem>>, vector<1x1x64xf32>
    %279 = vector.shape_cast %278 : vector<1x1x64xf32> to vector<64xf32>
    %280 = vector.shape_cast %279 : vector<64xf32> to vector<1x64xf32>
    %281 = vector.broadcast %280 : vector<1x64xf32> to vector<16x64xf32>
    %282 = arith.mulf %277, %281 : vector<16x64xf32>
    %283 = arith.addf %276, %282 : vector<16x64xf32>
    %c2_193 = arith.constant 2 : index
    %c10_194 = arith.constant 10 : index
    %284 = vector.load %arg6[%c2_193, %c10_194] : memref<18x128xf32, #tpu.memory_space<vmem>>, vector<16x64xf32>
    %c2_195 = arith.constant 2 : index
    %c9_196 = arith.constant 9 : index
    %c0_197 = arith.constant 0 : index
    %285 = vector.load %arg2[%c2_195, %c9_196, %c0_197] : memref<3x15x64xf32, #tpu.memory_space<vmem>>, vector<1x1x64xf32>
    %286 = vector.shape_cast %285 : vector<1x1x64xf32> to vector<64xf32>
    %287 = vector.shape_cast %286 : vector<64xf32> to vector<1x64xf32>
    %288 = vector.broadcast %287 : vector<1x64xf32> to vector<16x64xf32>
    %289 = arith.mulf %284, %288 : vector<16x64xf32>
    %290 = arith.addf %283, %289 : vector<16x64xf32>
    %c2_198 = arith.constant 2 : index
    %c11_199 = arith.constant 11 : index
    %291 = vector.load %arg6[%c2_198, %c11_199] : memref<18x128xf32, #tpu.memory_space<vmem>>, vector<16x64xf32>
    %c2_200 = arith.constant 2 : index
    %c10_201 = arith.constant 10 : index
    %c0_202 = arith.constant 0 : index
    %292 = vector.load %arg2[%c2_200, %c10_201, %c0_202] : memref<3x15x64xf32, #tpu.memory_space<vmem>>, vector<1x1x64xf32>
    %293 = vector.shape_cast %292 : vector<1x1x64xf32> to vector<64xf32>
    %294 = vector.shape_cast %293 : vector<64xf32> to vector<1x64xf32>
    %295 = vector.broadcast %294 : vector<1x64xf32> to vector<16x64xf32>
    %296 = arith.mulf %291, %295 : vector<16x64xf32>
    %297 = arith.addf %290, %296 : vector<16x64xf32>
    %c2_203 = arith.constant 2 : index
    %c12_204 = arith.constant 12 : index
    %298 = vector.load %arg6[%c2_203, %c12_204] : memref<18x128xf32, #tpu.memory_space<vmem>>, vector<16x64xf32>
    %c2_205 = arith.constant 2 : index
    %c11_206 = arith.constant 11 : index
    %c0_207 = arith.constant 0 : index
    %299 = vector.load %arg2[%c2_205, %c11_206, %c0_207] : memref<3x15x64xf32, #tpu.memory_space<vmem>>, vector<1x1x64xf32>
    %300 = vector.shape_cast %299 : vector<1x1x64xf32> to vector<64xf32>
    %301 = vector.shape_cast %300 : vector<64xf32> to vector<1x64xf32>
    %302 = vector.broadcast %301 : vector<1x64xf32> to vector<16x64xf32>
    %303 = arith.mulf %298, %302 : vector<16x64xf32>
    %304 = arith.addf %297, %303 : vector<16x64xf32>
    %c2_208 = arith.constant 2 : index
    %c13_209 = arith.constant 13 : index
    %305 = vector.load %arg6[%c2_208, %c13_209] : memref<18x128xf32, #tpu.memory_space<vmem>>, vector<16x64xf32>
    %c2_210 = arith.constant 2 : index
    %c12_211 = arith.constant 12 : index
    %c0_212 = arith.constant 0 : index
    %306 = vector.load %arg2[%c2_210, %c12_211, %c0_212] : memref<3x15x64xf32, #tpu.memory_space<vmem>>, vector<1x1x64xf32>
    %307 = vector.shape_cast %306 : vector<1x1x64xf32> to vector<64xf32>
    %308 = vector.shape_cast %307 : vector<64xf32> to vector<1x64xf32>
    %309 = vector.broadcast %308 : vector<1x64xf32> to vector<16x64xf32>
    %310 = arith.mulf %305, %309 : vector<16x64xf32>
    %311 = arith.addf %304, %310 : vector<16x64xf32>
    %c2_213 = arith.constant 2 : index
    %c14_214 = arith.constant 14 : index
    %312 = vector.load %arg6[%c2_213, %c14_214] : memref<18x128xf32, #tpu.memory_space<vmem>>, vector<16x64xf32>
    %c2_215 = arith.constant 2 : index
    %c13_216 = arith.constant 13 : index
    %c0_217 = arith.constant 0 : index
    %313 = vector.load %arg2[%c2_215, %c13_216, %c0_217] : memref<3x15x64xf32, #tpu.memory_space<vmem>>, vector<1x1x64xf32>
    %314 = vector.shape_cast %313 : vector<1x1x64xf32> to vector<64xf32>
    %315 = vector.shape_cast %314 : vector<64xf32> to vector<1x64xf32>
    %316 = vector.broadcast %315 : vector<1x64xf32> to vector<16x64xf32>
    %317 = arith.mulf %312, %316 : vector<16x64xf32>
    %318 = arith.addf %311, %317 : vector<16x64xf32>
    %c2_218 = arith.constant 2 : index
    %c15_219 = arith.constant 15 : index
    %319 = vector.load %arg6[%c2_218, %c15_219] : memref<18x128xf32, #tpu.memory_space<vmem>>, vector<16x64xf32>
    %c2_220 = arith.constant 2 : index
    %c14_221 = arith.constant 14 : index
    %c0_222 = arith.constant 0 : index
    %320 = vector.load %arg2[%c2_220, %c14_221, %c0_222] : memref<3x15x64xf32, #tpu.memory_space<vmem>>, vector<1x1x64xf32>
    %321 = vector.shape_cast %320 : vector<1x1x64xf32> to vector<64xf32>
    %322 = vector.shape_cast %321 : vector<64xf32> to vector<1x64xf32>
    %323 = vector.broadcast %322 : vector<1x64xf32> to vector<16x64xf32>
    %324 = arith.mulf %319, %323 : vector<16x64xf32>
    %325 = arith.addf %318, %324 : vector<16x64xf32>
    %c0_223 = arith.constant 0 : index
    %c0_224 = arith.constant 0 : index
    %326 = vector.load %arg4[%c0_223, %c0_224] : memref<2x64xf32, #tpu.memory_space<vmem>>, vector<1x64xf32>
    %327 = vector.broadcast %326 : vector<1x64xf32> to vector<16x64xf32>
    %328 = arith.addf %325, %327 : vector<16x64xf32>
    %cst_225 = arith.constant 0.000000e+00 : f32
    %329 = vector.broadcast %cst_225 : f32 to vector<16x64xf32>
    %330 = arith.maximumf %328, %329 : vector<16x64xf32>
    %c1_226 = arith.constant 1 : index
    %c8_227 = arith.constant 8 : index
    %331 = vector.load %arg6[%c1_226, %c8_227] : memref<18x128xf32, #tpu.memory_space<vmem>>, vector<16x64xf32>
    tpu.vector_store %arg6[%c1_226, %c8_227], %330 {strides = array<i32>} : memref<18x128xf32, #tpu.memory_space<vmem>>, vector<16x64xf32>,
    %cst_228 = arith.constant 0.000000e+00 : f32
    %332 = vector.broadcast %cst_228 : f32 to vector<16x64xf32>
    %c0_229 = arith.constant 0 : index
    %c1_230 = arith.constant 1 : index
    %333 = vector.load %arg6[%c0_229, %c1_230] : memref<18x128xf32, #tpu.memory_space<vmem>>, vector<16x64xf32>
    %c0_231 = arith.constant 0 : index
    %c0_232 = arith.constant 0 : index
    %c0_233 = arith.constant 0 : index
    %334 = vector.load %arg3[%c0_231, %c0_232, %c0_233] : memref<3x15x64xf32, #tpu.memory_space<vmem>>, vector<1x1x64xf32>
    %335 = vector.shape_cast %334 : vector<1x1x64xf32> to vector<64xf32>
    %336 = vector.shape_cast %335 : vector<64xf32> to vector<1x64xf32>
    %337 = vector.broadcast %336 : vector<1x64xf32> to vector<16x64xf32>
    %338 = arith.mulf %333, %337 : vector<16x64xf32>
    %339 = arith.addf %332, %338 : vector<16x64xf32>
    %c0_234 = arith.constant 0 : index
    %c2_235 = arith.constant 2 : index
    %340 = vector.load %arg6[%c0_234, %c2_235] : memref<18x128xf32, #tpu.memory_space<vmem>>, vector<16x64xf32>
    %c0_236 = arith.constant 0 : index
    %c1_237 = arith.constant 1 : index
    %c0_238 = arith.constant 0 : index
    %341 = vector.load %arg3[%c0_236, %c1_237, %c0_238] : memref<3x15x64xf32, #tpu.memory_space<vmem>>, vector<1x1x64xf32>
    %342 = vector.shape_cast %341 : vector<1x1x64xf32> to vector<64xf32>
    %343 = vector.shape_cast %342 : vector<64xf32> to vector<1x64xf32>
    %344 = vector.broadcast %343 : vector<1x64xf32> to vector<16x64xf32>
    %345 = arith.mulf %340, %344 : vector<16x64xf32>
    %346 = arith.addf %339, %345 : vector<16x64xf32>
    %c0_239 = arith.constant 0 : index
    %c3_240 = arith.constant 3 : index
    %347 = vector.load %arg6[%c0_239, %c3_240] : memref<18x128xf32, #tpu.memory_space<vmem>>, vector<16x64xf32>
    %c0_241 = arith.constant 0 : index
    %c2_242 = arith.constant 2 : index
    %c0_243 = arith.constant 0 : index
    %348 = vector.load %arg3[%c0_241, %c2_242, %c0_243] : memref<3x15x64xf32, #tpu.memory_space<vmem>>, vector<1x1x64xf32>
    %349 = vector.shape_cast %348 : vector<1x1x64xf32> to vector<64xf32>
    %350 = vector.shape_cast %349 : vector<64xf32> to vector<1x64xf32>
    %351 = vector.broadcast %350 : vector<1x64xf32> to vector<16x64xf32>
    %352 = arith.mulf %347, %351 : vector<16x64xf32>
    %353 = arith.addf %346, %352 : vector<16x64xf32>
    %c0_244 = arith.constant 0 : index
    %c4_245 = arith.constant 4 : index
    %354 = vector.load %arg6[%c0_244, %c4_245] : memref<18x128xf32, #tpu.memory_space<vmem>>, vector<16x64xf32>
    %c0_246 = arith.constant 0 : index
    %c3_247 = arith.constant 3 : index
    %c0_248 = arith.constant 0 : index
    %355 = vector.load %arg3[%c0_246, %c3_247, %c0_248] : memref<3x15x64xf32, #tpu.memory_space<vmem>>, vector<1x1x64xf32>
    %356 = vector.shape_cast %355 : vector<1x1x64xf32> to vector<64xf32>
    %357 = vector.shape_cast %356 : vector<64xf32> to vector<1x64xf32>
    %358 = vector.broadcast %357 : vector<1x64xf32> to vector<16x64xf32>
    %359 = arith.mulf %354, %358 : vector<16x64xf32>
    %360 = arith.addf %353, %359 : vector<16x64xf32>
    %c0_249 = arith.constant 0 : index
    %c5_250 = arith.constant 5 : index
    %361 = vector.load %arg6[%c0_249, %c5_250] : memref<18x128xf32, #tpu.memory_space<vmem>>, vector<16x64xf32>
    %c0_251 = arith.constant 0 : index
    %c4_252 = arith.constant 4 : index
    %c0_253 = arith.constant 0 : index
    %362 = vector.load %arg3[%c0_251, %c4_252, %c0_253] : memref<3x15x64xf32, #tpu.memory_space<vmem>>, vector<1x1x64xf32>
    %363 = vector.shape_cast %362 : vector<1x1x64xf32> to vector<64xf32>
    %364 = vector.shape_cast %363 : vector<64xf32> to vector<1x64xf32>
    %365 = vector.broadcast %364 : vector<1x64xf32> to vector<16x64xf32>
    %366 = arith.mulf %361, %365 : vector<16x64xf32>
    %367 = arith.addf %360, %366 : vector<16x64xf32>
    %c0_254 = arith.constant 0 : index
    %c6_255 = arith.constant 6 : index
    %368 = vector.load %arg6[%c0_254, %c6_255] : memref<18x128xf32, #tpu.memory_space<vmem>>, vector<16x64xf32>
    %c0_256 = arith.constant 0 : index
    %c5_257 = arith.constant 5 : index
    %c0_258 = arith.constant 0 : index
    %369 = vector.load %arg3[%c0_256, %c5_257, %c0_258] : memref<3x15x64xf32, #tpu.memory_space<vmem>>, vector<1x1x64xf32>
    %370 = vector.shape_cast %369 : vector<1x1x64xf32> to vector<64xf32>
    %371 = vector.shape_cast %370 : vector<64xf32> to vector<1x64xf32>
    %372 = vector.broadcast %371 : vector<1x64xf32> to vector<16x64xf32>
    %373 = arith.mulf %368, %372 : vector<16x64xf32>
    %374 = arith.addf %367, %373 : vector<16x64xf32>
    %c0_259 = arith.constant 0 : index
    %c7_260 = arith.constant 7 : index
    %375 = vector.load %arg6[%c0_259, %c7_260] : memref<18x128xf32, #tpu.memory_space<vmem>>, vector<16x64xf32>
    %c0_261 = arith.constant 0 : index
    %c6_262 = arith.constant 6 : index
    %c0_263 = arith.constant 0 : index
    %376 = vector.load %arg3[%c0_261, %c6_262, %c0_263] : memref<3x15x64xf32, #tpu.memory_space<vmem>>, vector<1x1x64xf32>
    %377 = vector.shape_cast %376 : vector<1x1x64xf32> to vector<64xf32>
    %378 = vector.shape_cast %377 : vector<64xf32> to vector<1x64xf32>
    %379 = vector.broadcast %378 : vector<1x64xf32> to vector<16x64xf32>
    %380 = arith.mulf %375, %379 : vector<16x64xf32>
    %381 = arith.addf %374, %380 : vector<16x64xf32>
    %c0_264 = arith.constant 0 : index
    %c8_265 = arith.constant 8 : index
    %382 = vector.load %arg6[%c0_264, %c8_265] : memref<18x128xf32, #tpu.memory_space<vmem>>, vector<16x64xf32>
    %c0_266 = arith.constant 0 : index
    %c7_267 = arith.constant 7 : index
    %c0_268 = arith.constant 0 : index
    %383 = vector.load %arg3[%c0_266, %c7_267, %c0_268] : memref<3x15x64xf32, #tpu.memory_space<vmem>>, vector<1x1x64xf32>
    %384 = vector.shape_cast %383 : vector<1x1x64xf32> to vector<64xf32>
    %385 = vector.shape_cast %384 : vector<64xf32> to vector<1x64xf32>
    %386 = vector.broadcast %385 : vector<1x64xf32> to vector<16x64xf32>
    %387 = arith.mulf %382, %386 : vector<16x64xf32>
    %388 = arith.addf %381, %387 : vector<16x64xf32>
    %c0_269 = arith.constant 0 : index
    %c9_270 = arith.constant 9 : index
    %389 = vector.load %arg6[%c0_269, %c9_270] : memref<18x128xf32, #tpu.memory_space<vmem>>, vector<16x64xf32>
    %c0_271 = arith.constant 0 : index
    %c8_272 = arith.constant 8 : index
    %c0_273 = arith.constant 0 : index
    %390 = vector.load %arg3[%c0_271, %c8_272, %c0_273] : memref<3x15x64xf32, #tpu.memory_space<vmem>>, vector<1x1x64xf32>
    %391 = vector.shape_cast %390 : vector<1x1x64xf32> to vector<64xf32>
    %392 = vector.shape_cast %391 : vector<64xf32> to vector<1x64xf32>
    %393 = vector.broadcast %392 : vector<1x64xf32> to vector<16x64xf32>
    %394 = arith.mulf %389, %393 : vector<16x64xf32>
    %395 = arith.addf %388, %394 : vector<16x64xf32>
    %c0_274 = arith.constant 0 : index
    %c10_275 = arith.constant 10 : index
    %396 = vector.load %arg6[%c0_274, %c10_275] : memref<18x128xf32, #tpu.memory_space<vmem>>, vector<16x64xf32>
    %c0_276 = arith.constant 0 : index
    %c9_277 = arith.constant 9 : index
    %c0_278 = arith.constant 0 : index
    %397 = vector.load %arg3[%c0_276, %c9_277, %c0_278] : memref<3x15x64xf32, #tpu.memory_space<vmem>>, vector<1x1x64xf32>
    %398 = vector.shape_cast %397 : vector<1x1x64xf32> to vector<64xf32>
    %399 = vector.shape_cast %398 : vector<64xf32> to vector<1x64xf32>
    %400 = vector.broadcast %399 : vector<1x64xf32> to vector<16x64xf32>
    %401 = arith.mulf %396, %400 : vector<16x64xf32>
    %402 = arith.addf %395, %401 : vector<16x64xf32>
    %c0_279 = arith.constant 0 : index
    %c11_280 = arith.constant 11 : index
    %403 = vector.load %arg6[%c0_279, %c11_280] : memref<18x128xf32, #tpu.memory_space<vmem>>, vector<16x64xf32>
    %c0_281 = arith.constant 0 : index
    %c10_282 = arith.constant 10 : index
    %c0_283 = arith.constant 0 : index
    %404 = vector.load %arg3[%c0_281, %c10_282, %c0_283] : memref<3x15x64xf32, #tpu.memory_space<vmem>>, vector<1x1x64xf32>
    %405 = vector.shape_cast %404 : vector<1x1x64xf32> to vector<64xf32>
    %406 = vector.shape_cast %405 : vector<64xf32> to vector<1x64xf32>
    %407 = vector.broadcast %406 : vector<1x64xf32> to vector<16x64xf32>
    %408 = arith.mulf %403, %407 : vector<16x64xf32>
    %409 = arith.addf %402, %408 : vector<16x64xf32>
    %c0_284 = arith.constant 0 : index
    %c12_285 = arith.constant 12 : index
    %410 = vector.load %arg6[%c0_284, %c12_285] : memref<18x128xf32, #tpu.memory_space<vmem>>, vector<16x64xf32>
    %c0_286 = arith.constant 0 : index
    %c11_287 = arith.constant 11 : index
    %c0_288 = arith.constant 0 : index
    %411 = vector.load %arg3[%c0_286, %c11_287, %c0_288] : memref<3x15x64xf32, #tpu.memory_space<vmem>>, vector<1x1x64xf32>
    %412 = vector.shape_cast %411 : vector<1x1x64xf32> to vector<64xf32>
    %413 = vector.shape_cast %412 : vector<64xf32> to vector<1x64xf32>
    %414 = vector.broadcast %413 : vector<1x64xf32> to vector<16x64xf32>
    %415 = arith.mulf %410, %414 : vector<16x64xf32>
    %416 = arith.addf %409, %415 : vector<16x64xf32>
    %c0_289 = arith.constant 0 : index
    %c13_290 = arith.constant 13 : index
    %417 = vector.load %arg6[%c0_289, %c13_290] : memref<18x128xf32, #tpu.memory_space<vmem>>, vector<16x64xf32>
    %c0_291 = arith.constant 0 : index
    %c12_292 = arith.constant 12 : index
    %c0_293 = arith.constant 0 : index
    %418 = vector.load %arg3[%c0_291, %c12_292, %c0_293] : memref<3x15x64xf32, #tpu.memory_space<vmem>>, vector<1x1x64xf32>
    %419 = vector.shape_cast %418 : vector<1x1x64xf32> to vector<64xf32>
    %420 = vector.shape_cast %419 : vector<64xf32> to vector<1x64xf32>
    %421 = vector.broadcast %420 : vector<1x64xf32> to vector<16x64xf32>
    %422 = arith.mulf %417, %421 : vector<16x64xf32>
    %423 = arith.addf %416, %422 : vector<16x64xf32>
    %c0_294 = arith.constant 0 : index
    %c14_295 = arith.constant 14 : index
    %424 = vector.load %arg6[%c0_294, %c14_295] : memref<18x128xf32, #tpu.memory_space<vmem>>, vector<16x64xf32>
    %c0_296 = arith.constant 0 : index
    %c13_297 = arith.constant 13 : index
    %c0_298 = arith.constant 0 : index
    %425 = vector.load %arg3[%c0_296, %c13_297, %c0_298] : memref<3x15x64xf32, #tpu.memory_space<vmem>>, vector<1x1x64xf32>
    %426 = vector.shape_cast %425 : vector<1x1x64xf32> to vector<64xf32>
    %427 = vector.shape_cast %426 : vector<64xf32> to vector<1x64xf32>
    %428 = vector.broadcast %427 : vector<1x64xf32> to vector<16x64xf32>
    %429 = arith.mulf %424, %428 : vector<16x64xf32>
    %430 = arith.addf %423, %429 : vector<16x64xf32>
    %c0_299 = arith.constant 0 : index
    %c15_300 = arith.constant 15 : index
    %431 = vector.load %arg6[%c0_299, %c15_300] : memref<18x128xf32, #tpu.memory_space<vmem>>, vector<16x64xf32>
    %c0_301 = arith.constant 0 : index
    %c14_302 = arith.constant 14 : index
    %c0_303 = arith.constant 0 : index
    %432 = vector.load %arg3[%c0_301, %c14_302, %c0_303] : memref<3x15x64xf32, #tpu.memory_space<vmem>>, vector<1x1x64xf32>
    %433 = vector.shape_cast %432 : vector<1x1x64xf32> to vector<64xf32>
    %434 = vector.shape_cast %433 : vector<64xf32> to vector<1x64xf32>
    %435 = vector.broadcast %434 : vector<1x64xf32> to vector<16x64xf32>
    %436 = arith.mulf %431, %435 : vector<16x64xf32>
    %437 = arith.addf %430, %436 : vector<16x64xf32>
    %c1_304 = arith.constant 1 : index
    %c1_305 = arith.constant 1 : index
    %438 = vector.load %arg6[%c1_304, %c1_305] : memref<18x128xf32, #tpu.memory_space<vmem>>, vector<16x64xf32>
    %c1_306 = arith.constant 1 : index
    %c0_307 = arith.constant 0 : index
    %c0_308 = arith.constant 0 : index
    %439 = vector.load %arg3[%c1_306, %c0_307, %c0_308] : memref<3x15x64xf32, #tpu.memory_space<vmem>>, vector<1x1x64xf32>
    %440 = vector.shape_cast %439 : vector<1x1x64xf32> to vector<64xf32>
    %441 = vector.shape_cast %440 : vector<64xf32> to vector<1x64xf32>
    %442 = vector.broadcast %441 : vector<1x64xf32> to vector<16x64xf32>
    %443 = arith.mulf %438, %442 : vector<16x64xf32>
    %444 = arith.addf %437, %443 : vector<16x64xf32>
    %c1_309 = arith.constant 1 : index
    %c2_310 = arith.constant 2 : index
    %445 = vector.load %arg6[%c1_309, %c2_310] : memref<18x128xf32, #tpu.memory_space<vmem>>, vector<16x64xf32>
    %c1_311 = arith.constant 1 : index
    %c1_312 = arith.constant 1 : index
    %c0_313 = arith.constant 0 : index
    %446 = vector.load %arg3[%c1_311, %c1_312, %c0_313] : memref<3x15x64xf32, #tpu.memory_space<vmem>>, vector<1x1x64xf32>
    %447 = vector.shape_cast %446 : vector<1x1x64xf32> to vector<64xf32>
    %448 = vector.shape_cast %447 : vector<64xf32> to vector<1x64xf32>
    %449 = vector.broadcast %448 : vector<1x64xf32> to vector<16x64xf32>
    %450 = arith.mulf %445, %449 : vector<16x64xf32>
    %451 = arith.addf %444, %450 : vector<16x64xf32>
    %c1_314 = arith.constant 1 : index
    %c3_315 = arith.constant 3 : index
    %452 = vector.load %arg6[%c1_314, %c3_315] : memref<18x128xf32, #tpu.memory_space<vmem>>, vector<16x64xf32>
    %c1_316 = arith.constant 1 : index
    %c2_317 = arith.constant 2 : index
    %c0_318 = arith.constant 0 : index
    %453 = vector.load %arg3[%c1_316, %c2_317, %c0_318] : memref<3x15x64xf32, #tpu.memory_space<vmem>>, vector<1x1x64xf32>
    %454 = vector.shape_cast %453 : vector<1x1x64xf32> to vector<64xf32>
    %455 = vector.shape_cast %454 : vector<64xf32> to vector<1x64xf32>
    %456 = vector.broadcast %455 : vector<1x64xf32> to vector<16x64xf32>
    %457 = arith.mulf %452, %456 : vector<16x64xf32>
    %458 = arith.addf %451, %457 : vector<16x64xf32>
    %c1_319 = arith.constant 1 : index
    %c4_320 = arith.constant 4 : index
    %459 = vector.load %arg6[%c1_319, %c4_320] : memref<18x128xf32, #tpu.memory_space<vmem>>, vector<16x64xf32>
    %c1_321 = arith.constant 1 : index
    %c3_322 = arith.constant 3 : index
    %c0_323 = arith.constant 0 : index
    %460 = vector.load %arg3[%c1_321, %c3_322, %c0_323] : memref<3x15x64xf32, #tpu.memory_space<vmem>>, vector<1x1x64xf32>
    %461 = vector.shape_cast %460 : vector<1x1x64xf32> to vector<64xf32>
    %462 = vector.shape_cast %461 : vector<64xf32> to vector<1x64xf32>
    %463 = vector.broadcast %462 : vector<1x64xf32> to vector<16x64xf32>
    %464 = arith.mulf %459, %463 : vector<16x64xf32>
    %465 = arith.addf %458, %464 : vector<16x64xf32>
    %c1_324 = arith.constant 1 : index
    %c5_325 = arith.constant 5 : index
    %466 = vector.load %arg6[%c1_324, %c5_325] : memref<18x128xf32, #tpu.memory_space<vmem>>, vector<16x64xf32>
    %c1_326 = arith.constant 1 : index
    %c4_327 = arith.constant 4 : index
    %c0_328 = arith.constant 0 : index
    %467 = vector.load %arg3[%c1_326, %c4_327, %c0_328] : memref<3x15x64xf32, #tpu.memory_space<vmem>>, vector<1x1x64xf32>
    %468 = vector.shape_cast %467 : vector<1x1x64xf32> to vector<64xf32>
    %469 = vector.shape_cast %468 : vector<64xf32> to vector<1x64xf32>
    %470 = vector.broadcast %469 : vector<1x64xf32> to vector<16x64xf32>
    %471 = arith.mulf %466, %470 : vector<16x64xf32>
    %472 = arith.addf %465, %471 : vector<16x64xf32>
    %c1_329 = arith.constant 1 : index
    %c6_330 = arith.constant 6 : index
    %473 = vector.load %arg6[%c1_329, %c6_330] : memref<18x128xf32, #tpu.memory_space<vmem>>, vector<16x64xf32>
    %c1_331 = arith.constant 1 : index
    %c5_332 = arith.constant 5 : index
    %c0_333 = arith.constant 0 : index
    %474 = vector.load %arg3[%c1_331, %c5_332, %c0_333] : memref<3x15x64xf32, #tpu.memory_space<vmem>>, vector<1x1x64xf32>
    %475 = vector.shape_cast %474 : vector<1x1x64xf32> to vector<64xf32>
    %476 = vector.shape_cast %475 : vector<64xf32> to vector<1x64xf32>
    %477 = vector.broadcast %476 : vector<1x64xf32> to vector<16x64xf32>
    %478 = arith.mulf %473, %477 : vector<16x64xf32>
    %479 = arith.addf %472, %478 : vector<16x64xf32>
    %c1_334 = arith.constant 1 : index
    %c7_335 = arith.constant 7 : index
    %480 = vector.load %arg6[%c1_334, %c7_335] : memref<18x128xf32, #tpu.memory_space<vmem>>, vector<16x64xf32>
    %c1_336 = arith.constant 1 : index
    %c6_337 = arith.constant 6 : index
    %c0_338 = arith.constant 0 : index
    %481 = vector.load %arg3[%c1_336, %c6_337, %c0_338] : memref<3x15x64xf32, #tpu.memory_space<vmem>>, vector<1x1x64xf32>
    %482 = vector.shape_cast %481 : vector<1x1x64xf32> to vector<64xf32>
    %483 = vector.shape_cast %482 : vector<64xf32> to vector<1x64xf32>
    %484 = vector.broadcast %483 : vector<1x64xf32> to vector<16x64xf32>
    %485 = arith.mulf %480, %484 : vector<16x64xf32>
    %486 = arith.addf %479, %485 : vector<16x64xf32>
    %c1_339 = arith.constant 1 : index
    %c8_340 = arith.constant 8 : index
    %487 = vector.load %arg6[%c1_339, %c8_340] : memref<18x128xf32, #tpu.memory_space<vmem>>, vector<16x64xf32>
    %c1_341 = arith.constant 1 : index
    %c7_342 = arith.constant 7 : index
    %c0_343 = arith.constant 0 : index
    %488 = vector.load %arg3[%c1_341, %c7_342, %c0_343] : memref<3x15x64xf32, #tpu.memory_space<vmem>>, vector<1x1x64xf32>
    %489 = vector.shape_cast %488 : vector<1x1x64xf32> to vector<64xf32>
    %490 = vector.shape_cast %489 : vector<64xf32> to vector<1x64xf32>
    %491 = vector.broadcast %490 : vector<1x64xf32> to vector<16x64xf32>
    %492 = arith.mulf %487, %491 : vector<16x64xf32>
    %493 = arith.addf %486, %492 : vector<16x64xf32>
    %c1_344 = arith.constant 1 : index
    %c9_345 = arith.constant 9 : index
    %494 = vector.load %arg6[%c1_344, %c9_345] : memref<18x128xf32, #tpu.memory_space<vmem>>, vector<16x64xf32>
    %c1_346 = arith.constant 1 : index
    %c8_347 = arith.constant 8 : index
    %c0_348 = arith.constant 0 : index
    %495 = vector.load %arg3[%c1_346, %c8_347, %c0_348] : memref<3x15x64xf32, #tpu.memory_space<vmem>>, vector<1x1x64xf32>
    %496 = vector.shape_cast %495 : vector<1x1x64xf32> to vector<64xf32>
    %497 = vector.shape_cast %496 : vector<64xf32> to vector<1x64xf32>
    %498 = vector.broadcast %497 : vector<1x64xf32> to vector<16x64xf32>
    %499 = arith.mulf %494, %498 : vector<16x64xf32>
    %500 = arith.addf %493, %499 : vector<16x64xf32>
    %c1_349 = arith.constant 1 : index
    %c10_350 = arith.constant 10 : index
    %501 = vector.load %arg6[%c1_349, %c10_350] : memref<18x128xf32, #tpu.memory_space<vmem>>, vector<16x64xf32>
    %c1_351 = arith.constant 1 : index
    %c9_352 = arith.constant 9 : index
    %c0_353 = arith.constant 0 : index
    %502 = vector.load %arg3[%c1_351, %c9_352, %c0_353] : memref<3x15x64xf32, #tpu.memory_space<vmem>>, vector<1x1x64xf32>
    %503 = vector.shape_cast %502 : vector<1x1x64xf32> to vector<64xf32>
    %504 = vector.shape_cast %503 : vector<64xf32> to vector<1x64xf32>
    %505 = vector.broadcast %504 : vector<1x64xf32> to vector<16x64xf32>
    %506 = arith.mulf %501, %505 : vector<16x64xf32>
    %507 = arith.addf %500, %506 : vector<16x64xf32>
    %c1_354 = arith.constant 1 : index
    %c11_355 = arith.constant 11 : index
    %508 = vector.load %arg6[%c1_354, %c11_355] : memref<18x128xf32, #tpu.memory_space<vmem>>, vector<16x64xf32>
    %c1_356 = arith.constant 1 : index
    %c10_357 = arith.constant 10 : index
    %c0_358 = arith.constant 0 : index
    %509 = vector.load %arg3[%c1_356, %c10_357, %c0_358] : memref<3x15x64xf32, #tpu.memory_space<vmem>>, vector<1x1x64xf32>
    %510 = vector.shape_cast %509 : vector<1x1x64xf32> to vector<64xf32>
    %511 = vector.shape_cast %510 : vector<64xf32> to vector<1x64xf32>
    %512 = vector.broadcast %511 : vector<1x64xf32> to vector<16x64xf32>
    %513 = arith.mulf %508, %512 : vector<16x64xf32>
    %514 = arith.addf %507, %513 : vector<16x64xf32>
    %c1_359 = arith.constant 1 : index
    %c12_360 = arith.constant 12 : index
    %515 = vector.load %arg6[%c1_359, %c12_360] : memref<18x128xf32, #tpu.memory_space<vmem>>, vector<16x64xf32>
    %c1_361 = arith.constant 1 : index
    %c11_362 = arith.constant 11 : index
    %c0_363 = arith.constant 0 : index
    %516 = vector.load %arg3[%c1_361, %c11_362, %c0_363] : memref<3x15x64xf32, #tpu.memory_space<vmem>>, vector<1x1x64xf32>
    %517 = vector.shape_cast %516 : vector<1x1x64xf32> to vector<64xf32>
    %518 = vector.shape_cast %517 : vector<64xf32> to vector<1x64xf32>
    %519 = vector.broadcast %518 : vector<1x64xf32> to vector<16x64xf32>
    %520 = arith.mulf %515, %519 : vector<16x64xf32>
    %521 = arith.addf %514, %520 : vector<16x64xf32>
    %c1_364 = arith.constant 1 : index
    %c13_365 = arith.constant 13 : index
    %522 = vector.load %arg6[%c1_364, %c13_365] : memref<18x128xf32, #tpu.memory_space<vmem>>, vector<16x64xf32>
    %c1_366 = arith.constant 1 : index
    %c12_367 = arith.constant 12 : index
    %c0_368 = arith.constant 0 : index
    %523 = vector.load %arg3[%c1_366, %c12_367, %c0_368] : memref<3x15x64xf32, #tpu.memory_space<vmem>>, vector<1x1x64xf32>
    %524 = vector.shape_cast %523 : vector<1x1x64xf32> to vector<64xf32>
    %525 = vector.shape_cast %524 : vector<64xf32> to vector<1x64xf32>
    %526 = vector.broadcast %525 : vector<1x64xf32> to vector<16x64xf32>
    %527 = arith.mulf %522, %526 : vector<16x64xf32>
    %528 = arith.addf %521, %527 : vector<16x64xf32>
    %c1_369 = arith.constant 1 : index
    %c14_370 = arith.constant 14 : index
    %529 = vector.load %arg6[%c1_369, %c14_370] : memref<18x128xf32, #tpu.memory_space<vmem>>, vector<16x64xf32>
    %c1_371 = arith.constant 1 : index
    %c13_372 = arith.constant 13 : index
    %c0_373 = arith.constant 0 : index
    %530 = vector.load %arg3[%c1_371, %c13_372, %c0_373] : memref<3x15x64xf32, #tpu.memory_space<vmem>>, vector<1x1x64xf32>
    %531 = vector.shape_cast %530 : vector<1x1x64xf32> to vector<64xf32>
    %532 = vector.shape_cast %531 : vector<64xf32> to vector<1x64xf32>
    %533 = vector.broadcast %532 : vector<1x64xf32> to vector<16x64xf32>
    %534 = arith.mulf %529, %533 : vector<16x64xf32>
    %535 = arith.addf %528, %534 : vector<16x64xf32>
    %c1_374 = arith.constant 1 : index
    %c15_375 = arith.constant 15 : index
    %536 = vector.load %arg6[%c1_374, %c15_375] : memref<18x128xf32, #tpu.memory_space<vmem>>, vector<16x64xf32>
    %c1_376 = arith.constant 1 : index
    %c14_377 = arith.constant 14 : index
    %c0_378 = arith.constant 0 : index
    %537 = vector.load %arg3[%c1_376, %c14_377, %c0_378] : memref<3x15x64xf32, #tpu.memory_space<vmem>>, vector<1x1x64xf32>
    %538 = vector.shape_cast %537 : vector<1x1x64xf32> to vector<64xf32>
    %539 = vector.shape_cast %538 : vector<64xf32> to vector<1x64xf32>
    %540 = vector.broadcast %539 : vector<1x64xf32> to vector<16x64xf32>
    %541 = arith.mulf %536, %540 : vector<16x64xf32>
    %542 = arith.addf %535, %541 : vector<16x64xf32>
    %c2_379 = arith.constant 2 : index
    %c1_380 = arith.constant 1 : index
    %543 = vector.load %arg6[%c2_379, %c1_380] : memref<18x128xf32, #tpu.memory_space<vmem>>, vector<16x64xf32>
    %c2_381 = arith.constant 2 : index
    %c0_382 = arith.constant 0 : index
    %c0_383 = arith.constant 0 : index
    %544 = vector.load %arg3[%c2_381, %c0_382, %c0_383] : memref<3x15x64xf32, #tpu.memory_space<vmem>>, vector<1x1x64xf32>
    %545 = vector.shape_cast %544 : vector<1x1x64xf32> to vector<64xf32>
    %546 = vector.shape_cast %545 : vector<64xf32> to vector<1x64xf32>
    %547 = vector.broadcast %546 : vector<1x64xf32> to vector<16x64xf32>
    %548 = arith.mulf %543, %547 : vector<16x64xf32>
    %549 = arith.addf %542, %548 : vector<16x64xf32>
    %c2_384 = arith.constant 2 : index
    %c2_385 = arith.constant 2 : index
    %550 = vector.load %arg6[%c2_384, %c2_385] : memref<18x128xf32, #tpu.memory_space<vmem>>, vector<16x64xf32>
    %c2_386 = arith.constant 2 : index
    %c1_387 = arith.constant 1 : index
    %c0_388 = arith.constant 0 : index
    %551 = vector.load %arg3[%c2_386, %c1_387, %c0_388] : memref<3x15x64xf32, #tpu.memory_space<vmem>>, vector<1x1x64xf32>
    %552 = vector.shape_cast %551 : vector<1x1x64xf32> to vector<64xf32>
    %553 = vector.shape_cast %552 : vector<64xf32> to vector<1x64xf32>
    %554 = vector.broadcast %553 : vector<1x64xf32> to vector<16x64xf32>
    %555 = arith.mulf %550, %554 : vector<16x64xf32>
    %556 = arith.addf %549, %555 : vector<16x64xf32>
    %c2_389 = arith.constant 2 : index
    %c3_390 = arith.constant 3 : index
    %557 = vector.load %arg6[%c2_389, %c3_390] : memref<18x128xf32, #tpu.memory_space<vmem>>, vector<16x64xf32>
    %c2_391 = arith.constant 2 : index
    %c2_392 = arith.constant 2 : index
    %c0_393 = arith.constant 0 : index
    %558 = vector.load %arg3[%c2_391, %c2_392, %c0_393] : memref<3x15x64xf32, #tpu.memory_space<vmem>>, vector<1x1x64xf32>
    %559 = vector.shape_cast %558 : vector<1x1x64xf32> to vector<64xf32>
    %560 = vector.shape_cast %559 : vector<64xf32> to vector<1x64xf32>
    %561 = vector.broadcast %560 : vector<1x64xf32> to vector<16x64xf32>
    %562 = arith.mulf %557, %561 : vector<16x64xf32>
    %563 = arith.addf %556, %562 : vector<16x64xf32>
    %c2_394 = arith.constant 2 : index
    %c4_395 = arith.constant 4 : index
    %564 = vector.load %arg6[%c2_394, %c4_395] : memref<18x128xf32, #tpu.memory_space<vmem>>, vector<16x64xf32>
    %c2_396 = arith.constant 2 : index
    %c3_397 = arith.constant 3 : index
    %c0_398 = arith.constant 0 : index
    %565 = vector.load %arg3[%c2_396, %c3_397, %c0_398] : memref<3x15x64xf32, #tpu.memory_space<vmem>>, vector<1x1x64xf32>
    %566 = vector.shape_cast %565 : vector<1x1x64xf32> to vector<64xf32>
    %567 = vector.shape_cast %566 : vector<64xf32> to vector<1x64xf32>
    %568 = vector.broadcast %567 : vector<1x64xf32> to vector<16x64xf32>
    %569 = arith.mulf %564, %568 : vector<16x64xf32>
    %570 = arith.addf %563, %569 : vector<16x64xf32>
    %c2_399 = arith.constant 2 : index
    %c5_400 = arith.constant 5 : index
    %571 = vector.load %arg6[%c2_399, %c5_400] : memref<18x128xf32, #tpu.memory_space<vmem>>, vector<16x64xf32>
    %c2_401 = arith.constant 2 : index
    %c4_402 = arith.constant 4 : index
    %c0_403 = arith.constant 0 : index
    %572 = vector.load %arg3[%c2_401, %c4_402, %c0_403] : memref<3x15x64xf32, #tpu.memory_space<vmem>>, vector<1x1x64xf32>
    %573 = vector.shape_cast %572 : vector<1x1x64xf32> to vector<64xf32>
    %574 = vector.shape_cast %573 : vector<64xf32> to vector<1x64xf32>
    %575 = vector.broadcast %574 : vector<1x64xf32> to vector<16x64xf32>
    %576 = arith.mulf %571, %575 : vector<16x64xf32>
    %577 = arith.addf %570, %576 : vector<16x64xf32>
    %c2_404 = arith.constant 2 : index
    %c6_405 = arith.constant 6 : index
    %578 = vector.load %arg6[%c2_404, %c6_405] : memref<18x128xf32, #tpu.memory_space<vmem>>, vector<16x64xf32>
    %c2_406 = arith.constant 2 : index
    %c5_407 = arith.constant 5 : index
    %c0_408 = arith.constant 0 : index
    %579 = vector.load %arg3[%c2_406, %c5_407, %c0_408] : memref<3x15x64xf32, #tpu.memory_space<vmem>>, vector<1x1x64xf32>
    %580 = vector.shape_cast %579 : vector<1x1x64xf32> to vector<64xf32>
    %581 = vector.shape_cast %580 : vector<64xf32> to vector<1x64xf32>
    %582 = vector.broadcast %581 : vector<1x64xf32> to vector<16x64xf32>
    %583 = arith.mulf %578, %582 : vector<16x64xf32>
    %584 = arith.addf %577, %583 : vector<16x64xf32>
    %c2_409 = arith.constant 2 : index
    %c7_410 = arith.constant 7 : index
    %585 = vector.load %arg6[%c2_409, %c7_410] : memref<18x128xf32, #tpu.memory_space<vmem>>, vector<16x64xf32>
    %c2_411 = arith.constant 2 : index
    %c6_412 = arith.constant 6 : index
    %c0_413 = arith.constant 0 : index
    %586 = vector.load %arg3[%c2_411, %c6_412, %c0_413] : memref<3x15x64xf32, #tpu.memory_space<vmem>>, vector<1x1x64xf32>
    %587 = vector.shape_cast %586 : vector<1x1x64xf32> to vector<64xf32>
    %588 = vector.shape_cast %587 : vector<64xf32> to vector<1x64xf32>
    %589 = vector.broadcast %588 : vector<1x64xf32> to vector<16x64xf32>
    %590 = arith.mulf %585, %589 : vector<16x64xf32>
    %591 = arith.addf %584, %590 : vector<16x64xf32>
    %c2_414 = arith.constant 2 : index
    %c8_415 = arith.constant 8 : index
    %592 = vector.load %arg6[%c2_414, %c8_415] : memref<18x128xf32, #tpu.memory_space<vmem>>, vector<16x64xf32>
    %c2_416 = arith.constant 2 : index
    %c7_417 = arith.constant 7 : index
    %c0_418 = arith.constant 0 : index
    %593 = vector.load %arg3[%c2_416, %c7_417, %c0_418] : memref<3x15x64xf32, #tpu.memory_space<vmem>>, vector<1x1x64xf32>
    %594 = vector.shape_cast %593 : vector<1x1x64xf32> to vector<64xf32>
    %595 = vector.shape_cast %594 : vector<64xf32> to vector<1x64xf32>
    %596 = vector.broadcast %595 : vector<1x64xf32> to vector<16x64xf32>
    %597 = arith.mulf %592, %596 : vector<16x64xf32>
    %598 = arith.addf %591, %597 : vector<16x64xf32>
    %c2_419 = arith.constant 2 : index
    %c9_420 = arith.constant 9 : index
    %599 = vector.load %arg6[%c2_419, %c9_420] : memref<18x128xf32, #tpu.memory_space<vmem>>, vector<16x64xf32>
    %c2_421 = arith.constant 2 : index
    %c8_422 = arith.constant 8 : index
    %c0_423 = arith.constant 0 : index
    %600 = vector.load %arg3[%c2_421, %c8_422, %c0_423] : memref<3x15x64xf32, #tpu.memory_space<vmem>>, vector<1x1x64xf32>
    %601 = vector.shape_cast %600 : vector<1x1x64xf32> to vector<64xf32>
    %602 = vector.shape_cast %601 : vector<64xf32> to vector<1x64xf32>
    %603 = vector.broadcast %602 : vector<1x64xf32> to vector<16x64xf32>
    %604 = arith.mulf %599, %603 : vector<16x64xf32>
    %605 = arith.addf %598, %604 : vector<16x64xf32>
    %c2_424 = arith.constant 2 : index
    %c10_425 = arith.constant 10 : index
    %606 = vector.load %arg6[%c2_424, %c10_425] : memref<18x128xf32, #tpu.memory_space<vmem>>, vector<16x64xf32>
    %c2_426 = arith.constant 2 : index
    %c9_427 = arith.constant 9 : index
    %c0_428 = arith.constant 0 : index
    %607 = vector.load %arg3[%c2_426, %c9_427, %c0_428] : memref<3x15x64xf32, #tpu.memory_space<vmem>>, vector<1x1x64xf32>
    %608 = vector.shape_cast %607 : vector<1x1x64xf32> to vector<64xf32>
    %609 = vector.shape_cast %608 : vector<64xf32> to vector<1x64xf32>
    %610 = vector.broadcast %609 : vector<1x64xf32> to vector<16x64xf32>
    %611 = arith.mulf %606, %610 : vector<16x64xf32>
    %612 = arith.addf %605, %611 : vector<16x64xf32>
    %c2_429 = arith.constant 2 : index
    %c11_430 = arith.constant 11 : index
    %613 = vector.load %arg6[%c2_429, %c11_430] : memref<18x128xf32, #tpu.memory_space<vmem>>, vector<16x64xf32>
    %c2_431 = arith.constant 2 : index
    %c10_432 = arith.constant 10 : index
    %c0_433 = arith.constant 0 : index
    %614 = vector.load %arg3[%c2_431, %c10_432, %c0_433] : memref<3x15x64xf32, #tpu.memory_space<vmem>>, vector<1x1x64xf32>
    %615 = vector.shape_cast %614 : vector<1x1x64xf32> to vector<64xf32>
    %616 = vector.shape_cast %615 : vector<64xf32> to vector<1x64xf32>
    %617 = vector.broadcast %616 : vector<1x64xf32> to vector<16x64xf32>
    %618 = arith.mulf %613, %617 : vector<16x64xf32>
    %619 = arith.addf %612, %618 : vector<16x64xf32>
    %c2_434 = arith.constant 2 : index
    %c12_435 = arith.constant 12 : index
    %620 = vector.load %arg6[%c2_434, %c12_435] : memref<18x128xf32, #tpu.memory_space<vmem>>, vector<16x64xf32>
    %c2_436 = arith.constant 2 : index
    %c11_437 = arith.constant 11 : index
    %c0_438 = arith.constant 0 : index
    %621 = vector.load %arg3[%c2_436, %c11_437, %c0_438] : memref<3x15x64xf32, #tpu.memory_space<vmem>>, vector<1x1x64xf32>
    %622 = vector.shape_cast %621 : vector<1x1x64xf32> to vector<64xf32>
    %623 = vector.shape_cast %622 : vector<64xf32> to vector<1x64xf32>
    %624 = vector.broadcast %623 : vector<1x64xf32> to vector<16x64xf32>
    %625 = arith.mulf %620, %624 : vector<16x64xf32>
    %626 = arith.addf %619, %625 : vector<16x64xf32>
    %c2_439 = arith.constant 2 : index
    %c13_440 = arith.constant 13 : index
    %627 = vector.load %arg6[%c2_439, %c13_440] : memref<18x128xf32, #tpu.memory_space<vmem>>, vector<16x64xf32>
    %c2_441 = arith.constant 2 : index
    %c12_442 = arith.constant 12 : index
    %c0_443 = arith.constant 0 : index
    %628 = vector.load %arg3[%c2_441, %c12_442, %c0_443] : memref<3x15x64xf32, #tpu.memory_space<vmem>>, vector<1x1x64xf32>
    %629 = vector.shape_cast %628 : vector<1x1x64xf32> to vector<64xf32>
    %630 = vector.shape_cast %629 : vector<64xf32> to vector<1x64xf32>
    %631 = vector.broadcast %630 : vector<1x64xf32> to vector<16x64xf32>
    %632 = arith.mulf %627, %631 : vector<16x64xf32>
    %633 = arith.addf %626, %632 : vector<16x64xf32>
    %c2_444 = arith.constant 2 : index
    %c14_445 = arith.constant 14 : index
    %634 = vector.load %arg6[%c2_444, %c14_445] : memref<18x128xf32, #tpu.memory_space<vmem>>, vector<16x64xf32>
    %c2_446 = arith.constant 2 : index
    %c13_447 = arith.constant 13 : index
    %c0_448 = arith.constant 0 : index
    %635 = vector.load %arg3[%c2_446, %c13_447, %c0_448] : memref<3x15x64xf32, #tpu.memory_space<vmem>>, vector<1x1x64xf32>
    %636 = vector.shape_cast %635 : vector<1x1x64xf32> to vector<64xf32>
    %637 = vector.shape_cast %636 : vector<64xf32> to vector<1x64xf32>
    %638 = vector.broadcast %637 : vector<1x64xf32> to vector<16x64xf32>
    %639 = arith.mulf %634, %638 : vector<16x64xf32>
    %640 = arith.addf %633, %639 : vector<16x64xf32>
    %c2_449 = arith.constant 2 : index
    %c15_450 = arith.constant 15 : index
    %641 = vector.load %arg6[%c2_449, %c15_450] : memref<18x128xf32, #tpu.memory_space<vmem>>, vector<16x64xf32>
    %c2_451 = arith.constant 2 : index
    %c14_452 = arith.constant 14 : index
    %c0_453 = arith.constant 0 : index
    %642 = vector.load %arg3[%c2_451, %c14_452, %c0_453] : memref<3x15x64xf32, #tpu.memory_space<vmem>>, vector<1x1x64xf32>
    %643 = vector.shape_cast %642 : vector<1x1x64xf32> to vector<64xf32>
    %644 = vector.shape_cast %643 : vector<64xf32> to vector<1x64xf32>
    %645 = vector.broadcast %644 : vector<1x64xf32> to vector<16x64xf32>
    %646 = arith.mulf %641, %645 : vector<16x64xf32>
    %647 = arith.addf %640, %646 : vector<16x64xf32>
    %c1_454 = arith.constant 1 : index
    %c0_455 = arith.constant 0 : index
    %648 = vector.load %arg4[%c1_454, %c0_455] : memref<2x64xf32, #tpu.memory_space<vmem>>, vector<1x64xf32>
    %649 = vector.broadcast %648 : vector<1x64xf32> to vector<16x64xf32>
    %650 = arith.addf %647, %649 : vector<16x64xf32>
    %651 = arith.addf %650, %1 : vector<16x64xf32>
    %cst_456 = arith.constant 0.000000e+00 : f32
    %652 = vector.broadcast %cst_456 : f32 to vector<16x64xf32>
    %653 = arith.maximumf %651, %652 : vector<16x64xf32>
    %c0_457 = arith.constant 0 : index
    %c0_458 = arith.constant 0 : index
    %c0_459 = arith.constant 0 : index
    %654 = vector.load %arg5[%c0_457, %c0_458, %c0_459] : memref<1x16x64xf32, #tpu.memory_space<vmem>>, vector<1x16x64xf32>
    %655 = vector.shape_cast %654 : vector<1x16x64xf32> to vector<16x64xf32>
    %656 = vector.shape_cast %653 : vector<16x64xf32> to vector<1x16x64xf32>
    tpu.vector_store %arg5[%c0_457, %c0_458, %c0_459], %656 {strides = array<i32>} : memref<1x16x64xf32, #tpu.memory_space<vmem>>, vector<1x16x64xf32>,
    return
  }
  func.func @transform_0(%arg0: i32) -> (i32, i32, i32) {
    %c0_i32 = arith.constant 0 : i32
    %c0_i32_0 = arith.constant 0 : i32
    %c0_i32_1 = arith.constant 0 : i32
    return %arg0, %c0_i32, %c0_i32_0 : i32, i32, i32
  }
  func.func @transform_1(%arg0: i32) -> (i32, i32, i32) {
    %c0_i32 = arith.constant 0 : i32
    %c0_i32_0 = arith.constant 0 : i32
    %c0_i32_1 = arith.constant 0 : i32
    %c0_i32_2 = arith.constant 0 : i32
    return %c0_i32, %c0_i32_0, %c0_i32_1 : i32, i32, i32
  }
  func.func @transform_2(%arg0: i32) -> (i32, i32, i32) {
    %c0_i32 = arith.constant 0 : i32
    %c0_i32_0 = arith.constant 0 : i32
    %c0_i32_1 = arith.constant 0 : i32
    %c0_i32_2 = arith.constant 0 : i32
    return %c0_i32, %c0_i32_0, %c0_i32_1 : i32, i32, i32
  }
  func.func @transform_3(%arg0: i32) -> (i32, i32) {
    %c0_i32 = arith.constant 0 : i32
    %c0_i32_0 = arith.constant 0 : i32
    %c0_i32_1 = arith.constant 0 : i32
    return %c0_i32, %c0_i32_0 : i32, i32
  }
  func.func @transform_4(%arg0: i32) -> (i32, i32, i32) {
    %c0_i32 = arith.constant 0 : i32
    %c0_i32_0 = arith.constant 0 : i32
    %c0_i32_1 = arith.constant 0 : i32
    return %arg0, %c0_i32, %c0_i32_0 : i32, i32, i32
  }
}

</mosaic_0001>

<llo_original>
// kernel: tpu_custom_call.1
$region0: #{tpu_custom_call.1}
  #allocation0 [shape = 'u32[]', space=smem, size = 0x4, offset = 0x4, fixed_abs, tag = 'smem constant byte address 0x4 - core index']
  #allocation1 [shape = 'u32[144,128]{1,0:T(1,128)}', space=vmem, size = 0x12000, scoped, tag = 'internal scratch']
  #allocation2 [shape = 'f32[18,128]{1,0:T(8,128)}', space=vmem, size = 0x3000, scoped, tag = 'scratch operand']
  %s0 = inlined_call_operand.hbm [shape: f32[2,16,64], index: 0, kind: input, shape index: {}]
  %s1 = inlined_call_operand.hbm [shape: f32[3,15,64], index: 1, kind: input, shape index: {}]
  %s2 = inlined_call_operand.hbm [shape: f32[3,15,64], index: 2, kind: input, shape index: {}]
  %s3 = inlined_call_operand.vmem [shape: f32[2,64], index: 3, kind: input, shape index: {}]
  %s4 = inlined_call_operand.hbm [shape: f32[2,16,64], index: 4, kind: output, shape index: {}]
  %s5 = sld [smem:[#allocation0]]
  $region61: #{tpu_custom_call.1} parent=0
    _
  %s7 = ssub.s32 1, %s5
  %s8 = scalar_select 0, %s7, %s5
  $region1: #{tpu_custom_call.1} parent=0
    #allocation3 [shape = 'u8[16384]{0}', space=vmem, size = 0x4000, scoped, tag = 'input window, operand 0']
    #allocation4 [shape = 's32[2]{0}', space=sflag, size = 0x8, scoped, tag = 'scoped memory for tpu_custom_call.1']
    #allocation5 [shape = 's32[2]{0}', space=sflag, size = 0x8, scoped, tag = 'scoped memory for tpu_custom_call.1']
    #allocation6 [shape = 'u8[24576]{0}', space=vmem, size = 0x6000, scoped, tag = 'input window, operand 1, single buffered']
    #allocation7 [shape = 's32[1]{0}', space=sflag, size = 0x4, scoped, tag = 'scoped memory for tpu_custom_call.1']
    #allocation8 [shape = 'u8[24576]{0}', space=vmem, size = 0x6000, scoped, tag = 'input window, operand 2, single buffered']
    #allocation9 [shape = 'u8[16384]{0}', space=vmem, size = 0x4000, scoped, tag = 'output window, operand 0']
    %9 = vsyncpa [#allocation4], 0
    %s10 = scalar_lea.sflag [#allocation4], 1
    %11 = vsyncpa %s10, 0
    %12 = vsyncpa [#allocation7], 0
    %13 = vsyncpa [#allocation5], 0
    %s14 = scalar_lea.sflag [#allocation5], 1
    %15 = vsyncpa %s14, 0
    loop: start=0, step=1, limit=4
    $region2: #{tpu_custom_call.1} parent=1 // loop_pre_header
      _
    $region3: #{tpu_custom_call.1} parent=1 // loop_header
      %s17 = sphi 0, %s21
      %p18 = scmp.ge.s32.totalorder %s17, 4
      %s27 = sphi 0, %s29
      %s30 = sphi 0, %s27
      %s31 = sphi 0, %s30
      %s47 = sphi 0, %s31
      %s51 = sphi 0, %s51
      %s53 = sphi 0, %s51
      %s54 = sphi 0, %s53
      %s68 = sphi 0, %s54
      %s72 = sphi 0, %s72
      %s74 = sphi 0, %s72
      %s75 = sphi 0, %s74
      %s89 = sphi 0, %s75
      %s93 = sphi 0, %s93
      %s95 = sphi 0, %s93
      %s96 = sphi 0, %s95
      %s110 = sphi 0, %s96
      %s116 = sphi 0, %s118
      %s119 = sphi 0, %s116
      %s120 = sphi 0, %s119
      %s136 = sphi 0, %s120
    $region4: #{tpu_custom_call.1} parent=1 // loop_header_branch
      %20 = sbr.rel (%p18) target = $region8
    $region5: #{tpu_custom_call.1} parent=1 // loop_body
      %s22 = ssub.s32 %s17, 1
      %s23 = ssub.s32 %s17, 2
      %s24 = sadd.s32 %s17, 1
      %s25 = ssub.s32 %s17, %s24
      %p26 = scmp.eq.s32.totalorder %s25, 0
      %s28 = sadd.s32 %s27, 1
      %s29 = scalar_select %p26, %s27, %s28
      %p32 = pneg %p26
      %p33 = scmp.eq.s32.totalorder %s17, 1
      %p34 = por %p32, %p33
      %p35 = scmp.ne.s32.totalorder %s27, %s30
      %p36 = scmp.eq.s32.totalorder %s17, 0
      %p37 = por %p35, %p36
      %p38 = scmp.ne.s32.totalorder %s27, %s30
      %p39 = scmp.eq.s32.totalorder %s22, 1
      %p40 = por %p38, %p39
      %p41 = scmp.ne.s32.totalorder %s30, %s31
      %p42 = scmp.eq.s32.totalorder %s22, 0
      %p43 = por %p41, %p42
      %p44 = scmp.ne.s32.totalorder %s30, %s31
      %p45 = scmp.eq.s32.totalorder %s23, 1
      %p46 = por %p44, %p45
      %p48 = scmp.ne.s32.totalorder %s31, %s47
      %p49 = scmp.eq.s32.totalorder %s23, 0
      %p50 = por %p48, %p49
      %s52 = sadd.s32 %s51, 1
      %p55 = scmp.eq.s32.totalorder %s17, 1
      %p56 = scmp.ne.s32.totalorder %s51, %s53
      %p57 = scmp.eq.s32.totalorder %s17, 0
      %p58 = por %p56, %p57
      %p59 = scmp.ne.s32.totalorder %s51, %s53
      %p60 = scmp.eq.s32.totalorder %s22, 1
      %p61 = por %p59, %p60
      %p62 = scmp.ne.s32.totalorder %s53, %s54
      %p63 = scmp.eq.s32.totalorder %s22, 0
      %p64 = por %p62, %p63
      %p65 = scmp.ne.s32.totalorder %s53, %s54
      %p66 = scmp.eq.s32.totalorder %s23, 1
      %p67 = por %p65, %p66
      %p69 = scmp.ne.s32.totalorder %s54, %s68
      %p70 = scmp.eq.s32.totalorder %s23, 0
      %p71 = por %p69, %p70
      %s73 = sadd.s32 %s72, 1
      %p76 = scmp.eq.s32.totalorder %s17, 1
      %p77 = scmp.ne.s32.totalorder %s72, %s74
      %p78 = scmp.eq.s32.totalorder %s17, 0
      %p79 = por %p77, %p78
      %p80 = scmp.ne.s32.totalorder %s72, %s74
      %p81 = scmp.eq.s32.totalorder %s22, 1
      %p82 = por %p80, %p81
      %p83 = scmp.ne.s32.totalorder %s74, %s75
      %p84 = scmp.eq.s32.totalorder %s22, 0
      %p85 = por %p83, %p84
      %p86 = scmp.ne.s32.totalorder %s74, %s75
      %p87 = scmp.eq.s32.totalorder %s23, 1
      %p88 = por %p86, %p87
      %p90 = scmp.ne.s32.totalorder %s75, %s89
      %p91 = scmp.eq.s32.totalorder %s23, 0
      %p92 = por %p90, %p91
      %s94 = sadd.s32 %s93, 1
      %p97 = scmp.eq.s32.totalorder %s17, 1
      %p98 = scmp.ne.s32.totalorder %s93, %s95
      %p99 = scmp.eq.s32.totalorder %s17, 0
      %p100 = por %p98, %p99
      %p101 = scmp.ne.s32.totalorder %s93, %s95
      %p102 = scmp.eq.s32.totalorder %s22, 1
      %p103 = por %p101, %p102
      %p104 = scmp.ne.s32.totalorder %s95, %s96
      %p105 = scmp.eq.s32.totalorder %s22, 0
      %p106 = por %p104, %p105
      %p107 = scmp.ne.s32.totalorder %s95, %s96
      %p108 = scmp.eq.s32.totalorder %s23, 1
      %p109 = por %p107, %p108
      %p111 = scmp.ne.s32.totalorder %s96, %s110
      %p112 = scmp.eq.s32.totalorder %s23, 0
      %p113 = por %p111, %p112
      %s114 = ssub.s32 %s17, %s24
      %p115 = scmp.eq.s32.totalorder %s114, 0
      %s117 = sadd.s32 %s116, 1
      %s118 = scalar_select %p115, %s116, %s117
      %p121 = pneg %p115
      %p122 = scmp.eq.s32.totalorder %s17, 1
      %p123 = por %p121, %p122
      %p124 = scmp.ne.s32.totalorder %s116, %s119
      %p125 = scmp.eq.s32.totalorder %s17, 0
      %p126 = por %p124, %p125
      %p127 = scmp.ne.s32.totalorder %s116, %s119
      %p128 = scmp.eq.s32.totalorder %s22, 1
      %p129 = por %p127, %p128
      %p130 = scmp.ne.s32.totalorder %s119, %s120
      %p131 = scmp.eq.s32.totalorder %s22, 0
      %p132 = por %p130, %p131
      %p133 = scmp.ne.s32.totalorder %s119, %s120
      %p134 = scmp.eq.s32.totalorder %s23, 1
      %p135 = por %p133, %p134
      %p137 = scmp.ne.s32.totalorder %s120, %s136
      %p138 = scmp.eq.s32.totalorder %s23, 0
      %p139 = por %p137, %p138
      %p140 = scmp.le.s32.totalorder 1, %s17
      %p141 = scmp.lt.s32.totalorder %s17, 3
      %p142 = pnand %p140, %p141
      %p143 = pneg %p142
      // Predicated region
      $region9: #{tpu_custom_call.1} parent=5 // pred_check
        _
      $region10: #{tpu_custom_call.1} parent=5 // pred_check_branch
        %145 = sbr.rel (%p142) target = $region12
      $region11: #{tpu_custom_call.1} parent=5 // pred_region
        %s146 = ssub.s32 %s17, 1
        // Predicated region
        $region13: #{tpu_custom_call.1} parent=11 // pred_check
          %p147 = pneg %p64
        $region14: #{tpu_custom_call.1} parent=11 // pred_check_branch
          %149 = sbr.rel (%p147) target = $region16
        $region15: #{tpu_custom_call.1} parent=11 // pred_region
          %s151 = ssub.s32 768, 768
          %152 = vsyncadd [#allocation7], %s151
          %s153 = sshll.u32 [#allocation6], 4
          %s154 = int_to_ptr.vmem [resolvable:$true] %s153
          %159 = dma.hbm_to_vmem [thread:$0]  %s1, 768, %s154, [#allocation7], 128, 128, 8
        $region16: #{tpu_custom_call.1} parent=11 // pred_fallthru
          _
        // Predicated region
        $region17: #{tpu_custom_call.1} parent=11 // pred_check
          %p160 = pneg %p85
        $region18: #{tpu_custom_call.1} parent=11 // pred_check_branch
          %162 = sbr.rel (%p160) target = $region20
        $region19: #{tpu_custom_call.1} parent=11 // pred_region
          %s164 = ssub.s32 768, 768
          %165 = vsyncadd [#allocation7], %s164
          %s166 = sshll.u32 [#allocation8], 4
          %s167 = int_to_ptr.vmem [resolvable:$true] %s166
          %172 = dma.hbm_to_vmem [thread:$0]  %s2, 768, %s167, [#allocation7], 128, 128, 8
        $region20: #{tpu_custom_call.1} parent=11 // pred_fallthru
          _
        // Predicated region
        $region21: #{tpu_custom_call.1} parent=11 // pred_check
          %p173 = pneg %p106
        $region22: #{tpu_custom_call.1} parent=11 // pred_check_branch
          %175 = sbr.rel (%p173) target = $region24
        $region23: #{tpu_custom_call.1} parent=11 // pred_region
          _
        $region24: #{tpu_custom_call.1} parent=11 // pred_fallthru
          _
      $region12: #{tpu_custom_call.1} parent=5 // pred_fallthru
        _
      %p176 = scmp.lt.s32.totalorder %s17, 2
      // Predicated region
      $region25: #{tpu_custom_call.1} parent=5 // pred_check
        %p177 = pneg %p176
      $region26: #{tpu_custom_call.1} parent=5 // pred_check_branch
        %179 = sbr.rel (%p177) target = $region28
      $region27: #{tpu_custom_call.1} parent=5 // pred_region
        // Predicated region
        $region29: #{tpu_custom_call.1} parent=27 // pred_check
          %p180 = pneg %p37
        $region30: #{tpu_custom_call.1} parent=27 // pred_check_branch
          %182 = sbr.rel (%p180) target = $region32
        $region31: #{tpu_custom_call.1} parent=27 // pred_region
          %s183 = sand.u32 %s27, 1
          %s184 = scalar_lea.sflag [#allocation4], %s183
          %s185 = sand.u32 %s27, 1
          %s186 = smul.addr %s185, 16
          %s187 = scalar_lea.vmem [#allocation3], %s186
          %s189 = ssub.s32 256, 256
          %190 = vsyncadd %s184, %s189
          %s191 = smul.addr %s17, 2
          %s192 = smul.addr %s191, 128
          %s193 = scalar_lea.hbm %s0, %s192
          %s194 = sshll.u32 %s187, 4
          %s195 = int_to_ptr.vmem [resolvable:$true] %s194
          %200 = dma.hbm_to_vmem [thread:$0]  %s193, 256, %s195, %s184, 128, 128, 8
        $region32: #{tpu_custom_call.1} parent=27 // pred_fallthru
          _
      $region28: #{tpu_custom_call.1} parent=5 // pred_fallthru
        _
      %p201 = scmp.le.s32.totalorder 1, %s17
      %p202 = scmp.lt.s32.totalorder %s17, 3
      %p203 = pnand %p201, %p202
      %p204 = pneg %p203
      // Predicated region
      $region33: #{tpu_custom_call.1} parent=5 // pred_check
        _
      $region34: #{tpu_custom_call.1} parent=5 // pred_check_branch
        %206 = sbr.rel (%p203) target = $region36
      $region35: #{tpu_custom_call.1} parent=5 // pred_region
        %s207 = ssub.s32 %s17, 1
        %s208 = sand.u32 %s30, 1
        %s209 = scalar_lea.sflag [#allocation4], %s208
        %s210 = sand.u32 %s30, 1
        %s211 = smul.addr %s210, 16
        %s212 = scalar_lea.vmem [#allocation3], %s211
        // Predicated region
        $region37: #{tpu_custom_call.1} parent=35 // pred_check
          %p213 = pneg %p43
        $region38: #{tpu_custom_call.1} parent=35 // pred_check_branch
          %215 = sbr.rel (%p213) target = $region40
        $region39: #{tpu_custom_call.1} parent=35 // pred_region
          %216 = dma.done %s209, 256
        $region40: #{tpu_custom_call.1} parent=35 // pred_fallthru
          _
        // Predicated region
        $region41: #{tpu_custom_call.1} parent=35 // pred_check
          %p217 = pneg %p64
        $region42: #{tpu_custom_call.1} parent=35 // pred_check_branch
          %219 = sbr.rel (%p217) target = $region44
        $region43: #{tpu_custom_call.1} parent=35 // pred_region
          %220 = dma.done [#allocation7], 768
        $region44: #{tpu_custom_call.1} parent=35 // pred_fallthru
          _
        // Predicated region
        $region45: #{tpu_custom_call.1} parent=35 // pred_check
          %p221 = pneg %p85
        $region46: #{tpu_custom_call.1} parent=35 // pred_check_branch
          %223 = sbr.rel (%p221) target = $region48
        $region47: #{tpu_custom_call.1} parent=35 // pred_region
          %224 = dma.done [#allocation7], 768
        $region48: #{tpu_custom_call.1} parent=35 // pred_fallthru
          _
        %s225 = sand.u32 %s30, 1
        %s226 = scalar_lea.sflag [#allocation4], %s225
        %s227 = sand.u32 %s30, 1
        %s228 = smul.addr %s227, 16
        %s229 = scalar_lea.vmem [#allocation3], %s228
        %p230 = pneg %p43
        %p231 = pneg %p40
        %p232 = pneg %p64
        %p233 = pneg %p61
        %p234 = pneg %p85
        %p235 = pneg %p82
        %p236 = pneg %p106
        %p237 = pneg %p103
        %p238 = pneg %p132
        %p239 = pneg %p129
        %s240 = sand.u32 %s119, 1
        %s241 = scalar_lea.sflag [#allocation5], %s240
        %s242 = sand.u32 %s119, 1
        %s243 = smul.addr %s242, 16
        %s244 = scalar_lea.vmem [#allocation9], %s243
        %v245 = vld [vmem:[%s212] sm:$0xff]
        %v246 = vld [vmem:[%s212 + $0x8] sm:$0xff]
        %247 = vst [vmem:[#allocation2] sm:$0x1] 0.0
        %248 = vst [vmem:[#allocation2 + $0x11] sm:$0x1] 0.0
        %vm249 = vcmask 64512
        %250 = vst.msk [vmem:[#allocation2 + $0x1] sm:$0xff] %vm249, 0.0
        %251 = vst.msk [vmem:[#allocation2 + $0x9] sm:$0xff] %vm249, 0.0
        %vm252 = vcmask 646720
        %253 = vst.msk [vmem:[#allocation2 + $0x1] sm:$0xff] %vm252, 0.0
        %254 = vst.msk [vmem:[#allocation2 + $0x9] sm:$0xff] %vm252, 0.0
        %257 = vrot.lane.b32.xlu0 %v245, 8
        %v258 = vpop.permute.xlu0 %257
        %259 = vrot.lane.b32.xlu0 %v246, 8
        %v260 = vpop.permute.xlu0 %259
        %vm263 = vcmask 588864
        %264 = vst.msk [vmem:[#allocation2 + $0x1] sm:$0xff] %vm263, %v258
        %265 = vst.msk [vmem:[#allocation2 + $0x9] sm:$0xff] %vm263, %v260
        %v266 = vld [vmem:[#allocation2] sm:$0xff]
        %v267 = vld [vmem:[#allocation2 + $0x8] sm:$0xff]
        %v268 = vld [vmem:[#allocation6] sm:$0x1]
        %v269 = vlaneseq
        %v270 = vshrl.u32 %v269, 7
        %v271 = vsub.s32 0, %v270
        %v272 = vrot.slane %v268, %v271
        %274 = vrot.lane.b32.xlu0 %v272, 1
        %v275 = vpop.permute.xlu0 %274
        %v277 = vmul.f32 %v266, %v275
        %v278 = vmul.f32 %v267, %v275
        %v279 = vadd.f32 %v277, 0.0
        %v280 = vadd.f32 %v278, 0.0
        %v281 = vld [vmem:[#allocation6 + $0x1] sm:$0x1]
        %v282 = vlaneseq
        %v283 = vshrl.u32 %v282, 7
        %v284 = vsub.s32 0, %v283
        %v285 = vrot.slane %v281, %v284
        %287 = vrot.lane.b32.xlu0 %v285, 2
        %v288 = vpop.permute.xlu0 %287
        %v290 = vmul.f32 %v266, %v288
        %v291 = vmul.f32 %v267, %v288
        %294 = vrot.lane.b32.xlu0 %v290, 127
        %v295 = vpop.permute.xlu0 %294
        %296 = vrot.lane.b32.xlu0 %v291, 127
        %v297 = vpop.permute.xlu0 %296
        %v300 = vadd.f32 %v279, %v295
        %v301 = vadd.f32 %v280, %v297
        %v302 = vld [vmem:[#allocation6 + $0x2] sm:$0x1]
        %v303 = vlaneseq
        %v304 = vshrl.u32 %v303, 7
        %v305 = vsub.s32 0, %v304
        %v306 = vrot.slane %v302, %v305
        %308 = vrot.lane.b32.xlu0 %v306, 3
        %v309 = vpop.permute.xlu0 %308
        %v311 = vmul.f32 %v266, %v309
        %v312 = vmul.f32 %v267, %v309
        %315 = vrot.lane.b32.xlu0 %v311, 126
        %v316 = vpop.permute.xlu0 %315
        %317 = vrot.lane.b32.xlu0 %v312, 126
        %v318 = vpop.permute.xlu0 %317
        %v321 = vadd.f32 %v300, %v316
        %v322 = vadd.f32 %v301, %v318
        %v323 = vld [vmem:[#allocation6 + $0x3] sm:$0x1]
        %v324 = vlaneseq
        %v325 = vshrl.u32 %v324, 7
        %v326 = vsub.s32 0, %v325
        %v327 = vrot.slane %v323, %v326
        %329 = vrot.lane.b32.xlu0 %v327, 4
        %v330 = vpop.permute.xlu0 %329
        %v332 = vmul.f32 %v266, %v330
        %v333 = vmul.f32 %v267, %v330
        %336 = vrot.lane.b32.xlu0 %v332, 125
        %v337 = vpop.permute.xlu0 %336
        %338 = vrot.lane.b32.xlu0 %v333, 125
        %v339 = vpop.permute.xlu0 %338
        %v342 = vadd.f32 %v321, %v337
        %v343 = vadd.f32 %v322, %v339
        %v344 = vld [vmem:[#allocation6 + $0x4] sm:$0x1]
        %v345 = vlaneseq
        %v346 = vshrl.u32 %v345, 7
        %v347 = vsub.s32 0, %v346
        %v348 = vrot.slane %v344, %v347
        %350 = vrot.lane.b32.xlu0 %v348, 5
        %v351 = vpop.permute.xlu0 %350
        %v353 = vmul.f32 %v266, %v351
        %v354 = vmul.f32 %v267, %v351
        %357 = vrot.lane.b32.xlu0 %v353, 124
        %v358 = vpop.permute.xlu0 %357
        %359 = vrot.lane.b32.xlu0 %v354, 124
        %v360 = vpop.permute.xlu0 %359
        %v363 = vadd.f32 %v342, %v358
        %v364 = vadd.f32 %v343, %v360
        %v365 = vld [vmem:[#allocation6 + $0x5] sm:$0x1]
        %v366 = vlaneseq
        %v367 = vshrl.u32 %v366, 7
        %v368 = vsub.s32 0, %v367
        %v369 = vrot.slane %v365, %v368
        %371 = vrot.lane.b32.xlu0 %v369, 6
        %v372 = vpop.permute.xlu0 %371
        %v374 = vmul.f32 %v266, %v372
        %v375 = vmul.f32 %v267, %v372
        %378 = vrot.lane.b32.xlu0 %v374, 123
        %v379 = vpop.permute.xlu0 %378
        %380 = vrot.lane.b32.xlu0 %v375, 123
        %v381 = vpop.permute.xlu0 %380
        %v384 = vadd.f32 %v363, %v379
        %v385 = vadd.f32 %v364, %v381
        %v386 = vld [vmem:[#allocation6 + $0x6] sm:$0x1]
        %v387 = vlaneseq
        %v388 = vshrl.u32 %v387, 7
        %v389 = vsub.s32 0, %v388
        %v390 = vrot.slane %v386, %v389
        %392 = vrot.lane.b32.xlu0 %v390, 7
        %v393 = vpop.permute.xlu0 %392
        %v395 = vmul.f32 %v266, %v393
        %v396 = vmul.f32 %v267, %v393
        %399 = vrot.lane.b32.xlu0 %v395, 122
        %v400 = vpop.permute.xlu0 %399
        %401 = vrot.lane.b32.xlu0 %v396, 122
        %v402 = vpop.permute.xlu0 %401
        %v405 = vadd.f32 %v384, %v400
        %v406 = vadd.f32 %v385, %v402
        %v407 = vld [vmem:[#allocation6 + $0x7] sm:$0x1]
        %v408 = vlaneseq
        %v409 = vshrl.u32 %v408, 7
        %v410 = vsub.s32 0, %v409
        %v411 = vrot.slane %v407, %v410
        %413 = vrot.lane.b32.xlu0 %v411, 8
        %v414 = vpop.permute.xlu0 %413
        %v416 = vmul.f32 %v266, %v414
        %v417 = vmul.f32 %v267, %v414
        %420 = vrot.lane.b32.xlu0 %v416, 121
        %v421 = vpop.permute.xlu0 %420
        %422 = vrot.lane.b32.xlu0 %v417, 121
        %v423 = vpop.permute.xlu0 %422
        %v426 = vadd.f32 %v405, %v421
        %v427 = vadd.f32 %v406, %v423
        %v428 = vld [vmem:[#allocation6 + $0x8] sm:$0x1]
        %v429 = vlaneseq
        %v430 = vshrl.u32 %v429, 7
        %v431 = vsub.s32 0, %v430
        %v432 = vrot.slane %v428, %v431
        %434 = vrot.lane.b32.xlu0 %v432, 9
        %v435 = vpop.permute.xlu0 %434
        %v437 = vmul.f32 %v266, %v435
        %v438 = vmul.f32 %v267, %v435
        %441 = vrot.lane.b32.xlu0 %v437, 120
        %v442 = vpop.permute.xlu0 %441
        %443 = vrot.lane.b32.xlu0 %v438, 120
        %v444 = vpop.permute.xlu0 %443
        %v447 = vadd.f32 %v426, %v442
        %v448 = vadd.f32 %v427, %v444
        %v449 = vld [vmem:[#allocation6 + $0x9] sm:$0x1]
        %v450 = vlaneseq
        %v451 = vshrl.u32 %v450, 7
        %v452 = vsub.s32 0, %v451
        %v453 = vrot.slane %v449, %v452
        %455 = vrot.lane.b32.xlu0 %v453, 10
        %v456 = vpop.permute.xlu0 %455
        %v458 = vmul.f32 %v266, %v456
        %v459 = vmul.f32 %v267, %v456
        %462 = vrot.lane.b32.xlu0 %v458, 119
        %v463 = vpop.permute.xlu0 %462
        %464 = vrot.lane.b32.xlu0 %v459, 119
        %v465 = vpop.permute.xlu0 %464
        %v468 = vadd.f32 %v447, %v463
        %v469 = vadd.f32 %v448, %v465
        %v470 = vld [vmem:[#allocation6 + $0xa] sm:$0x1]
        %v471 = vlaneseq
        %v472 = vshrl.u32 %v471, 7
        %v473 = vsub.s32 0, %v472
        %v474 = vrot.slane %v470, %v473
        %476 = vrot.lane.b32.xlu0 %v474, 11
        %v477 = vpop.permute.xlu0 %476
        %v479 = vmul.f32 %v266, %v477
        %v480 = vmul.f32 %v267, %v477
        %483 = vrot.lane.b32.xlu0 %v479, 118
        %v484 = vpop.permute.xlu0 %483
        %485 = vrot.lane.b32.xlu0 %v480, 118
        %v486 = vpop.permute.xlu0 %485
        %v489 = vadd.f32 %v468, %v484
        %v490 = vadd.f32 %v469, %v486
        %v491 = vld [vmem:[#allocation6 + $0xb] sm:$0x1]
        %v492 = vlaneseq
        %v493 = vshrl.u32 %v492, 7
        %v494 = vsub.s32 0, %v493
        %v495 = vrot.slane %v491, %v494
        %497 = vrot.lane.b32.xlu0 %v495, 12
        %v498 = vpop.permute.xlu0 %497
        %v500 = vmul.f32 %v266, %v498
        %v501 = vmul.f32 %v267, %v498
        %504 = vrot.lane.b32.xlu0 %v500, 117
        %v505 = vpop.permute.xlu0 %504
        %506 = vrot.lane.b32.xlu0 %v501, 117
        %v507 = vpop.permute.xlu0 %506
        %v510 = vadd.f32 %v489, %v505
        %v511 = vadd.f32 %v490, %v507
        %v512 = vld [vmem:[#allocation6 + $0xc] sm:$0x1]
        %v513 = vlaneseq
        %v514 = vshrl.u32 %v513, 7
        %v515 = vsub.s32 0, %v514
        %v516 = vrot.slane %v512, %v515
        %518 = vrot.lane.b32.xlu0 %v516, 13
        %v519 = vpop.permute.xlu0 %518
        %v521 = vmul.f32 %v266, %v519
        %v522 = vmul.f32 %v267, %v519
        %525 = vrot.lane.b32.xlu0 %v521, 116
        %v526 = vpop.permute.xlu0 %525
        %527 = vrot.lane.b32.xlu0 %v522, 116
        %v528 = vpop.permute.xlu0 %527
        %v531 = vadd.f32 %v510, %v526
        %v532 = vadd.f32 %v511, %v528
        %v533 = vld [vmem:[#allocation6 + $0xd] sm:$0x1]
        %v534 = vlaneseq
        %v535 = vshrl.u32 %v534, 7
        %v536 = vsub.s32 0, %v535
        %v537 = vrot.slane %v533, %v536
        %539 = vrot.lane.b32.xlu0 %v537, 14
        %v540 = vpop.permute.xlu0 %539
        %v542 = vmul.f32 %v266, %v540
        %v543 = vmul.f32 %v267, %v540
        %546 = vrot.lane.b32.xlu0 %v542, 115
        %v547 = vpop.permute.xlu0 %546
        %548 = vrot.lane.b32.xlu0 %v543, 115
        %v549 = vpop.permute.xlu0 %548
        %v552 = vadd.f32 %v531, %v547
        %v553 = vadd.f32 %v532, %v549
        %v554 = vld [vmem:[#allocation6 + $0xe] sm:$0x1]
        %v555 = vlaneseq
        %v556 = vshrl.u32 %v555, 7
        %v557 = vsub.s32 0, %v556
        %v558 = vrot.slane %v554, %v557
        %560 = vrot.lane.b32.xlu0 %v558, 15
        %v561 = vpop.permute.xlu0 %560
        %v563 = vmul.f32 %v266, %v561
        %v564 = vmul.f32 %v267, %v561
        %567 = vrot.lane.b32.xlu0 %v563, 114
        %v568 = vpop.permute.xlu0 %567
        %569 = vrot.lane.b32.xlu0 %v564, 114
        %v570 = vpop.permute.xlu0 %569
        %v573 = vadd.f32 %v552, %v568
        %v574 = vadd.f32 %v553, %v570
        %v575 = vld [vmem:[#allocation2 + $0x1] sm:$0xff]
        %v576 = vld [vmem:[#allocation2 + $0x9] sm:$0xff]
        %s577 = scalar_lea.vmem [#allocation6], 16
        %v578 = vld [vmem:[%s577] sm:$0x1]
        %v579 = vlaneseq
        %v580 = vshrl.u32 %v579, 7
        %v581 = vsub.s32 0, %v580
        %v582 = vrot.slane %v578, %v581
        %584 = vrot.lane.b32.xlu0 %v582, 1
        %v585 = vpop.permute.xlu0 %584
        %v587 = vmul.f32 %v575, %v585
        %v588 = vmul.f32 %v576, %v585
        %v589 = vadd.f32 %v573, %v587
        %v590 = vadd.f32 %v574, %v588
        %v591 = vld [vmem:[%s577 + $0x1] sm:$0x1]
        %v592 = vlaneseq
        %v593 = vshrl.u32 %v592, 7
        %v594 = vsub.s32 0, %v593
        %v595 = vrot.slane %v591, %v594
        %597 = vrot.lane.b32.xlu0 %v595, 2
        %v598 = vpop.permute.xlu0 %597
        %v600 = vmul.f32 %v575, %v598
        %v601 = vmul.f32 %v576, %v598
        %604 = vrot.lane.b32.xlu0 %v600, 127
        %v605 = vpop.permute.xlu0 %604
        %606 = vrot.lane.b32.xlu0 %v601, 127
        %v607 = vpop.permute.xlu0 %606
        %v610 = vadd.f32 %v589, %v605
        %v611 = vadd.f32 %v590, %v607
        %v612 = vld [vmem:[%s577 + $0x2] sm:$0x1]
        %v613 = vlaneseq
        %v614 = vshrl.u32 %v613, 7
        %v615 = vsub.s32 0, %v614
        %v616 = vrot.slane %v612, %v615
        %618 = vrot.lane.b32.xlu0 %v616, 3
        %v619 = vpop.permute.xlu0 %618
        %v621 = vmul.f32 %v575, %v619
        %v622 = vmul.f32 %v576, %v619
        %625 = vrot.lane.b32.xlu0 %v621, 126
        %v626 = vpop.permute.xlu0 %625
        %627 = vrot.lane.b32.xlu0 %v622, 126
        %v628 = vpop.permute.xlu0 %627
        %v631 = vadd.f32 %v610, %v626
        %v632 = vadd.f32 %v611, %v628
        %v633 = vld [vmem:[%s577 + $0x3] sm:$0x1]
        %v634 = vlaneseq
        %v635 = vshrl.u32 %v634, 7
        %v636 = vsub.s32 0, %v635
        %v637 = vrot.slane %v633, %v636
        %639 = vrot.lane.b32.xlu0 %v637, 4
        %v640 = vpop.permute.xlu0 %639
        %v642 = vmul.f32 %v575, %v640
        %v643 = vmul.f32 %v576, %v640
        %646 = vrot.lane.b32.xlu0 %v642, 125
        %v647 = vpop.permute.xlu0 %646
        %648 = vrot.lane.b32.xlu0 %v643, 125
        %v649 = vpop.permute.xlu0 %648
        %v652 = vadd.f32 %v631, %v647
        %v653 = vadd.f32 %v632, %v649
        %v654 = vld [vmem:[%s577 + $0x4] sm:$0x1]
        %v655 = vlaneseq
        %v656 = vshrl.u32 %v655, 7
        %v657 = vsub.s32 0, %v656
        %v658 = vrot.slane %v654, %v657
        %660 = vrot.lane.b32.xlu0 %v658, 5
        %v661 = vpop.permute.xlu0 %660
        %v663 = vmul.f32 %v575, %v661
        %v664 = vmul.f32 %v576, %v661
        %667 = vrot.lane.b32.xlu0 %v663, 124
        %v668 = vpop.permute.xlu0 %667
        %669 = vrot.lane.b32.xlu0 %v664, 124
        %v670 = vpop.permute.xlu0 %669
        %v673 = vadd.f32 %v652, %v668
        %v674 = vadd.f32 %v653, %v670
        %v675 = vld [vmem:[%s577 + $0x5] sm:$0x1]
        %v676 = vlaneseq
        %v677 = vshrl.u32 %v676, 7
        %v678 = vsub.s32 0, %v677
        %v679 = vrot.slane %v675, %v678
        %681 = vrot.lane.b32.xlu0 %v679, 6
        %v682 = vpop.permute.xlu0 %681
        %v684 = vmul.f32 %v575, %v682
        %v685 = vmul.f32 %v576, %v682
        %688 = vrot.lane.b32.xlu0 %v684, 123
        %v689 = vpop.permute.xlu0 %688
        %690 = vrot.lane.b32.xlu0 %v685, 123
        %v691 = vpop.permute.xlu0 %690
        %v694 = vadd.f32 %v673, %v689
        %v695 = vadd.f32 %v674, %v691
        %v696 = vld [vmem:[%s577 + $0x6] sm:$0x1]
        %v697 = vlaneseq
        %v698 = vshrl.u32 %v697, 7
        %v699 = vsub.s32 0, %v698
        %v700 = vrot.slane %v696, %v699
        %702 = vrot.lane.b32.xlu0 %v700, 7
        %v703 = vpop.permute.xlu0 %702
        %v705 = vmul.f32 %v575, %v703
        %v706 = vmul.f32 %v576, %v703
        %709 = vrot.lane.b32.xlu0 %v705, 122
        %v710 = vpop.permute.xlu0 %709
        %711 = vrot.lane.b32.xlu0 %v706, 122
        %v712 = vpop.permute.xlu0 %711
        %v715 = vadd.f32 %v694, %v710
        %v716 = vadd.f32 %v695, %v712
        %v717 = vld [vmem:[%s577 + $0x7] sm:$0x1]
        %v718 = vlaneseq
        %v719 = vshrl.u32 %v718, 7
        %v720 = vsub.s32 0, %v719
        %v721 = vrot.slane %v717, %v720
        %723 = vrot.lane.b32.xlu0 %v721, 8
        %v724 = vpop.permute.xlu0 %723
        %v726 = vmul.f32 %v575, %v724
        %v727 = vmul.f32 %v576, %v724
        %730 = vrot.lane.b32.xlu0 %v726, 121
        %v731 = vpop.permute.xlu0 %730
        %732 = vrot.lane.b32.xlu0 %v727, 121
        %v733 = vpop.permute.xlu0 %732
        %v736 = vadd.f32 %v715, %v731
        %v737 = vadd.f32 %v716, %v733
        %v738 = vld [vmem:[%s577 + $0x8] sm:$0x1]
        %v739 = vlaneseq
        %v740 = vshrl.u32 %v739, 7
        %v741 = vsub.s32 0, %v740
        %v742 = vrot.slane %v738, %v741
        %744 = vrot.lane.b32.xlu0 %v742, 9
        %v745 = vpop.permute.xlu0 %744
        %v747 = vmul.f32 %v575, %v745
        %v748 = vmul.f32 %v576, %v745
        %751 = vrot.lane.b32.xlu0 %v747, 120
        %v752 = vpop.permute.xlu0 %751
        %753 = vrot.lane.b32.xlu0 %v748, 120
        %v754 = vpop.permute.xlu0 %753
        %v757 = vadd.f32 %v736, %v752
        %v758 = vadd.f32 %v737, %v754
        %v759 = vld [vmem:[%s577 + $0x9] sm:$0x1]
        %v760 = vlaneseq
        %v761 = vshrl.u32 %v760, 7
        %v762 = vsub.s32 0, %v761
        %v763 = vrot.slane %v759, %v762
        %765 = vrot.lane.b32.xlu0 %v763, 10
        %v766 = vpop.permute.xlu0 %765
        %v768 = vmul.f32 %v575, %v766
        %v769 = vmul.f32 %v576, %v766
        %772 = vrot.lane.b32.xlu0 %v768, 119
        %v773 = vpop.permute.xlu0 %772
        %774 = vrot.lane.b32.xlu0 %v769, 119
        %v775 = vpop.permute.xlu0 %774
        %v778 = vadd.f32 %v757, %v773
        %v779 = vadd.f32 %v758, %v775
        %v780 = vld [vmem:[%s577 + $0xa] sm:$0x1]
        %v781 = vlaneseq
        %v782 = vshrl.u32 %v781, 7
        %v783 = vsub.s32 0, %v782
        %v784 = vrot.slane %v780, %v783
        %786 = vrot.lane.b32.xlu0 %v784, 11
        %v787 = vpop.permute.xlu0 %786
        %v789 = vmul.f32 %v575, %v787
        %v790 = vmul.f32 %v576, %v787
        %793 = vrot.lane.b32.xlu0 %v789, 118
        %v794 = vpop.permute.xlu0 %793
        %795 = vrot.lane.b32.xlu0 %v790, 118
        %v796 = vpop.permute.xlu0 %795
        %v799 = vadd.f32 %v778, %v794
        %v800 = vadd.f32 %v779, %v796
        %v801 = vld [vmem:[%s577 + $0xb] sm:$0x1]
        %v802 = vlaneseq
        %v803 = vshrl.u32 %v802, 7
        %v804 = vsub.s32 0, %v803
        %v805 = vrot.slane %v801, %v804
        %807 = vrot.lane.b32.xlu0 %v805, 12
        %v808 = vpop.permute.xlu0 %807
        %v810 = vmul.f32 %v575, %v808
        %v811 = vmul.f32 %v576, %v808
        %814 = vrot.lane.b32.xlu0 %v810, 117
        %v815 = vpop.permute.xlu0 %814
        %816 = vrot.lane.b32.xlu0 %v811, 117
        %v817 = vpop.permute.xlu0 %816
        %v820 = vadd.f32 %v799, %v815
        %v821 = vadd.f32 %v800, %v817
        %v822 = vld [vmem:[%s577 + $0xc] sm:$0x1]
        %v823 = vlaneseq
        %v824 = vshrl.u32 %v823, 7
        %v825 = vsub.s32 0, %v824
        %v826 = vrot.slane %v822, %v825
        %828 = vrot.lane.b32.xlu0 %v826, 13
        %v829 = vpop.permute.xlu0 %828
        %v831 = vmul.f32 %v575, %v829
        %v832 = vmul.f32 %v576, %v829
        %835 = vrot.lane.b32.xlu0 %v831, 116
        %v836 = vpop.permute.xlu0 %835
        %837 = vrot.lane.b32.xlu0 %v832, 116
        %v838 = vpop.permute.xlu0 %837
        %v841 = vadd.f32 %v820, %v836
        %v842 = vadd.f32 %v821, %v838
        %v843 = vld [vmem:[%s577 + $0xd] sm:$0x1]
        %v844 = vlaneseq
        %v845 = vshrl.u32 %v844, 7
        %v846 = vsub.s32 0, %v845
        %v847 = vrot.slane %v843, %v846
        %849 = vrot.lane.b32.xlu0 %v847, 14
        %v850 = vpop.permute.xlu0 %849
        %v852 = vmul.f32 %v575, %v850
        %v853 = vmul.f32 %v576, %v850
        %856 = vrot.lane.b32.xlu0 %v852, 115
        %v857 = vpop.permute.xlu0 %856
        %858 = vrot.lane.b32.xlu0 %v853, 115
        %v859 = vpop.permute.xlu0 %858
        %v862 = vadd.f32 %v841, %v857
        %v863 = vadd.f32 %v842, %v859
        %v864 = vld [vmem:[%s577 + $0xe] sm:$0x1]
        %v865 = vlaneseq
        %v866 = vshrl.u32 %v865, 7
        %v867 = vsub.s32 0, %v866
        %v868 = vrot.slane %v864, %v867
        %870 = vrot.lane.b32.xlu0 %v868, 15
        %v871 = vpop.permute.xlu0 %870
        %v873 = vmul.f32 %v575, %v871
        %v874 = vmul.f32 %v576, %v871
        %877 = vrot.lane.b32.xlu0 %v873, 114
        %v878 = vpop.permute.xlu0 %877
        %879 = vrot.lane.b32.xlu0 %v874, 114
        %v880 = vpop.permute.xlu0 %879
        %v883 = vadd.f32 %v862, %v878
        %v884 = vadd.f32 %v863, %v880
        %v885 = vld [vmem:[#allocation2 + $0x2] sm:$0xff]
        %v886 = vld [vmem:[#allocation2 + $0xa] sm:$0xff]
        %s887 = scalar_lea.vmem [#allocation6], 32
        %v888 = vld [vmem:[%s887] sm:$0x1]
        %v889 = vlaneseq
        %v890 = vshrl.u32 %v889, 7
        %v891 = vsub.s32 0, %v890
        %v892 = vrot.slane %v888, %v891
        %894 = vrot.lane.b32.xlu0 %v892, 1
        %v895 = vpop.permute.xlu0 %894
        %v897 = vmul.f32 %v885, %v895
        %v898 = vmul.f32 %v886, %v895
        %v899 = vadd.f32 %v883, %v897
        %v900 = vadd.f32 %v884, %v898
        %v901 = vld [vmem:[%s887 + $0x1] sm:$0x1]
        %v902 = vlaneseq
        %v903 = vshrl.u32 %v902, 7
        %v904 = vsub.s32 0, %v903
        %v905 = vrot.slane %v901, %v904
        %907 = vrot.lane.b32.xlu0 %v905, 2
        %v908 = vpop.permute.xlu0 %907
        %v910 = vmul.f32 %v885, %v908
        %v911 = vmul.f32 %v886, %v908
        %914 = vrot.lane.b32.xlu0 %v910, 127
        %v915 = vpop.permute.xlu0 %914
        %916 = vrot.lane.b32.xlu0 %v911, 127
        %v917 = vpop.permute.xlu0 %916
        %v920 = vadd.f32 %v899, %v915
        %v921 = vadd.f32 %v900, %v917
        %v922 = vld [vmem:[%s887 + $0x2] sm:$0x1]
        %v923 = vlaneseq
        %v924 = vshrl.u32 %v923, 7
        %v925 = vsub.s32 0, %v924
        %v926 = vrot.slane %v922, %v925
        %928 = vrot.lane.b32.xlu0 %v926, 3
        %v929 = vpop.permute.xlu0 %928
        %v931 = vmul.f32 %v885, %v929
        %v932 = vmul.f32 %v886, %v929
        %935 = vrot.lane.b32.xlu0 %v931, 126
        %v936 = vpop.permute.xlu0 %935
        %937 = vrot.lane.b32.xlu0 %v932, 126
        %v938 = vpop.permute.xlu0 %937
        %v941 = vadd.f32 %v920, %v936
        %v942 = vadd.f32 %v921, %v938
        %v943 = vld [vmem:[%s887 + $0x3] sm:$0x1]
        %v944 = vlaneseq
        %v945 = vshrl.u32 %v944, 7
        %v946 = vsub.s32 0, %v945
        %v947 = vrot.slane %v943, %v946
        %949 = vrot.lane.b32.xlu0 %v947, 4
        %v950 = vpop.permute.xlu0 %949
        %v952 = vmul.f32 %v885, %v950
        %v953 = vmul.f32 %v886, %v950
        %956 = vrot.lane.b32.xlu0 %v952, 125
        %v957 = vpop.permute.xlu0 %956
        %958 = vrot.lane.b32.xlu0 %v953, 125
        %v959 = vpop.permute.xlu0 %958
        %v962 = vadd.f32 %v941, %v957
        %v963 = vadd.f32 %v942, %v959
        %v964 = vld [vmem:[%s887 + $0x4] sm:$0x1]
        %v965 = vlaneseq
        %v966 = vshrl.u32 %v965, 7
        %v967 = vsub.s32 0, %v966
        %v968 = vrot.slane %v964, %v967
        %970 = vrot.lane.b32.xlu0 %v968, 5
        %v971 = vpop.permute.xlu0 %970
        %v973 = vmul.f32 %v885, %v971
        %v974 = vmul.f32 %v886, %v971
        %977 = vrot.lane.b32.xlu0 %v973, 124
        %v978 = vpop.permute.xlu0 %977
        %979 = vrot.lane.b32.xlu0 %v974, 124
        %v980 = vpop.permute.xlu0 %979
        %v983 = vadd.f32 %v962, %v978
        %v984 = vadd.f32 %v963, %v980
        %v985 = vld [vmem:[%s887 + $0x5] sm:$0x1]
        %v986 = vlaneseq
        %v987 = vshrl.u32 %v986, 7
        %v988 = vsub.s32 0, %v987
        %v989 = vrot.slane %v985, %v988
        %991 = vrot.lane.b32.xlu0 %v989, 6
        %v992 = vpop.permute.xlu0 %991
        %v994 = vmul.f32 %v885, %v992
        %v995 = vmul.f32 %v886, %v992
        %998 = vrot.lane.b32.xlu0 %v994, 123
        %v999 = vpop.permute.xlu0 %998
        %1000 = vrot.lane.b32.xlu0 %v995, 123
        %v1001 = vpop.permute.xlu0 %1000
        %v1004 = vadd.f32 %v983, %v999
        %v1005 = vadd.f32 %v984, %v1001
        %v1006 = vld [vmem:[%s887 + $0x6] sm:$0x1]
        %v1007 = vlaneseq
        %v1008 = vshrl.u32 %v1007, 7
        %v1009 = vsub.s32 0, %v1008
        %v1010 = vrot.slane %v1006, %v1009
        %1012 = vrot.lane.b32.xlu0 %v1010, 7
        %v1013 = vpop.permute.xlu0 %1012
        %v1015 = vmul.f32 %v885, %v1013
        %v1016 = vmul.f32 %v886, %v1013
        %1019 = vrot.lane.b32.xlu0 %v1015, 122
        %v1020 = vpop.permute.xlu0 %1019
        %1021 = vrot.lane.b32.xlu0 %v1016, 122
        %v1022 = vpop.permute.xlu0 %1021
        %v1025 = vadd.f32 %v1004, %v1020
        %v1026 = vadd.f32 %v1005, %v1022
        %v1027 = vld [vmem:[%s887 + $0x7] sm:$0x1]
        %v1028 = vlaneseq
        %v1029 = vshrl.u32 %v1028, 7
        %v1030 = vsub.s32 0, %v1029
        %v1031 = vrot.slane %v1027, %v1030
        %1033 = vrot.lane.b32.xlu0 %v1031, 8
        %v1034 = vpop.permute.xlu0 %1033
        %v1036 = vmul.f32 %v885, %v1034
        %v1037 = vmul.f32 %v886, %v1034
        %1040 = vrot.lane.b32.xlu0 %v1036, 121
        %v1041 = vpop.permute.xlu0 %1040
        %1042 = vrot.lane.b32.xlu0 %v1037, 121
        %v1043 = vpop.permute.xlu0 %1042
        %v1046 = vadd.f32 %v1025, %v1041
        %v1047 = vadd.f32 %v1026, %v1043
        %v1048 = vld [vmem:[%s887 + $0x8] sm:$0x1]
        %v1049 = vlaneseq
        %v1050 = vshrl.u32 %v1049, 7
        %v1051 = vsub.s32 0, %v1050
        %v1052 = vrot.slane %v1048, %v1051
        %1054 = vrot.lane.b32.xlu0 %v1052, 9
        %v1055 = vpop.permute.xlu0 %1054
        %v1057 = vmul.f32 %v885, %v1055
        %v1058 = vmul.f32 %v886, %v1055
        %1061 = vrot.lane.b32.xlu0 %v1057, 120
        %v1062 = vpop.permute.xlu0 %1061
        %1063 = vrot.lane.b32.xlu0 %v1058, 120
        %v1064 = vpop.permute.xlu0 %1063
        %v1067 = vadd.f32 %v1046, %v1062
        %v1068 = vadd.f32 %v1047, %v1064
        %v1069 = vld [vmem:[%s887 + $0x9] sm:$0x1]
        %v1070 = vlaneseq
        %v1071 = vshrl.u32 %v1070, 7
        %v1072 = vsub.s32 0, %v1071
        %v1073 = vrot.slane %v1069, %v1072
        %1075 = vrot.lane.b32.xlu0 %v1073, 10
        %v1076 = vpop.permute.xlu0 %1075
        %v1078 = vmul.f32 %v885, %v1076
        %v1079 = vmul.f32 %v886, %v1076
        %1082 = vrot.lane.b32.xlu0 %v1078, 119
        %v1083 = vpop.permute.xlu0 %1082
        %1084 = vrot.lane.b32.xlu0 %v1079, 119
        %v1085 = vpop.permute.xlu0 %1084
        %v1088 = vadd.f32 %v1067, %v1083
        %v1089 = vadd.f32 %v1068, %v1085
        %v1090 = vld [vmem:[%s887 + $0xa] sm:$0x1]
        %v1091 = vlaneseq
        %v1092 = vshrl.u32 %v1091, 7
        %v1093 = vsub.s32 0, %v1092
        %v1094 = vrot.slane %v1090, %v1093
        %1096 = vrot.lane.b32.xlu0 %v1094, 11
        %v1097 = vpop.permute.xlu0 %1096
        %v1099 = vmul.f32 %v885, %v1097
        %v1100 = vmul.f32 %v886, %v1097
        %1103 = vrot.lane.b32.xlu0 %v1099, 118
        %v1104 = vpop.permute.xlu0 %1103
        %1105 = vrot.lane.b32.xlu0 %v1100, 118
        %v1106 = vpop.permute.xlu0 %1105
        %v1109 = vadd.f32 %v1088, %v1104
        %v1110 = vadd.f32 %v1089, %v1106
        %v1111 = vld [vmem:[%s887 + $0xb] sm:$0x1]
        %v1112 = vlaneseq
        %v1113 = vshrl.u32 %v1112, 7
        %v1114 = vsub.s32 0, %v1113
        %v1115 = vrot.slane %v1111, %v1114
        %1117 = vrot.lane.b32.xlu0 %v1115, 12
        %v1118 = vpop.permute.xlu0 %1117
        %v1120 = vmul.f32 %v885, %v1118
        %v1121 = vmul.f32 %v886, %v1118
        %1124 = vrot.lane.b32.xlu0 %v1120, 117
        %v1125 = vpop.permute.xlu0 %1124
        %1126 = vrot.lane.b32.xlu0 %v1121, 117
        %v1127 = vpop.permute.xlu0 %1126
        %v1130 = vadd.f32 %v1109, %v1125
        %v1131 = vadd.f32 %v1110, %v1127
        %v1132 = vld [vmem:[%s887 + $0xc] sm:$0x1]
        %v1133 = vlaneseq
        %v1134 = vshrl.u32 %v1133, 7
        %v1135 = vsub.s32 0, %v1134
        %v1136 = vrot.slane %v1132, %v1135
        %1138 = vrot.lane.b32.xlu0 %v1136, 13
        %v1139 = vpop.permute.xlu0 %1138
        %v1141 = vmul.f32 %v885, %v1139
        %v1142 = vmul.f32 %v886, %v1139
        %1145 = vrot.lane.b32.xlu0 %v1141, 116
        %v1146 = vpop.permute.xlu0 %1145
        %1147 = vrot.lane.b32.xlu0 %v1142, 116
        %v1148 = vpop.permute.xlu0 %1147
        %v1151 = vadd.f32 %v1130, %v1146
        %v1152 = vadd.f32 %v1131, %v1148
        %v1153 = vld [vmem:[%s887 + $0xd] sm:$0x1]
        %v1154 = vlaneseq
        %v1155 = vshrl.u32 %v1154, 7
        %v1156 = vsub.s32 0, %v1155
        %v1157 = vrot.slane %v1153, %v1156
        %1159 = vrot.lane.b32.xlu0 %v1157, 14
        %v1160 = vpop.permute.xlu0 %1159
        %v1162 = vmul.f32 %v885, %v1160
        %v1163 = vmul.f32 %v886, %v1160
        %1166 = vrot.lane.b32.xlu0 %v1162, 115
        %v1167 = vpop.permute.xlu0 %1166
        %1168 = vrot.lane.b32.xlu0 %v1163, 115
        %v1169 = vpop.permute.xlu0 %1168
        %v1172 = vadd.f32 %v1151, %v1167
        %v1173 = vadd.f32 %v1152, %v1169
        %v1174 = vld [vmem:[%s887 + $0xe] sm:$0x1]
        %v1175 = vlaneseq
        %v1176 = vshrl.u32 %v1175, 7
        %v1177 = vsub.s32 0, %v1176
        %v1178 = vrot.slane %v1174, %v1177
        %1180 = vrot.lane.b32.xlu0 %v1178, 15
        %v1181 = vpop.permute.xlu0 %1180
        %v1183 = vmul.f32 %v885, %v1181
        %v1184 = vmul.f32 %v886, %v1181
        %1187 = vrot.lane.b32.xlu0 %v1183, 114
        %v1188 = vpop.permute.xlu0 %1187
        %1189 = vrot.lane.b32.xlu0 %v1184, 114
        %v1190 = vpop.permute.xlu0 %1189
        %v1193 = vadd.f32 %v1172, %v1188
        %v1194 = vadd.f32 %v1173, %v1190
        %v1195 = vld [vmem:[%s3] sm:$0x1]
        %v1196 = vlaneseq
        %v1197 = vshrl.u32 %v1196, 7
        %v1198 = vsub.s32 0, %v1197
        %v1199 = vrot.slane %v1195, %v1198
        %1201 = vrot.lane.b32.xlu0 %v1199, 1
        %v1202 = vpop.permute.xlu0 %1201
        %v1204 = vadd.f32 %v1193, %v1202
        %v1205 = vadd.f32 %v1194, %v1202
        %v1206 = vmax.f32 %v1204, 0.0
        %v1207 = vmax.f32 %v1205, 0.0
        %1210 = vrot.lane.b32.xlu0 %v1206, 7
        %v1211 = vpop.permute.xlu0 %1210
        %1212 = vrot.lane.b32.xlu0 %v1207, 7
        %v1213 = vpop.permute.xlu0 %1212
        %1216 = vst.msk [vmem:[#allocation2 + $0x1] sm:$0xff] %vm263, %v1211
        %1217 = vst.msk [vmem:[#allocation2 + $0x9] sm:$0xff] %vm263, %v1213
        %v1218 = vld [vmem:[#allocation2] sm:$0xff]
        %v1219 = vld [vmem:[#allocation2 + $0x8] sm:$0xff]
        %v1220 = vld [vmem:[#allocation8] sm:$0x1]
        %v1221 = vlaneseq
        %v1222 = vshrl.u32 %v1221, 7
        %v1223 = vsub.s32 0, %v1222
        %v1224 = vrot.slane %v1220, %v1223
        %1226 = vrot.lane.b32.xlu0 %v1224, 1
        %v1227 = vpop.permute.xlu0 %1226
        %v1229 = vmul.f32 %v1218, %v1227
        %v1230 = vmul.f32 %v1219, %v1227
        %v1231 = vadd.f32 %v1229, 0.0
        %v1232 = vadd.f32 %v1230, 0.0
        %v1233 = vld [vmem:[#allocation8 + $0x1] sm:$0x1]
        %v1234 = vlaneseq
        %v1235 = vshrl.u32 %v1234, 7
        %v1236 = vsub.s32 0, %v1235
        %v1237 = vrot.slane %v1233, %v1236
        %1239 = vrot.lane.b32.xlu0 %v1237, 2
        %v1240 = vpop.permute.xlu0 %1239
        %v1242 = vmul.f32 %v1218, %v1240
        %v1243 = vmul.f32 %v1219, %v1240
        %1246 = vrot.lane.b32.xlu0 %v1242, 127
        %v1247 = vpop.permute.xlu0 %1246
        %1248 = vrot.lane.b32.xlu0 %v1243, 127
        %v1249 = vpop.permute.xlu0 %1248
        %v1252 = vadd.f32 %v1231, %v1247
        %v1253 = vadd.f32 %v1232, %v1249
        %v1254 = vld [vmem:[#allocation8 + $0x2] sm:$0x1]
        %v1255 = vlaneseq
        %v1256 = vshrl.u32 %v1255, 7
        %v1257 = vsub.s32 0, %v1256
        %v1258 = vrot.slane %v1254, %v1257
        %1260 = vrot.lane.b32.xlu0 %v1258, 3
        %v1261 = vpop.permute.xlu0 %1260
        %v1263 = vmul.f32 %v1218, %v1261
        %v1264 = vmul.f32 %v1219, %v1261
        %1267 = vrot.lane.b32.xlu0 %v1263, 126
        %v1268 = vpop.permute.xlu0 %1267
        %1269 = vrot.lane.b32.xlu0 %v1264, 126
        %v1270 = vpop.permute.xlu0 %1269
        %v1273 = vadd.f32 %v1252, %v1268
        %v1274 = vadd.f32 %v1253, %v1270
        %v1275 = vld [vmem:[#allocation8 + $0x3] sm:$0x1]
        %v1276 = vlaneseq
        %v1277 = vshrl.u32 %v1276, 7
        %v1278 = vsub.s32 0, %v1277
        %v1279 = vrot.slane %v1275, %v1278
        %1281 = vrot.lane.b32.xlu0 %v1279, 4
        %v1282 = vpop.permute.xlu0 %1281
        %v1284 = vmul.f32 %v1218, %v1282
        %v1285 = vmul.f32 %v1219, %v1282
        %1288 = vrot.lane.b32.xlu0 %v1284, 125
        %v1289 = vpop.permute.xlu0 %1288
        %1290 = vrot.lane.b32.xlu0 %v1285, 125
        %v1291 = vpop.permute.xlu0 %1290
        %v1294 = vadd.f32 %v1273, %v1289
        %v1295 = vadd.f32 %v1274, %v1291
        %v1296 = vld [vmem:[#allocation8 + $0x4] sm:$0x1]
        %v1297 = vlaneseq
        %v1298 = vshrl.u32 %v1297, 7
        %v1299 = vsub.s32 0, %v1298
        %v1300 = vrot.slane %v1296, %v1299
        %1302 = vrot.lane.b32.xlu0 %v1300, 5
        %v1303 = vpop.permute.xlu0 %1302
        %v1305 = vmul.f32 %v1218, %v1303
        %v1306 = vmul.f32 %v1219, %v1303
        %1309 = vrot.lane.b32.xlu0 %v1305, 124
        %v1310 = vpop.permute.xlu0 %1309
        %1311 = vrot.lane.b32.xlu0 %v1306, 124
        %v1312 = vpop.permute.xlu0 %1311
        %v1315 = vadd.f32 %v1294, %v1310
        %v1316 = vadd.f32 %v1295, %v1312
        %v1317 = vld [vmem:[#allocation8 + $0x5] sm:$0x1]
        %v1318 = vlaneseq
        %v1319 = vshrl.u32 %v1318, 7
        %v1320 = vsub.s32 0, %v1319
        %v1321 = vrot.slane %v1317, %v1320
        %1323 = vrot.lane.b32.xlu0 %v1321, 6
        %v1324 = vpop.permute.xlu0 %1323
        %v1326 = vmul.f32 %v1218, %v1324
        %v1327 = vmul.f32 %v1219, %v1324
        %1330 = vrot.lane.b32.xlu0 %v1326, 123
        %v1331 = vpop.permute.xlu0 %1330
        %1332 = vrot.lane.b32.xlu0 %v1327, 123
        %v1333 = vpop.permute.xlu0 %1332
        %v1336 = vadd.f32 %v1315, %v1331
        %v1337 = vadd.f32 %v1316, %v1333
        %v1338 = vld [vmem:[#allocation8 + $0x6] sm:$0x1]
        %v1339 = vlaneseq
        %v1340 = vshrl.u32 %v1339, 7
        %v1341 = vsub.s32 0, %v1340
        %v1342 = vrot.slane %v1338, %v1341
        %1344 = vrot.lane.b32.xlu0 %v1342, 7
        %v1345 = vpop.permute.xlu0 %1344
        %v1347 = vmul.f32 %v1218, %v1345
        %v1348 = vmul.f32 %v1219, %v1345
        %1351 = vrot.lane.b32.xlu0 %v1347, 122
        %v1352 = vpop.permute.xlu0 %1351
        %1353 = vrot.lane.b32.xlu0 %v1348, 122
        %v1354 = vpop.permute.xlu0 %1353
        %v1357 = vadd.f32 %v1336, %v1352
        %v1358 = vadd.f32 %v1337, %v1354
        %v1359 = vld [vmem:[#allocation8 + $0x7] sm:$0x1]
        %v1360 = vlaneseq
        %v1361 = vshrl.u32 %v1360, 7
        %v1362 = vsub.s32 0, %v1361
        %v1363 = vrot.slane %v1359, %v1362
        %1365 = vrot.lane.b32.xlu0 %v1363, 8
        %v1366 = vpop.permute.xlu0 %1365
        %v1368 = vmul.f32 %v1218, %v1366
        %v1369 = vmul.f32 %v1219, %v1366
        %1372 = vrot.lane.b32.xlu0 %v1368, 121
        %v1373 = vpop.permute.xlu0 %1372
        %1374 = vrot.lane.b32.xlu0 %v1369, 121
        %v1375 = vpop.permute.xlu0 %1374
        %v1378 = vadd.f32 %v1357, %v1373
        %v1379 = vadd.f32 %v1358, %v1375
        %v1380 = vld [vmem:[#allocation8 + $0x8] sm:$0x1]
        %v1381 = vlaneseq
        %v1382 = vshrl.u32 %v1381, 7
        %v1383 = vsub.s32 0, %v1382
        %v1384 = vrot.slane %v1380, %v1383
        %1386 = vrot.lane.b32.xlu0 %v1384, 9
        %v1387 = vpop.permute.xlu0 %1386
        %v1389 = vmul.f32 %v1218, %v1387
        %v1390 = vmul.f32 %v1219, %v1387
        %1393 = vrot.lane.b32.xlu0 %v1389, 120
        %v1394 = vpop.permute.xlu0 %1393
        %1395 = vrot.lane.b32.xlu0 %v1390, 120
        %v1396 = vpop.permute.xlu0 %1395
        %v1399 = vadd.f32 %v1378, %v1394
        %v1400 = vadd.f32 %v1379, %v1396
        %v1401 = vld [vmem:[#allocation8 + $0x9] sm:$0x1]
        %v1402 = vlaneseq
        %v1403 = vshrl.u32 %v1402, 7
        %v1404 = vsub.s32 0, %v1403
        %v1405 = vrot.slane %v1401, %v1404
        %1407 = vrot.lane.b32.xlu0 %v1405, 10
        %v1408 = vpop.permute.xlu0 %1407
        %v1410 = vmul.f32 %v1218, %v1408
        %v1411 = vmul.f32 %v1219, %v1408
        %1414 = vrot.lane.b32.xlu0 %v1410, 119
        %v1415 = vpop.permute.xlu0 %1414
        %1416 = vrot.lane.b32.xlu0 %v1411, 119
        %v1417 = vpop.permute.xlu0 %1416
        %v1420 = vadd.f32 %v1399, %v1415
        %v1421 = vadd.f32 %v1400, %v1417
        %v1422 = vld [vmem:[#allocation8 + $0xa] sm:$0x1]
        %v1423 = vlaneseq
        %v1424 = vshrl.u32 %v1423, 7
        %v1425 = vsub.s32 0, %v1424
        %v1426 = vrot.slane %v1422, %v1425
        %1428 = vrot.lane.b32.xlu0 %v1426, 11
        %v1429 = vpop.permute.xlu0 %1428
        %v1431 = vmul.f32 %v1218, %v1429
        %v1432 = vmul.f32 %v1219, %v1429
        %1435 = vrot.lane.b32.xlu0 %v1431, 118
        %v1436 = vpop.permute.xlu0 %1435
        %1437 = vrot.lane.b32.xlu0 %v1432, 118
        %v1438 = vpop.permute.xlu0 %1437
        %v1441 = vadd.f32 %v1420, %v1436
        %v1442 = vadd.f32 %v1421, %v1438
        %v1443 = vld [vmem:[#allocation8 + $0xb] sm:$0x1]
        %v1444 = vlaneseq
        %v1445 = vshrl.u32 %v1444, 7
        %v1446 = vsub.s32 0, %v1445
        %v1447 = vrot.slane %v1443, %v1446
        %1449 = vrot.lane.b32.xlu0 %v1447, 12
        %v1450 = vpop.permute.xlu0 %1449
        %v1452 = vmul.f32 %v1218, %v1450
        %v1453 = vmul.f32 %v1219, %v1450
        %1456 = vrot.lane.b32.xlu0 %v1452, 117
        %v1457 = vpop.permute.xlu0 %1456
        %1458 = vrot.lane.b32.xlu0 %v1453, 117
        %v1459 = vpop.permute.xlu0 %1458
        %v1462 = vadd.f32 %v1441, %v1457
        %v1463 = vadd.f32 %v1442, %v1459
        %v1464 = vld [vmem:[#allocation8 + $0xc] sm:$0x1]
        %v1465 = vlaneseq
        %v1466 = vshrl.u32 %v1465, 7
        %v1467 = vsub.s32 0, %v1466
        %v1468 = vrot.slane %v1464, %v1467
        %1470 = vrot.lane.b32.xlu0 %v1468, 13
        %v1471 = vpop.permute.xlu0 %1470
        %v1473 = vmul.f32 %v1218, %v1471
        %v1474 = vmul.f32 %v1219, %v1471
        %1477 = vrot.lane.b32.xlu0 %v1473, 116
        %v1478 = vpop.permute.xlu0 %1477
        %1479 = vrot.lane.b32.xlu0 %v1474, 116
        %v1480 = vpop.permute.xlu0 %1479
        %v1483 = vadd.f32 %v1462, %v1478
        %v1484 = vadd.f32 %v1463, %v1480
        %v1485 = vld [vmem:[#allocation8 + $0xd] sm:$0x1]
        %v1486 = vlaneseq
        %v1487 = vshrl.u32 %v1486, 7
        %v1488 = vsub.s32 0, %v1487
        %v1489 = vrot.slane %v1485, %v1488
        %1491 = vrot.lane.b32.xlu0 %v1489, 14
        %v1492 = vpop.permute.xlu0 %1491
        %v1494 = vmul.f32 %v1218, %v1492
        %v1495 = vmul.f32 %v1219, %v1492
        %1498 = vrot.lane.b32.xlu0 %v1494, 115
        %v1499 = vpop.permute.xlu0 %1498
        %1500 = vrot.lane.b32.xlu0 %v1495, 115
        %v1501 = vpop.permute.xlu0 %1500
        %v1504 = vadd.f32 %v1483, %v1499
        %v1505 = vadd.f32 %v1484, %v1501
        %v1506 = vld [vmem:[#allocation8 + $0xe] sm:$0x1]
        %v1507 = vlaneseq
        %v1508 = vshrl.u32 %v1507, 7
        %v1509 = vsub.s32 0, %v1508
        %v1510 = vrot.slane %v1506, %v1509
        %1512 = vrot.lane.b32.xlu0 %v1510, 15
        %v1513 = vpop.permute.xlu0 %1512
        %v1515 = vmul.f32 %v1218, %v1513
        %v1516 = vmul.f32 %v1219, %v1513
        %1519 = vrot.lane.b32.xlu0 %v1515, 114
        %v1520 = vpop.permute.xlu0 %1519
        %1521 = vrot.lane.b32.xlu0 %v1516, 114
        %v1522 = vpop.permute.xlu0 %1521
        %v1525 = vadd.f32 %v1504, %v1520
        %v1526 = vadd.f32 %v1505, %v1522
        %v1527 = vld [vmem:[#allocation2 + $0x1] sm:$0xff]
        %v1528 = vld [vmem:[#allocation2 + $0x9] sm:$0xff]
        %s1529 = scalar_lea.vmem [#allocation8], 16
        %v1530 = vld [vmem:[%s1529] sm:$0x1]
        %v1531 = vlaneseq
        %v1532 = vshrl.u32 %v1531, 7
        %v1533 = vsub.s32 0, %v1532
        %v1534 = vrot.slane %v1530, %v1533
        %1536 = vrot.lane.b32.xlu0 %v1534, 1
        %v1537 = vpop.permute.xlu0 %1536
        %v1539 = vmul.f32 %v1527, %v1537
        %v1540 = vmul.f32 %v1528, %v1537
        %v1541 = vadd.f32 %v1525, %v1539
        %v1542 = vadd.f32 %v1526, %v1540
        %v1543 = vld [vmem:[%s1529 + $0x1] sm:$0x1]
        %v1544 = vlaneseq
        %v1545 = vshrl.u32 %v1544, 7
        %v1546 = vsub.s32 0, %v1545
        %v1547 = vrot.slane %v1543, %v1546
        %1549 = vrot.lane.b32.xlu0 %v1547, 2
        %v1550 = vpop.permute.xlu0 %1549
        %v1552 = vmul.f32 %v1527, %v1550
        %v1553 = vmul.f32 %v1528, %v1550
        %1556 = vrot.lane.b32.xlu0 %v1552, 127
        %v1557 = vpop.permute.xlu0 %1556
        %1558 = vrot.lane.b32.xlu0 %v1553, 127
        %v1559 = vpop.permute.xlu0 %1558
        %v1562 = vadd.f32 %v1541, %v1557
        %v1563 = vadd.f32 %v1542, %v1559
        %v1564 = vld [vmem:[%s1529 + $0x2] sm:$0x1]
        %v1565 = vlaneseq
        %v1566 = vshrl.u32 %v1565, 7
        %v1567 = vsub.s32 0, %v1566
        %v1568 = vrot.slane %v1564, %v1567
        %1570 = vrot.lane.b32.xlu0 %v1568, 3
        %v1571 = vpop.permute.xlu0 %1570
        %v1573 = vmul.f32 %v1527, %v1571
        %v1574 = vmul.f32 %v1528, %v1571
        %1577 = vrot.lane.b32.xlu0 %v1573, 126
        %v1578 = vpop.permute.xlu0 %1577
        %1579 = vrot.lane.b32.xlu0 %v1574, 126
        %v1580 = vpop.permute.xlu0 %1579
        %v1583 = vadd.f32 %v1562, %v1578
        %v1584 = vadd.f32 %v1563, %v1580
        %v1585 = vld [vmem:[%s1529 + $0x3] sm:$0x1]
        %v1586 = vlaneseq
        %v1587 = vshrl.u32 %v1586, 7
        %v1588 = vsub.s32 0, %v1587
        %v1589 = vrot.slane %v1585, %v1588
        %1591 = vrot.lane.b32.xlu0 %v1589, 4
        %v1592 = vpop.permute.xlu0 %1591
        %v1594 = vmul.f32 %v1527, %v1592
        %v1595 = vmul.f32 %v1528, %v1592
        %1598 = vrot.lane.b32.xlu0 %v1594, 125
        %v1599 = vpop.permute.xlu0 %1598
        %1600 = vrot.lane.b32.xlu0 %v1595, 125
        %v1601 = vpop.permute.xlu0 %1600
        %v1604 = vadd.f32 %v1583, %v1599
        %v1605 = vadd.f32 %v1584, %v1601
        %v1606 = vld [vmem:[%s1529 + $0x4] sm:$0x1]
        %v1607 = vlaneseq
        %v1608 = vshrl.u32 %v1607, 7
        %v1609 = vsub.s32 0, %v1608
        %v1610 = vrot.slane %v1606, %v1609
        %1612 = vrot.lane.b32.xlu0 %v1610, 5
        %v1613 = vpop.permute.xlu0 %1612
        %v1615 = vmul.f32 %v1527, %v1613
        %v1616 = vmul.f32 %v1528, %v1613
        %1619 = vrot.lane.b32.xlu0 %v1615, 124
        %v1620 = vpop.permute.xlu0 %1619
        %1621 = vrot.lane.b32.xlu0 %v1616, 124
        %v1622 = vpop.permute.xlu0 %1621
        %v1625 = vadd.f32 %v1604, %v1620
        %v1626 = vadd.f32 %v1605, %v1622
        %v1627 = vld [vmem:[%s1529 + $0x5] sm:$0x1]
        %v1628 = vlaneseq
        %v1629 = vshrl.u32 %v1628, 7
        %v1630 = vsub.s32 0, %v1629
        %v1631 = vrot.slane %v1627, %v1630
        %1633 = vrot.lane.b32.xlu0 %v1631, 6
        %v1634 = vpop.permute.xlu0 %1633
        %v1636 = vmul.f32 %v1527, %v1634
        %v1637 = vmul.f32 %v1528, %v1634
        %1640 = vrot.lane.b32.xlu0 %v1636, 123
        %v1641 = vpop.permute.xlu0 %1640
        %1642 = vrot.lane.b32.xlu0 %v1637, 123
        %v1643 = vpop.permute.xlu0 %1642
        %v1646 = vadd.f32 %v1625, %v1641
        %v1647 = vadd.f32 %v1626, %v1643
        %v1648 = vld [vmem:[%s1529 + $0x6] sm:$0x1]
        %v1649 = vlaneseq
        %v1650 = vshrl.u32 %v1649, 7
        %v1651 = vsub.s32 0, %v1650
        %v1652 = vrot.slane %v1648, %v1651
        %1654 = vrot.lane.b32.xlu0 %v1652, 7
        %v1655 = vpop.permute.xlu0 %1654
        %v1657 = vmul.f32 %v1527, %v1655
        %v1658 = vmul.f32 %v1528, %v1655
        %1661 = vrot.lane.b32.xlu0 %v1657, 122
        %v1662 = vpop.permute.xlu0 %1661
        %1663 = vrot.lane.b32.xlu0 %v1658, 122
        %v1664 = vpop.permute.xlu0 %1663
        %v1667 = vadd.f32 %v1646, %v1662
        %v1668 = vadd.f32 %v1647, %v1664
        %v1669 = vld [vmem:[%s1529 + $0x7] sm:$0x1]
        %v1670 = vlaneseq
        %v1671 = vshrl.u32 %v1670, 7
        %v1672 = vsub.s32 0, %v1671
        %v1673 = vrot.slane %v1669, %v1672
        %1675 = vrot.lane.b32.xlu0 %v1673, 8
        %v1676 = vpop.permute.xlu0 %1675
        %v1678 = vmul.f32 %v1527, %v1676
        %v1679 = vmul.f32 %v1528, %v1676
        %1682 = vrot.lane.b32.xlu0 %v1678, 121
        %v1683 = vpop.permute.xlu0 %1682
        %1684 = vrot.lane.b32.xlu0 %v1679, 121
        %v1685 = vpop.permute.xlu0 %1684
        %v1688 = vadd.f32 %v1667, %v1683
        %v1689 = vadd.f32 %v1668, %v1685
        %v1690 = vld [vmem:[%s1529 + $0x8] sm:$0x1]
        %v1691 = vlaneseq
        %v1692 = vshrl.u32 %v1691, 7
        %v1693 = vsub.s32 0, %v1692
        %v1694 = vrot.slane %v1690, %v1693
        %1696 = vrot.lane.b32.xlu0 %v1694, 9
        %v1697 = vpop.permute.xlu0 %1696
        %v1699 = vmul.f32 %v1527, %v1697
        %v1700 = vmul.f32 %v1528, %v1697
        %1703 = vrot.lane.b32.xlu0 %v1699, 120
        %v1704 = vpop.permute.xlu0 %1703
        %1705 = vrot.lane.b32.xlu0 %v1700, 120
        %v1706 = vpop.permute.xlu0 %1705
        %v1709 = vadd.f32 %v1688, %v1704
        %v1710 = vadd.f32 %v1689, %v1706
        %v1711 = vld [vmem:[%s1529 + $0x9] sm:$0x1]
        %v1712 = vlaneseq
        %v1713 = vshrl.u32 %v1712, 7
        %v1714 = vsub.s32 0, %v1713
        %v1715 = vrot.slane %v1711, %v1714
        %1717 = vrot.lane.b32.xlu0 %v1715, 10
        %v1718 = vpop.permute.xlu0 %1717
        %v1720 = vmul.f32 %v1527, %v1718
        %v1721 = vmul.f32 %v1528, %v1718
        %1724 = vrot.lane.b32.xlu0 %v1720, 119
        %v1725 = vpop.permute.xlu0 %1724
        %1726 = vrot.lane.b32.xlu0 %v1721, 119
        %v1727 = vpop.permute.xlu0 %1726
        %v1730 = vadd.f32 %v1709, %v1725
        %v1731 = vadd.f32 %v1710, %v1727
        %v1732 = vld [vmem:[%s1529 + $0xa] sm:$0x1]
        %v1733 = vlaneseq
        %v1734 = vshrl.u32 %v1733, 7
        %v1735 = vsub.s32 0, %v1734
        %v1736 = vrot.slane %v1732, %v1735
        %1738 = vrot.lane.b32.xlu0 %v1736, 11
        %v1739 = vpop.permute.xlu0 %1738
        %v1741 = vmul.f32 %v1527, %v1739
        %v1742 = vmul.f32 %v1528, %v1739
        %1745 = vrot.lane.b32.xlu0 %v1741, 118
        %v1746 = vpop.permute.xlu0 %1745
        %1747 = vrot.lane.b32.xlu0 %v1742, 118
        %v1748 = vpop.permute.xlu0 %1747
        %v1751 = vadd.f32 %v1730, %v1746
        %v1752 = vadd.f32 %v1731, %v1748
        %v1753 = vld [vmem:[%s1529 + $0xb] sm:$0x1]
        %v1754 = vlaneseq
        %v1755 = vshrl.u32 %v1754, 7
        %v1756 = vsub.s32 0, %v1755
        %v1757 = vrot.slane %v1753, %v1756
        %1759 = vrot.lane.b32.xlu0 %v1757, 12
        %v1760 = vpop.permute.xlu0 %1759
        %v1762 = vmul.f32 %v1527, %v1760
        %v1763 = vmul.f32 %v1528, %v1760
        %1766 = vrot.lane.b32.xlu0 %v1762, 117
        %v1767 = vpop.permute.xlu0 %1766
        %1768 = vrot.lane.b32.xlu0 %v1763, 117
        %v1769 = vpop.permute.xlu0 %1768
        %v1772 = vadd.f32 %v1751, %v1767
        %v1773 = vadd.f32 %v1752, %v1769
        %v1774 = vld [vmem:[%s1529 + $0xc] sm:$0x1]
        %v1775 = vlaneseq
        %v1776 = vshrl.u32 %v1775, 7
        %v1777 = vsub.s32 0, %v1776
        %v1778 = vrot.slane %v1774, %v1777
        %1780 = vrot.lane.b32.xlu0 %v1778, 13
        %v1781 = vpop.permute.xlu0 %1780
        %v1783 = vmul.f32 %v1527, %v1781
        %v1784 = vmul.f32 %v1528, %v1781
        %1787 = vrot.lane.b32.xlu0 %v1783, 116
        %v1788 = vpop.permute.xlu0 %1787
        %1789 = vrot.lane.b32.xlu0 %v1784, 116
        %v1790 = vpop.permute.xlu0 %1789
        %v1793 = vadd.f32 %v1772, %v1788
        %v1794 = vadd.f32 %v1773, %v1790
        %v1795 = vld [vmem:[%s1529 + $0xd] sm:$0x1]
        %v1796 = vlaneseq
        %v1797 = vshrl.u32 %v1796, 7
        %v1798 = vsub.s32 0, %v1797
        %v1799 = vrot.slane %v1795, %v1798
        %1801 = vrot.lane.b32.xlu0 %v1799, 14
        %v1802 = vpop.permute.xlu0 %1801
        %v1804 = vmul.f32 %v1527, %v1802
        %v1805 = vmul.f32 %v1528, %v1802
        %1808 = vrot.lane.b32.xlu0 %v1804, 115
        %v1809 = vpop.permute.xlu0 %1808
        %1810 = vrot.lane.b32.xlu0 %v1805, 115
        %v1811 = vpop.permute.xlu0 %1810
        %v1814 = vadd.f32 %v1793, %v1809
        %v1815 = vadd.f32 %v1794, %v1811
        %v1816 = vld [vmem:[%s1529 + $0xe] sm:$0x1]
        %v1817 = vlaneseq
        %v1818 = vshrl.u32 %v1817, 7
        %v1819 = vsub.s32 0, %v1818
        %v1820 = vrot.slane %v1816, %v1819
        %1822 = vrot.lane.b32.xlu0 %v1820, 15
        %v1823 = vpop.permute.xlu0 %1822
        %v1825 = vmul.f32 %v1527, %v1823
        %v1826 = vmul.f32 %v1528, %v1823
        %1829 = vrot.lane.b32.xlu0 %v1825, 114
        %v1830 = vpop.permute.xlu0 %1829
        %1831 = vrot.lane.b32.xlu0 %v1826, 114
        %v1832 = vpop.permute.xlu0 %1831
        %v1835 = vadd.f32 %v1814, %v1830
        %v1836 = vadd.f32 %v1815, %v1832
        %v1837 = vld [vmem:[#allocation2 + $0x2] sm:$0xff]
        %v1838 = vld [vmem:[#allocation2 + $0xa] sm:$0xff]
        %s1839 = scalar_lea.vmem [#allocation8], 32
        %v1840 = vld [vmem:[%s1839] sm:$0x1]
        %v1841 = vlaneseq
        %v1842 = vshrl.u32 %v1841, 7
        %v1843 = vsub.s32 0, %v1842
        %v1844 = vrot.slane %v1840, %v1843
        %1846 = vrot.lane.b32.xlu0 %v1844, 1
        %v1847 = vpop.permute.xlu0 %1846
        %v1849 = vmul.f32 %v1837, %v1847
        %v1850 = vmul.f32 %v1838, %v1847
        %v1851 = vadd.f32 %v1835, %v1849
        %v1852 = vadd.f32 %v1836, %v1850
        %v1853 = vld [vmem:[%s1839 + $0x1] sm:$0x1]
        %v1854 = vlaneseq
        %v1855 = vshrl.u32 %v1854, 7
        %v1856 = vsub.s32 0, %v1855
        %v1857 = vrot.slane %v1853, %v1856
        %1859 = vrot.lane.b32.xlu0 %v1857, 2
        %v1860 = vpop.permute.xlu0 %1859
        %v1862 = vmul.f32 %v1837, %v1860
        %v1863 = vmul.f32 %v1838, %v1860
        %1866 = vrot.lane.b32.xlu0 %v1862, 127
        %v1867 = vpop.permute.xlu0 %1866
        %1868 = vrot.lane.b32.xlu0 %v1863, 127
        %v1869 = vpop.permute.xlu0 %1868
        %v1872 = vadd.f32 %v1851, %v1867
        %v1873 = vadd.f32 %v1852, %v1869
        %v1874 = vld [vmem:[%s1839 + $0x2] sm:$0x1]
        %v1875 = vlaneseq
        %v1876 = vshrl.u32 %v1875, 7
        %v1877 = vsub.s32 0, %v1876
        %v1878 = vrot.slane %v1874, %v1877
        %1880 = vrot.lane.b32.xlu0 %v1878, 3
        %v1881 = vpop.permute.xlu0 %1880
        %v1883 = vmul.f32 %v1837, %v1881
        %v1884 = vmul.f32 %v1838, %v1881
        %1887 = vrot.lane.b32.xlu0 %v1883, 126
        %v1888 = vpop.permute.xlu0 %1887
        %1889 = vrot.lane.b32.xlu0 %v1884, 126
        %v1890 = vpop.permute.xlu0 %1889
        %v1893 = vadd.f32 %v1872, %v1888
        %v1894 = vadd.f32 %v1873, %v1890
        %v1895 = vld [vmem:[%s1839 + $0x3] sm:$0x1]
        %v1896 = vlaneseq
        %v1897 = vshrl.u32 %v1896, 7
        %v1898 = vsub.s32 0, %v1897
        %v1899 = vrot.slane %v1895, %v1898
        %1901 = vrot.lane.b32.xlu0 %v1899, 4
        %v1902 = vpop.permute.xlu0 %1901
        %v1904 = vmul.f32 %v1837, %v1902
        %v1905 = vmul.f32 %v1838, %v1902
        %1908 = vrot.lane.b32.xlu0 %v1904, 125
        %v1909 = vpop.permute.xlu0 %1908
        %1910 = vrot.lane.b32.xlu0 %v1905, 125
        %v1911 = vpop.permute.xlu0 %1910
        %v1914 = vadd.f32 %v1893, %v1909
        %v1915 = vadd.f32 %v1894, %v1911
        %v1916 = vld [vmem:[%s1839 + $0x4] sm:$0x1]
        %v1917 = vlaneseq
        %v1918 = vshrl.u32 %v1917, 7
        %v1919 = vsub.s32 0, %v1918
        %v1920 = vrot.slane %v1916, %v1919
        %1922 = vrot.lane.b32.xlu0 %v1920, 5
        %v1923 = vpop.permute.xlu0 %1922
        %v1925 = vmul.f32 %v1837, %v1923
        %v1926 = vmul.f32 %v1838, %v1923
        %1929 = vrot.lane.b32.xlu0 %v1925, 124
        %v1930 = vpop.permute.xlu0 %1929
        %1931 = vrot.lane.b32.xlu0 %v1926, 124
        %v1932 = vpop.permute.xlu0 %1931
        %v1935 = vadd.f32 %v1914, %v1930
        %v1936 = vadd.f32 %v1915, %v1932
        %v1937 = vld [vmem:[%s1839 + $0x5] sm:$0x1]
        %v1938 = vlaneseq
        %v1939 = vshrl.u32 %v1938, 7
        %v1940 = vsub.s32 0, %v1939
        %v1941 = vrot.slane %v1937, %v1940
        %1943 = vrot.lane.b32.xlu0 %v1941, 6
        %v1944 = vpop.permute.xlu0 %1943
        %v1946 = vmul.f32 %v1837, %v1944
        %v1947 = vmul.f32 %v1838, %v1944
        %1950 = vrot.lane.b32.xlu0 %v1946, 123
        %v1951 = vpop.permute.xlu0 %1950
        %1952 = vrot.lane.b32.xlu0 %v1947, 123
        %v1953 = vpop.permute.xlu0 %1952
        %v1956 = vadd.f32 %v1935, %v1951
        %v1957 = vadd.f32 %v1936, %v1953
        %v1958 = vld [vmem:[%s1839 + $0x6] sm:$0x1]
        %v1959 = vlaneseq
        %v1960 = vshrl.u32 %v1959, 7
        %v1961 = vsub.s32 0, %v1960
        %v1962 = vrot.slane %v1958, %v1961
        %1964 = vrot.lane.b32.xlu0 %v1962, 7
        %v1965 = vpop.permute.xlu0 %1964
        %v1967 = vmul.f32 %v1837, %v1965
        %v1968 = vmul.f32 %v1838, %v1965
        %1971 = vrot.lane.b32.xlu0 %v1967, 122
        %v1972 = vpop.permute.xlu0 %1971
        %1973 = vrot.lane.b32.xlu0 %v1968, 122
        %v1974 = vpop.permute.xlu0 %1973
        %v1977 = vadd.f32 %v1956, %v1972
        %v1978 = vadd.f32 %v1957, %v1974
        %v1979 = vld [vmem:[%s1839 + $0x7] sm:$0x1]
        %v1980 = vlaneseq
        %v1981 = vshrl.u32 %v1980, 7
        %v1982 = vsub.s32 0, %v1981
        %v1983 = vrot.slane %v1979, %v1982
        %1985 = vrot.lane.b32.xlu0 %v1983, 8
        %v1986 = vpop.permute.xlu0 %1985
        %v1988 = vmul.f32 %v1837, %v1986
        %v1989 = vmul.f32 %v1838, %v1986
        %1992 = vrot.lane.b32.xlu0 %v1988, 121
        %v1993 = vpop.permute.xlu0 %1992
        %1994 = vrot.lane.b32.xlu0 %v1989, 121
        %v1995 = vpop.permute.xlu0 %1994
        %v1998 = vadd.f32 %v1977, %v1993
        %v1999 = vadd.f32 %v1978, %v1995
        %v2000 = vld [vmem:[%s1839 + $0x8] sm:$0x1]
        %v2001 = vlaneseq
        %v2002 = vshrl.u32 %v2001, 7
        %v2003 = vsub.s32 0, %v2002
        %v2004 = vrot.slane %v2000, %v2003
        %2006 = vrot.lane.b32.xlu0 %v2004, 9
        %v2007 = vpop.permute.xlu0 %2006
        %v2009 = vmul.f32 %v1837, %v2007
        %v2010 = vmul.f32 %v1838, %v2007
        %2013 = vrot.lane.b32.xlu0 %v2009, 120
        %v2014 = vpop.permute.xlu0 %2013
        %2015 = vrot.lane.b32.xlu0 %v2010, 120
        %v2016 = vpop.permute.xlu0 %2015
        %v2019 = vadd.f32 %v1998, %v2014
        %v2020 = vadd.f32 %v1999, %v2016
        %v2021 = vld [vmem:[%s1839 + $0x9] sm:$0x1]
        %v2022 = vlaneseq
        %v2023 = vshrl.u32 %v2022, 7
        %v2024 = vsub.s32 0, %v2023
        %v2025 = vrot.slane %v2021, %v2024
        %2027 = vrot.lane.b32.xlu0 %v2025, 10
        %v2028 = vpop.permute.xlu0 %2027
        %v2030 = vmul.f32 %v1837, %v2028
        %v2031 = vmul.f32 %v1838, %v2028
        %2034 = vrot.lane.b32.xlu0 %v2030, 119
        %v2035 = vpop.permute.xlu0 %2034
        %2036 = vrot.lane.b32.xlu0 %v2031, 119
        %v2037 = vpop.permute.xlu0 %2036
        %v2040 = vadd.f32 %v2019, %v2035
        %v2041 = vadd.f32 %v2020, %v2037
        %v2042 = vld [vmem:[%s1839 + $0xa] sm:$0x1]
        %v2043 = vlaneseq
        %v2044 = vshrl.u32 %v2043, 7
        %v2045 = vsub.s32 0, %v2044
        %v2046 = vrot.slane %v2042, %v2045
        %2048 = vrot.lane.b32.xlu0 %v2046, 11
        %v2049 = vpop.permute.xlu0 %2048
        %v2051 = vmul.f32 %v1837, %v2049
        %v2052 = vmul.f32 %v1838, %v2049
        %2055 = vrot.lane.b32.xlu0 %v2051, 118
        %v2056 = vpop.permute.xlu0 %2055
        %2057 = vrot.lane.b32.xlu0 %v2052, 118
        %v2058 = vpop.permute.xlu0 %2057
        %v2061 = vadd.f32 %v2040, %v2056
        %v2062 = vadd.f32 %v2041, %v2058
        %v2063 = vld [vmem:[%s1839 + $0xb] sm:$0x1]
        %v2064 = vlaneseq
        %v2065 = vshrl.u32 %v2064, 7
        %v2066 = vsub.s32 0, %v2065
        %v2067 = vrot.slane %v2063, %v2066
        %2069 = vrot.lane.b32.xlu0 %v2067, 12
        %v2070 = vpop.permute.xlu0 %2069
        %v2072 = vmul.f32 %v1837, %v2070
        %v2073 = vmul.f32 %v1838, %v2070
        %2076 = vrot.lane.b32.xlu0 %v2072, 117
        %v2077 = vpop.permute.xlu0 %2076
        %2078 = vrot.lane.b32.xlu0 %v2073, 117
        %v2079 = vpop.permute.xlu0 %2078
        %v2082 = vadd.f32 %v2061, %v2077
        %v2083 = vadd.f32 %v2062, %v2079
        %v2084 = vld [vmem:[%s1839 + $0xc] sm:$0x1]
        %v2085 = vlaneseq
        %v2086 = vshrl.u32 %v2085, 7
        %v2087 = vsub.s32 0, %v2086
        %v2088 = vrot.slane %v2084, %v2087
        %2090 = vrot.lane.b32.xlu0 %v2088, 13
        %v2091 = vpop.permute.xlu0 %2090
        %v2093 = vmul.f32 %v1837, %v2091
        %v2094 = vmul.f32 %v1838, %v2091
        %2097 = vrot.lane.b32.xlu0 %v2093, 116
        %v2098 = vpop.permute.xlu0 %2097
        %2099 = vrot.lane.b32.xlu0 %v2094, 116
        %v2100 = vpop.permute.xlu0 %2099
        %v2103 = vadd.f32 %v2082, %v2098
        %v2104 = vadd.f32 %v2083, %v2100
        %v2105 = vld [vmem:[%s1839 + $0xd] sm:$0x1]
        %v2106 = vlaneseq
        %v2107 = vshrl.u32 %v2106, 7
        %v2108 = vsub.s32 0, %v2107
        %v2109 = vrot.slane %v2105, %v2108
        %2111 = vrot.lane.b32.xlu0 %v2109, 14
        %v2112 = vpop.permute.xlu0 %2111
        %v2114 = vmul.f32 %v1837, %v2112
        %v2115 = vmul.f32 %v1838, %v2112
        %2118 = vrot.lane.b32.xlu0 %v2114, 115
        %v2119 = vpop.permute.xlu0 %2118
        %2120 = vrot.lane.b32.xlu0 %v2115, 115
        %v2121 = vpop.permute.xlu0 %2120
        %v2124 = vadd.f32 %v2103, %v2119
        %v2125 = vadd.f32 %v2104, %v2121
        %v2126 = vld [vmem:[%s1839 + $0xe] sm:$0x1]
        %v2127 = vlaneseq
        %v2128 = vshrl.u32 %v2127, 7
        %v2129 = vsub.s32 0, %v2128
        %v2130 = vrot.slane %v2126, %v2129
        %2132 = vrot.lane.b32.xlu0 %v2130, 15
        %v2133 = vpop.permute.xlu0 %2132
        %v2135 = vmul.f32 %v1837, %v2133
        %v2136 = vmul.f32 %v1838, %v2133
        %2139 = vrot.lane.b32.xlu0 %v2135, 114
        %v2140 = vpop.permute.xlu0 %2139
        %2141 = vrot.lane.b32.xlu0 %v2136, 114
        %v2142 = vpop.permute.xlu0 %2141
        %v2145 = vadd.f32 %v2124, %v2140
        %v2146 = vadd.f32 %v2125, %v2142
        %v2147 = vld [vmem:[%s3 + $0x1] sm:$0x1]
        %v2148 = vlaneseq
        %v2149 = vshrl.u32 %v2148, 7
        %v2150 = vsub.s32 0, %v2149
        %v2151 = vrot.slane %v2147, %v2150
        %2153 = vrot.lane.b32.xlu0 %v2151, 1
        %v2154 = vpop.permute.xlu0 %2153
        %v2156 = vadd.f32 %v2145, %v2154
        %v2157 = vadd.f32 %v2146, %v2154
        %2158 = vrot.lane.b32.xlu0 %v245, 1
        %v2159 = vpop.permute.xlu0 %2158
        %2160 = vrot.lane.b32.xlu0 %v246, 1
        %v2161 = vpop.permute.xlu0 %2160
        %v2164 = vadd.f32 %v2156, %v2159
        %v2165 = vadd.f32 %v2157, %v2161
        %v2166 = vmax.f32 %v2164, 0.0
        %v2167 = vmax.f32 %v2165, 0.0
        %2170 = vrot.lane.b32.xlu0 %v2166, 127
        %v2171 = vpop.permute.xlu0 %2170
        %2172 = vrot.lane.b32.xlu0 %v2167, 127
        %v2173 = vpop.permute.xlu0 %2172
        %vm2176 = vcmask 523264
        %2177 = vst.msk [vmem:[%s244] sm:$0xff] %vm2176, %v2171
        %2178 = vst.msk [vmem:[%s244 + $0x8] sm:$0xff] %vm2176, %v2173
        %s2179 = sand.u32 %s119, 1
        %s2180 = scalar_lea.sflag [#allocation5], %s2179
        %s2181 = sand.u32 %s119, 1
        %s2182 = smul.addr %s2181, 16
        %s2183 = scalar_lea.vmem [#allocation9], %s2182
        // Predicated region
        $region49: #{tpu_custom_call.1} parent=35 // pred_check
          %p2184 = pneg %p129
        $region50: #{tpu_custom_call.1} parent=35 // pred_check_branch
          %2186 = sbr.rel (%p2184) target = $region52
        $region51: #{tpu_custom_call.1} parent=35 // pred_region
          %s2188 = ssub.s32 256, 256
          %2189 = vsyncadd %s2180, %s2188
          %s2190 = smul.addr %s22, 2
          %s2191 = smul.addr %s2190, 128
          %s2192 = scalar_lea.hbm %s4, %s2191
          %s2193 = sshll.u32 %s2183, 4
          %s2194 = int_to_ptr.vmem [resolvable:$true] %s2193
          %2199 = dma.vmem_to_hbm [thread:$0]  %s2194, 256, %s2192, %s2180, 128, 128, 8
        $region52: #{tpu_custom_call.1} parent=35 // pred_fallthru
          _
      $region36: #{tpu_custom_call.1} parent=5 // pred_fallthru
        _
      %p2200 = scmp.le.s32.totalorder 2, %s17
      // Predicated region
      $region53: #{tpu_custom_call.1} parent=5 // pred_check
        %p2201 = pneg %p2200
      $region54: #{tpu_custom_call.1} parent=5 // pred_check_branch
        %2203 = sbr.rel (%p2201) target = $region56
      $region55: #{tpu_custom_call.1} parent=5 // pred_region
        %s2204 = ssub.s32 %s17, 2
        // Predicated region
        $region57: #{tpu_custom_call.1} parent=55 // pred_check
          %p2205 = pneg %p135
        $region58: #{tpu_custom_call.1} parent=55 // pred_check_branch
          %2207 = sbr.rel (%p2205) target = $region60
        $region59: #{tpu_custom_call.1} parent=55 // pred_region
          %s2208 = sand.u32 %s120, 1
          %s2209 = scalar_lea.sflag [#allocation5], %s2208
          %s2210 = sand.u32 %s120, 1
          %s2211 = smul.addr %s2210, 16
          %s2212 = scalar_lea.vmem [#allocation9], %s2211
          %2213 = dma.done %s2209, 256
        $region60: #{tpu_custom_call.1} parent=55 // pred_fallthru
          _
      $region56: #{tpu_custom_call.1} parent=5 // pred_fallthru
        _
    $region6: #{tpu_custom_call.1} parent=1 // loop_footer
      %s21 = sadd.s32 1, %s17
    $region7: #{tpu_custom_call.1} parent=1 // loop_footer_branch
      %16 = sbr.rel target = $region3
    $region8: #{tpu_custom_call.1} parent=1 // loop_exit
      _
    %2214 = vsyncpa [#allocation4], 1
    %s2215 = scalar_lea.sflag [#allocation4], 1
    %2216 = vsyncpa %s2215, 1
    %2217 = vsyncpa [#allocation7], 1
    %2218 = vsyncpa [#allocation5], 1
    %s2219 = scalar_lea.sflag [#allocation5], 1
    %2220 = vsyncpa %s2219, 1

</llo_original>
